<compile_context>
chip_gen: v6e
topology: v6e:2x2x1
jax: 0.10.0
libtpu: 0.0.40
codegen_flags: <defaults>
</compile_context>

<pallas_src>
import functools

import jax
import jax.numpy as jnp
from jax.experimental import pallas as pl
from jax.experimental.pallas import tpu as pltpu


def _round_up(x, m):
    return ((x + m - 1) // m) * m


def _pick_tile(size, cap):
    for t in (1024, 512, 256, 128, 64, 32, 16, 8):
        if t <= cap and size % t == 0:
            return t
    return size


# ------------------- matmul (+ fused ReLU / fused BN stats) -------------------
def _mm_accumulate(a_ref, b_ref, acc_ref):
    @pl.when(pl.program_id(2) == 0)
    def _():
        acc_ref[...] = jnp.zeros_like(acc_ref)

    acc_ref[...] += jnp.dot(a_ref[...], b_ref[...],
                            preferred_element_type=jnp.float32)


def _mm_kernel(a_ref, b_ref, o_ref, acc_ref, *, apply_relu):
    _mm_accumulate(a_ref, b_ref, acc_ref)

    @pl.when(pl.program_id(2) == pl.num_programs(2) - 1)
    def _():
        r = acc_ref[...]
        if apply_relu:
            r = jnp.maximum(r, 0.0)
        o_ref[...] = r.astype(o_ref.dtype)


def _mm_stats_kernel(a_ref, b_ref, o_ref, sum_ref, sq_ref, acc_ref, *,
                     apply_relu):
    _mm_accumulate(a_ref, b_ref, acc_ref)

    @pl.when(pl.program_id(2) == pl.num_programs(2) - 1)
    def _():
        r = acc_ref[...]
        # Per-channel batch statistics of the pre-activation conv output,
        # fused into the epilogue (saves a full HBM re-read for BatchNorm).
        s = jnp.sum(r, axis=0, keepdims=True)        # (1, tn)
        q = jnp.sum(r * r, axis=0, keepdims=True)    # (1, tn)
        sum_ref[...] = jnp.broadcast_to(s, sum_ref.shape)
        sq_ref[...] = jnp.broadcast_to(q, sq_ref.shape)
        if apply_relu:
            r = jnp.maximum(r, 0.0)
        o_ref[...] = r.astype(o_ref.dtype)


def pallas_matmul(a, b_padded, n_true, *, apply_relu=False, with_stats=False,
                  out_dtype=jnp.bfloat16):
    """a: (M, K) activation patches (cast to bf16).
    b_padded: (Kp, Np) pre-padded bf16 weight matrix (Kp, Np multiples of 128).

    Returns out[Mp, Np] in out_dtype, and if with_stats also
    (col_sum[n_true], col_sqsum[n_true]) of the pre-activation product
    (padded rows of `a` are zero so they do not contaminate the sums)."""
    M, K = a.shape
    Kp, Np = b_padded.shape

    tm = min(512, _round_up(M, 8))
    Mp = _round_up(M, tm)
    tk = 512 if Kp % 512 == 0 else (256 if Kp % 256 == 0 else 128)
    tn = 512 if Np % 512 == 0 else (256 if Np % 256 == 0 else 128)

    a = a.astype(jnp.bfloat16)
    if (Mp, Kp) != (M, K):                      # pad only when actually needed
        a = jnp.zeros((Mp, Kp), jnp.bfloat16).at[:M, :K].set(a)

    gm, gn, gk = Mp // tm, Np // tn, Kp // tk

    out_spec = pl.BlockSpec((tm, tn), lambda i, j, k: (i, j))
    if with_stats:
        kernel = functools.partial(_mm_stats_kernel, apply_relu=apply_relu)
        out_shape = (jax.ShapeDtypeStruct((Mp, Np), out_dtype),
                     jax.ShapeDtypeStruct((gm, 8, Np), jnp.float32),
                     jax.ShapeDtypeStruct((gm, 8, Np), jnp.float32))
        stat_spec = pl.BlockSpec((1, 8, tn), lambda i, j, k: (i, 0, j))
        out_specs = [out_spec, stat_spec, stat_spec]
    else:
        kernel = functools.partial(_mm_kernel, apply_relu=apply_relu)
        out_shape = jax.ShapeDtypeStruct((Mp, Np), out_dtype)
        out_specs = out_spec

    res = pl.pallas_call(
        kernel,
        out_shape=out_shape,
        grid_spec=pltpu.PrefetchScalarGridSpec(
            num_scalar_prefetch=0,
            grid=(gm, gn, gk),
            in_specs=[pl.BlockSpec((tm, tk), lambda i, j, k: (i, k)),
                      pl.BlockSpec((tk, tn), lambda i, j, k: (k, j))],
            out_specs=out_specs,
            scratch_shapes=[pltpu.VMEM((tm, tn), jnp.float32)]),
        compiler_params=pltpu.CompilerParams(
            dimension_semantics=("parallel", "parallel", "arbitrary")),
    )(a, b_padded)

    if not with_stats:
        return res, None, None
    out, sums, sqs = res
    col_sum = jnp.sum(sums[:, 0, :n_true], axis=0)
    col_sq = jnp.sum(sqs[:, 0, :n_true], axis=0)
    return out, col_sum, col_sq


# --------------------- BatchNorm (train) apply + ReLU -------------------------
def _bn_relu_kernel(x_ref, scale_ref, shift_ref, o_ref):
    x = x_ref[...].astype(jnp.float32)
    o_ref[...] = jnp.maximum(x * scale_ref[...] + shift_ref[...],
                             0.0).astype(o_ref.dtype)


def bn_relu_apply(y2d, scale, shift):
    """y2d: (Mp, Np) conv output (rows = B*OH*OW [+pad], cols = channels [+pad]).
    scale/shift: (C,) f32. Returns bf16 (Mp, Np) = relu(scale*y + shift)."""
    Mp, Np = y2d.shape
    C = scale.shape[0]
    scale_p = jnp.zeros((1, Np), jnp.float32).at[0, :C].set(scale)
    shift_p = jnp.zeros((1, Np), jnp.float32).at[0, :C].set(shift)
    tm = _pick_tile(Mp, 1024)
    return pl.pallas_call(
        _bn_relu_kernel,
        out_shape=jax.ShapeDtypeStruct((Mp, Np), jnp.bfloat16),
        grid_spec=pltpu.PrefetchScalarGridSpec(
            num_scalar_prefetch=0,
            grid=(Mp // tm,),
            in_specs=[pl.BlockSpec((tm, Np), lambda i: (i, 0)),
                      pl.BlockSpec((1, Np), lambda i: (0, 0)),
                      pl.BlockSpec((1, Np), lambda i: (0, 0))],
            out_specs=pl.BlockSpec((tm, Np), lambda i: (i, 0))),
        compiler_params=pltpu.CompilerParams(
            dimension_semantics=("parallel",)),
    )(y2d, scale_p, shift_p)


def _bn_scale_shift(col_sum, col_sq, count, gamma, beta, eps=1e-5):
    mean = col_sum / count
    var = jnp.maximum(col_sq / count - mean * mean, 0.0)  # biased (train) var
    scale = gamma.astype(jnp.float32) * jax.lax.rsqrt(var + eps)
    shift = beta.astype(jnp.float32) - mean * scale
    return scale, shift


# ------------------------------ conv via im2col -------------------------------
def im2col(x_nhwc, kh, kw, stride, pad):
    # TODO(synk): patch extraction stays in XLA; an in-kernel tap-accumulation /
    # strided-DMA version (no materialized im2col expansion) is the remaining
    # structural optimization for the memory-bound large-nf regime.
    x_nhwc = x_nhwc.astype(jnp.bfloat16)
    if pad:
        x_nhwc = jnp.pad(x_nhwc, ((0, 0), (pad, pad), (pad, pad), (0, 0)))
    B, Hp, Wp, C = x_nhwc.shape
    oh = (Hp - kh) // stride + 1
    ow = (Wp - kw) // stride + 1
    cols = []
    for i in range(kh):
        for j in range(kw):
            cols.append(x_nhwc[:, i:i + oh * stride:stride,
                               j:j + ow * stride:stride, :])
    p = jnp.stack(cols, axis=3)                       # [B, oh, ow, kh*kw, C]
    return p.reshape(B * oh * ow, kh * kw * C), oh, ow


def conv2d(x_nhwc, w_mat, w_shape, stride, pad, *, apply_relu=False,
           with_stats=False, out_dtype=jnp.bfloat16):
    oc, ic, kh, kw = w_shape
    patches, oh, ow = im2col(x_nhwc, kh, kw, stride, pad)
    y2d, col_sum, col_sq = pallas_matmul(patches, w_mat, oc,
                                         apply_relu=apply_relu,
                                         with_stats=with_stats,
                                         out_dtype=out_dtype)
    return y2d, col_sum, col_sq, (x_nhwc.shape[0], oh, ow, oc)


# --------------------------------- GanD model ---------------------------------
def init_gand_params(key, nc=3, nf=64):
    ks = jax.random.split(key, 5)

    def w(k, oc, ic):
        # DCGAN-style N(0, 0.02) init; all convs bias=False.
        return jax.random.normal(k, (oc, ic, 4, 4), jnp.float32) * 0.02

    return {
        "w1": w(ks[0], nf, nc),
        "w2": w(ks[1], nf * 2, nf),
        "w3": w(ks[2], nf * 4, nf * 2),
        "w4": w(ks[3], nf * 8, nf * 4),
        "w5": w(ks[4], 1, nf * 8),
        "bn2_g": jnp.ones((nf * 2,), jnp.float32),
        "bn2_b": jnp.zeros((nf * 2,), jnp.float32),
        "bn3_g": jnp.ones((nf * 4,), jnp.float32),
        "bn3_b": jnp.zeros((nf * 4,), jnp.float32),
        "bn4_g": jnp.ones((nf * 8,), jnp.float32),
        "bn4_b": jnp.zeros((nf * 8,), jnp.float32),
    }


def _prep_weight(w_oihw):
    oc, ic, kh, kw = w_oihw.shape
    K, N = kh * kw * ic, oc
    # (oc, ic, kh, kw) -> (kh, kw, ic, oc) -> (K, N): matches im2col column order.
    w2d = jnp.transpose(w_oihw, (2, 3, 1, 0)).reshape(K, N).astype(jnp.bfloat16)
    Kp, Np = _round_up(K, 128), _round_up(N, 128)
    if (Kp, Np) != (K, N):
        w2d = jnp.zeros((Kp, Np), jnp.bfloat16).at[:K, :N].set(w2d)
    return w2d


def prepare_params(params):
    """One-time (outside jit): transpose + pad + bf16-cast the conv weights."""
    mats, meta = {}, {}
    for name in ("w1", "w2", "w3", "w4", "w5"):
        mats[name] = _prep_weight(params[name])
        meta[name] = tuple(params[name].shape)       # static (oc, ic, kh, kw)
    for name in ("bn2_g", "bn2_b", "bn3_g", "bn3_b", "bn4_g", "bn4_b"):
        mats[name] = params[name]
    return mats, meta


def gand_forward(params, x_nchw, *, meta):
    x = jnp.transpose(x_nchw, (0, 2, 3, 1))          # NCHW -> NHWC

    # --------------------------------- head ---------------------------------
    # conv1 + fused ReLU (no BN -> stats-free kernel variant)
    y1, _, _, (B, oh, ow, c1) = conv2d(x, params["w1"], meta["w1"], 2, 1,
                                       apply_relu=True)
    z = y1[:B * oh * ow, :c1].reshape(B, oh, ow, c1)

    # conv2 -> BatchNorm(batch stats, fused into the matmul epilogue) -> ReLU
    y2, s2, q2, (B, oh, ow, c2) = conv2d(z, params["w2"], meta["w2"], 2, 1,
                                         with_stats=True)
    m2 = B * oh * ow
    sc, sh = _bn_scale_shift(s2, q2, m2, params["bn2_g"], params["bn2_b"])
    z = bn_relu_apply(y2, sc, sh)[:m2, :c2].reshape(B, oh, ow, c2)

    # conv3 -> BatchNorm -> ReLU
    y3, s3, q3, (B, oh, ow, c3) = conv2d(z, params["w3"], meta["w3"], 2, 1,
                                         with_stats=True)
    m3 = B * oh * ow
    sc, sh = _bn_scale_shift(s3, q3, m3, params["bn3_g"], params["bn3_b"])
    z = bn_relu_apply(y3, sc, sh)[:m3, :c3].reshape(B, oh, ow, c3)

    # conv4 -> features (returned, f32); its fused stats feed the tail BN
    y4, s4, q4, (B, oh, ow, c4) = conv2d(z, params["w4"], meta["w4"], 2, 1,
                                         with_stats=True, out_dtype=jnp.float32)
    m4 = B * oh * ow
    feat_nhwc = y4[:m4, :c4].reshape(B, oh, ow, c4)

    # --------------------------------- tail ---------------------------------
    sc, sh = _bn_scale_shift(s4, q4, m4, params["bn4_g"], params["bn4_b"])
    t = bn_relu_apply(y4, sc, sh)[:m4, :c4].reshape(B, oh, ow, c4)
    y5, _, _, (B, oh5, ow5, _) = conv2d(t, params["w5"], meta["w5"], 1, 0,
                                        out_dtype=jnp.float32)
    out = y5[:B * oh5 * ow5, :1].reshape(B, oh5 * ow5)
    scalar = out.mean(axis=-1)                       # output.view(B,-1).mean(-1)

    features = jnp.transpose(feat_nhwc, (0, 3, 1, 2))  # NHWC -> NCHW
    return scalar, features


if __name__ == "__main__":
    key = jax.random.PRNGKey(0)
    k_w, k_x = jax.random.split(key)
    # Small shapes: nf=8 (instead of 64); 64x64 spatial so the tail's 4x4
    # valid conv produces a 1x1 map, matching DCGAN usage.
    nc, nf, B, HW = 3, 8, 2, 64
    params = init_gand_params(k_w, nc=nc, nf=nf)
    mats, meta = prepare_params(params)
    x = jax.random.normal(k_x, (B, nc, HW, HW), jnp.float32)

    fwd = jax.jit(functools.partial(gand_forward, meta=meta))
    scalar, features = fwd(mats, x)
    jax.block_until_ready((scalar, features))

    assert scalar.shape == (B,)
    assert features.shape == (B, nf * 8, HW // 16, HW // 16)
    assert jnp.all(jnp.isfinite(scalar)) and jnp.all(jnp.isfinite(features))
    print("KERNEL_OK")
</pallas_src>

<mosaic_0001>
module attributes {stable_mosaic.version = 11 : i64} {
  func.func @_mm_kernel(%arg0: i32, %arg1: i32, %arg2: i32, %arg3: memref<512x128xbf16, #tpu.memory_space<vmem>>, %arg4: memref<128x128xbf16, #tpu.memory_space<vmem>>, %arg5: memref<512x128xbf16, #tpu.memory_space<vmem>>, %arg6: memref<512x128xf32, #tpu.memory_space<vmem>>) attributes {dimension_semantics = [#tpu.dimension_semantics<parallel>, #tpu.dimension_semantics<parallel>, #tpu.dimension_semantics<arbitrary>], iteration_bounds = array<i64: 4, 1, 1>, scalar_prefetch = 0 : i64, scratch_operands = 1 : i64, tpu.core_type = #tpu.core_type<tc>, window_params = [{transform_indices = @transform_0, window_bounds = array<i64: 512, 128>}, {transform_indices = @transform_1, window_bounds = array<i64: 128, 128>}, {transform_indices = @transform_2, window_bounds = array<i64: 512, 128>}]} {
    %c0_i32 = arith.constant 0 : i32
    %0 = arith.cmpi eq, %arg2, %c0_i32 : i32
    %1 = arith.extui %0 : i1 to i32
    %c0_i32_0 = arith.constant 0 : i32
    %2 = arith.cmpi ne, %1, %c0_i32_0 : i32
    scf.if %2 {
      %cst_10 = arith.constant 0.000000e+00 : f32
      %12 = vector.broadcast %cst_10 : f32 to vector<512x128xf32>
      %c0_11 = arith.constant 0 : index
      %c0_12 = arith.constant 0 : index
      %13 = vector.load %arg6[%c0_11, %c0_12] : memref<512x128xf32, #tpu.memory_space<vmem>>, vector<512x128xf32>
      tpu.vector_store %arg6[%c0_11, %c0_12], %12 {strides = array<i32>} : memref<512x128xf32, #tpu.memory_space<vmem>>, vector<512x128xf32>,
    } else {
    }
    %c0 = arith.constant 0 : index
    %c0_1 = arith.constant 0 : index
    %3 = vector.load %arg6[%c0, %c0_1] : memref<512x128xf32, #tpu.memory_space<vmem>>, vector<512x128xf32>
    %c0_2 = arith.constant 0 : index
    %c0_3 = arith.constant 0 : index
    %4 = vector.load %arg3[%c0_2, %c0_3] : memref<512x128xbf16, #tpu.memory_space<vmem>>, vector<512x128xbf16>
    %c0_4 = arith.constant 0 : index
    %c0_5 = arith.constant 0 : index
    %5 = vector.load %arg4[%c0_4, %c0_5] : memref<128x128xbf16, #tpu.memory_space<vmem>>, vector<128x128xbf16>
    %cst = arith.constant dense<0.000000e+00> : vector<512x128xf32>
    %6 = tpu.matmul %4, %5, %cst {dimension_numbers = #tpu.dot_dimension_numbers<[1], [0], [0], [1], [0, 0, 1, 1], [], []>} : vector<512x128xbf16>, vector<128x128xbf16>, vector<512x128xf32> -> vector<512x128xf32>
    %7 = arith.addf %3, %6 : vector<512x128xf32>
    %c0_6 = arith.constant 0 : index
    %c0_7 = arith.constant 0 : index
    %8 = vector.load %arg6[%c0_6, %c0_7] : memref<512x128xf32, #tpu.memory_space<vmem>>, vector<512x128xf32>
    tpu.vector_store %arg6[%c0_6, %c0_7], %7 {strides = array<i32>} : memref<512x128xf32, #tpu.memory_space<vmem>>, vector<512x128xf32>,
    %c0_i32_8 = arith.constant 0 : i32
    %9 = arith.cmpi eq, %arg2, %c0_i32_8 : i32
    %10 = arith.extui %9 : i1 to i32
    %c0_i32_9 = arith.constant 0 : i32
    %11 = arith.cmpi ne, %10, %c0_i32_9 : i32
    scf.if %11 {
      %c0_10 = arith.constant 0 : index
      %c0_11 = arith.constant 0 : index
      %12 = vector.load %arg6[%c0_10, %c0_11] : memref<512x128xf32, #tpu.memory_space<vmem>>, vector<512x128xf32>
      %cst_12 = arith.constant 0.000000e+00 : f32
      %13 = vector.broadcast %cst_12 : f32 to vector<512x128xf32>
      %14 = arith.maximumf %12, %13 : vector<512x128xf32>
      %15 = arith.truncf %14 : vector<512x128xf32> to vector<512x128xbf16>
      %c0_13 = arith.constant 0 : index
      %c0_14 = arith.constant 0 : index
      %16 = vector.load %arg5[%c0_13, %c0_14] : memref<512x128xbf16, #tpu.memory_space<vmem>>, vector<512x128xbf16>
      tpu.vector_store %arg5[%c0_13, %c0_14], %15 {strides = array<i32>} : memref<512x128xbf16, #tpu.memory_space<vmem>>, vector<512x128xbf16>,
    } else {
    }
    return
  }
  func.func @transform_0(%arg0: i32, %arg1: i32, %arg2: i32) -> (i32, i32) {
    %c0_i32 = arith.constant 0 : i32
    return %arg0, %arg2 : i32, i32
  }
  func.func @transform_1(%arg0: i32, %arg1: i32, %arg2: i32) -> (i32, i32) {
    %c0_i32 = arith.constant 0 : i32
    return %arg2, %arg1 : i32, i32
  }
  func.func @transform_2(%arg0: i32, %arg1: i32, %arg2: i32) -> (i32, i32) {
    %c0_i32 = arith.constant 0 : i32
    return %arg0, %arg1 : i32, i32
  }
}

module attributes {stable_mosaic.version = 11 : i64} {
  func.func @_mm_stats_kernel(%arg0: i32, %arg1: i32, %arg2: i32, %arg3: memref<512x128xbf16, #tpu.memory_space<vmem>>, %arg4: memref<128x128xbf16, #tpu.memory_space<vmem>>, %arg5: memref<512x128xbf16, #tpu.memory_space<vmem>>, %arg6: memref<1x8x128xf32, #tpu.memory_space<vmem>>, %arg7: memref<1x8x128xf32, #tpu.memory_space<vmem>>, %arg8: memref<512x128xf32, #tpu.memory_space<vmem>>) attributes {dimension_semantics = [#tpu.dimension_semantics<parallel>, #tpu.dimension_semantics<parallel>, #tpu.dimension_semantics<arbitrary>], iteration_bounds = array<i64: 1, 1, 1>, scalar_prefetch = 0 : i64, scratch_operands = 1 : i64, tpu.core_type = #tpu.core_type<tc>, window_params = [{transform_indices = @transform_0, window_bounds = array<i64: 512, 128>}, {transform_indices = @transform_1, window_bounds = array<i64: 128, 128>}, {transform_indices = @transform_2, window_bounds = array<i64: 512, 128>}, {transform_indices = @transform_3, window_bounds = array<i64: 1, 8, 128>}, {transform_indices = @transform_4, window_bounds = array<i64: 1, 8, 128>}]} {
    %c0_i32 = arith.constant 0 : i32
    %0 = arith.cmpi eq, %arg2, %c0_i32 : i32
    %1 = arith.extui %0 : i1 to i32
    %c0_i32_0 = arith.constant 0 : i32
    %2 = arith.cmpi ne, %1, %c0_i32_0 : i32
    scf.if %2 {
      %cst_10 = arith.constant 0.000000e+00 : f32
      %12 = vector.broadcast %cst_10 : f32 to vector<512x128xf32>
      %c0_11 = arith.constant 0 : index
      %c0_12 = arith.constant 0 : index
      %13 = vector.load %arg8[%c0_11, %c0_12] : memref<512x128xf32, #tpu.memory_space<vmem>>, vector<512x128xf32>
      tpu.vector_store %arg8[%c0_11, %c0_12], %12 {strides = array<i32>} : memref<512x128xf32, #tpu.memory_space<vmem>>, vector<512x128xf32>,
    } else {
    }
    %c0 = arith.constant 0 : index
    %c0_1 = arith.constant 0 : index
    %3 = vector.load %arg8[%c0, %c0_1] : memref<512x128xf32, #tpu.memory_space<vmem>>, vector<512x128xf32>
    %c0_2 = arith.constant 0 : index
    %c0_3 = arith.constant 0 : index
    %4 = vector.load %arg3[%c0_2, %c0_3] : memref<512x128xbf16, #tpu.memory_space<vmem>>, vector<512x128xbf16>
    %c0_4 = arith.constant 0 : index
    %c0_5 = arith.constant 0 : index
    %5 = vector.load %arg4[%c0_4, %c0_5] : memref<128x128xbf16, #tpu.memory_space<vmem>>, vector<128x128xbf16>
    %cst = arith.constant dense<0.000000e+00> : vector<512x128xf32>
    %6 = tpu.matmul %4, %5, %cst {dimension_numbers = #tpu.dot_dimension_numbers<[1], [0], [0], [1], [0, 0, 1, 1], [], []>} : vector<512x128xbf16>, vector<128x128xbf16>, vector<512x128xf32> -> vector<512x128xf32>
    %7 = arith.addf %3, %6 : vector<512x128xf32>
    %c0_6 = arith.constant 0 : index
    %c0_7 = arith.constant 0 : index
    %8 = vector.load %arg8[%c0_6, %c0_7] : memref<512x128xf32, #tpu.memory_space<vmem>>, vector<512x128xf32>
    tpu.vector_store %arg8[%c0_6, %c0_7], %7 {strides = array<i32>} : memref<512x128xf32, #tpu.memory_space<vmem>>, vector<512x128xf32>,
    %c0_i32_8 = arith.constant 0 : i32
    %9 = arith.cmpi eq, %arg2, %c0_i32_8 : i32
    %10 = arith.extui %9 : i1 to i32
    %c0_i32_9 = arith.constant 0 : i32
    %11 = arith.cmpi ne, %10, %c0_i32_9 : i32
    scf.if %11 {
      %c0_10 = arith.constant 0 : index
      %c0_11 = arith.constant 0 : index
      %12 = vector.load %arg8[%c0_10, %c0_11] : memref<512x128xf32, #tpu.memory_space<vmem>>, vector<512x128xf32>
      %cst_12 = arith.constant dense<0.000000e+00> : vector<128xf32>
      %13 = vector.multi_reduction <add>, %12, %cst_12 [0] : vector<512x128xf32> to vector<128xf32>
      %14 = vector.shape_cast %13 : vector<128xf32> to vector<1x128xf32>
      %15 = arith.mulf %12, %12 : vector<512x128xf32>
      %cst_13 = arith.constant dense<0.000000e+00> : vector<128xf32>
      %16 = vector.multi_reduction <add>, %15, %cst_13 [0] : vector<512x128xf32> to vector<128xf32>
      %17 = vector.shape_cast %16 : vector<128xf32> to vector<1x128xf32>
      %18 = vector.shape_cast %14 : vector<1x128xf32> to vector<1x1x128xf32>
      %19 = vector.broadcast %18 : vector<1x1x128xf32> to vector<1x8x128xf32>
      %c0_14 = arith.constant 0 : index
      %c0_15 = arith.constant 0 : index
      %c0_16 = arith.constant 0 : index
      %20 = vector.load %arg6[%c0_14, %c0_15, %c0_16] : memref<1x8x128xf32, #tpu.memory_space<vmem>>, vector<1x8x128xf32>
      tpu.vector_store %arg6[%c0_14, %c0_15, %c0_16], %19 {strides = array<i32>} : memref<1x8x128xf32, #tpu.memory_space<vmem>>, vector<1x8x128xf32>,
      %21 = vector.shape_cast %17 : vector<1x128xf32> to vector<1x1x128xf32>
      %22 = vector.broadcast %21 : vector<1x1x128xf32> to vector<1x8x128xf32>
      %c0_17 = arith.constant 0 : index
      %c0_18 = arith.constant 0 : index
      %c0_19 = arith.constant 0 : index
      %23 = vector.load %arg7[%c0_17, %c0_18, %c0_19] : memref<1x8x128xf32, #tpu.memory_space<vmem>>, vector<1x8x128xf32>
      tpu.vector_store %arg7[%c0_17, %c0_18, %c0_19], %22 {strides = array<i32>} : memref<1x8x128xf32, #tpu.memory_space<vmem>>, vector<1x8x128xf32>,
      %24 = arith.truncf %12 : vector<512x128xf32> to vector<512x128xbf16>
      %c0_20 = arith.constant 0 : index
      %c0_21 = arith.constant 0 : index
      %25 = vector.load %arg5[%c0_20, %c0_21] : memref<512x128xbf16, #tpu.memory_space<vmem>>, vector<512x128xbf16>
      tpu.vector_store %arg5[%c0_20, %c0_21], %24 {strides = array<i32>} : memref<512x128xbf16, #tpu.memory_space<vmem>>, vector<512x128xbf16>,
    } else {
    }
    return
  }
  func.func @transform_0(%arg0: i32, %arg1: i32, %arg2: i32) -> (i32, i32) {
    %c0_i32 = arith.constant 0 : i32
    return %arg0, %arg2 : i32, i32
  }
  func.func @transform_1(%arg0: i32, %arg1: i32, %arg2: i32) -> (i32, i32) {
    %c0_i32 = arith.constant 0 : i32
    return %arg2, %arg1 : i32, i32
  }
  func.func @transform_2(%arg0: i32, %arg1: i32, %arg2: i32) -> (i32, i32) {
    %c0_i32 = arith.constant 0 : i32
    return %arg0, %arg1 : i32, i32
  }
  func.func @transform_3(%arg0: i32, %arg1: i32, %arg2: i32) -> (i32, i32, i32) {
    %c0_i32 = arith.constant 0 : i32
    %c0_i32_0 = arith.constant 0 : i32
    return %arg0, %c0_i32, %arg1 : i32, i32, i32
  }
  func.func @transform_4(%arg0: i32, %arg1: i32, %arg2: i32) -> (i32, i32, i32) {
    %c0_i32 = arith.constant 0 : i32
    %c0_i32_0 = arith.constant 0 : i32
    return %arg0, %c0_i32, %arg1 : i32, i32, i32
  }
}

module attributes {stable_mosaic.version = 11 : i64} {
  func.func @_bn_relu_kernel(%arg0: i32, %arg1: memref<512x128xbf16, #tpu.memory_space<vmem>>, %arg2: memref<1x128xf32, #tpu.memory_space<vmem>>, %arg3: memref<1x128xf32, #tpu.memory_space<vmem>>, %arg4: memref<512x128xbf16, #tpu.memory_space<vmem>>) attributes {dimension_semantics = [#tpu.dimension_semantics<parallel>], iteration_bounds = array<i64: 1>, scalar_prefetch = 0 : i64, scratch_operands = 0 : i64, tpu.core_type = #tpu.core_type<tc>, window_params = [{transform_indices = @transform_0, window_bounds = array<i64: 512, 128>}, {pipeline_mode = #tpu.pipeline_mode<synchronous>, transform_indices = @transform_1, window_bounds = array<i64: 1, 128>}, {pipeline_mode = #tpu.pipeline_mode<synchronous>, transform_indices = @transform_2, window_bounds = array<i64: 1, 128>}, {transform_indices = @transform_3, window_bounds = array<i64: 512, 128>}]} {
    %c0 = arith.constant 0 : index
    %c0_0 = arith.constant 0 : index
    %0 = vector.load %arg1[%c0, %c0_0] : memref<512x128xbf16, #tpu.memory_space<vmem>>, vector<512x128xbf16>
    %1 = arith.extf %0 : vector<512x128xbf16> to vector<512x128xf32>
    %c0_1 = arith.constant 0 : index
    %c0_2 = arith.constant 0 : index
    %2 = vector.load %arg2[%c0_1, %c0_2] : memref<1x128xf32, #tpu.memory_space<vmem>>, vector<1x128xf32>
    %3 = vector.broadcast %2 : vector<1x128xf32> to vector<512x128xf32>
    %4 = arith.mulf %1, %3 : vector<512x128xf32>
    %c0_3 = arith.constant 0 : index
    %c0_4 = arith.constant 0 : index
    %5 = vector.load %arg3[%c0_3, %c0_4] : memref<1x128xf32, #tpu.memory_space<vmem>>, vector<1x128xf32>
    %6 = vector.broadcast %5 : vector<1x128xf32> to vector<512x128xf32>
    %7 = arith.addf %4, %6 : vector<512x128xf32>
    %cst = arith.constant 0.000000e+00 : f32
    %8 = vector.broadcast %cst : f32 to vector<512x128xf32>
    %9 = arith.maximumf %7, %8 : vector<512x128xf32>
    %10 = arith.truncf %9 : vector<512x128xf32> to vector<512x128xbf16>
    %c0_5 = arith.constant 0 : index
    %c0_6 = arith.constant 0 : index
    %11 = vector.load %arg4[%c0_5, %c0_6] : memref<512x128xbf16, #tpu.memory_space<vmem>>, vector<512x128xbf16>
    tpu.vector_store %arg4[%c0_5, %c0_6], %10 {strides = array<i32>} : memref<512x128xbf16, #tpu.memory_space<vmem>>, vector<512x128xbf16>,
    return
  }
  func.func @transform_0(%arg0: i32) -> (i32, i32) {
    %c0_i32 = arith.constant 0 : i32
    %c0_i32_0 = arith.constant 0 : i32
    return %arg0, %c0_i32 : i32, i32
  }
  func.func @transform_1(%arg0: i32) -> (i32, i32) {
    %c0_i32 = arith.constant 0 : i32
    %c0_i32_0 = arith.constant 0 : i32
    %c0_i32_1 = arith.constant 0 : i32
    return %c0_i32, %c0_i32_0 : i32, i32
  }
  func.func @transform_2(%arg0: i32) -> (i32, i32) {
    %c0_i32 = arith.constant 0 : i32
    %c0_i32_0 = arith.constant 0 : i32
    %c0_i32_1 = arith.constant 0 : i32
    return %c0_i32, %c0_i32_0 : i32, i32
  }
  func.func @transform_3(%arg0: i32) -> (i32, i32) {
    %c0_i32 = arith.constant 0 : i32
    %c0_i32_0 = arith.constant 0 : i32
    return %arg0, %c0_i32 : i32, i32
  }
}

module attributes {stable_mosaic.version = 11 : i64} {
  func.func @_mm_stats_kernel(%arg0: i32, %arg1: i32, %arg2: i32, %arg3: memref<128x256xbf16, #tpu.memory_space<vmem>>, %arg4: memref<256x128xbf16, #tpu.memory_space<vmem>>, %arg5: memref<128x128xbf16, #tpu.memory_space<vmem>>, %arg6: memref<1x8x128xf32, #tpu.memory_space<vmem>>, %arg7: memref<1x8x128xf32, #tpu.memory_space<vmem>>, %arg8: memref<128x128xf32, #tpu.memory_space<vmem>>) attributes {dimension_semantics = [#tpu.dimension_semantics<parallel>, #tpu.dimension_semantics<parallel>, #tpu.dimension_semantics<arbitrary>], iteration_bounds = array<i64: 1, 1, 1>, scalar_prefetch = 0 : i64, scratch_operands = 1 : i64, tpu.core_type = #tpu.core_type<tc>, window_params = [{transform_indices = @transform_0, window_bounds = array<i64: 128, 256>}, {transform_indices = @transform_1, window_bounds = array<i64: 256, 128>}, {transform_indices = @transform_2, window_bounds = array<i64: 128, 128>}, {transform_indices = @transform_3, window_bounds = array<i64: 1, 8, 128>}, {transform_indices = @transform_4, window_bounds = array<i64: 1, 8, 128>}]} {
    %c0_i32 = arith.constant 0 : i32
    %0 = arith.cmpi eq, %arg2, %c0_i32 : i32
    %1 = arith.extui %0 : i1 to i32
    %c0_i32_0 = arith.constant 0 : i32
    %2 = arith.cmpi ne, %1, %c0_i32_0 : i32
    scf.if %2 {
      %cst_10 = arith.constant 0.000000e+00 : f32
      %12 = vector.broadcast %cst_10 : f32 to vector<128x128xf32>
      %c0_11 = arith.constant 0 : index
      %c0_12 = arith.constant 0 : index
      %13 = vector.load %arg8[%c0_11, %c0_12] : memref<128x128xf32, #tpu.memory_space<vmem>>, vector<128x128xf32>
      tpu.vector_store %arg8[%c0_11, %c0_12], %12 {strides = array<i32>} : memref<128x128xf32, #tpu.memory_space<vmem>>, vector<128x128xf32>,
    } else {
    }
    %c0 = arith.constant 0 : index
    %c0_1 = arith.constant 0 : index
    %3 = vector.load %arg8[%c0, %c0_1] : memref<128x128xf32, #tpu.memory_space<vmem>>, vector<128x128xf32>
    %c0_2 = arith.constant 0 : index
    %c0_3 = arith.constant 0 : index
    %4 = vector.load %arg3[%c0_2, %c0_3] : memref<128x256xbf16, #tpu.memory_space<vmem>>, vector<128x256xbf16>
    %c0_4 = arith.constant 0 : index
    %c0_5 = arith.constant 0 : index
    %5 = vector.load %arg4[%c0_4, %c0_5] : memref<256x128xbf16, #tpu.memory_space<vmem>>, vector<256x128xbf16>
    %cst = arith.constant dense<0.000000e+00> : vector<128x128xf32>
    %6 = tpu.matmul %4, %5, %cst {dimension_numbers = #tpu.dot_dimension_numbers<[1], [0], [0], [1], [0, 0, 1, 1], [], []>} : vector<128x256xbf16>, vector<256x128xbf16>, vector<128x128xf32> -> vector<128x128xf32>
    %7 = arith.addf %3, %6 : vector<128x128xf32>
    %c0_6 = arith.constant 0 : index
    %c0_7 = arith.constant 0 : index
    %8 = vector.load %arg8[%c0_6, %c0_7] : memref<128x128xf32, #tpu.memory_space<vmem>>, vector<128x128xf32>
    tpu.vector_store %arg8[%c0_6, %c0_7], %7 {strides = array<i32>} : memref<128x128xf32, #tpu.memory_space<vmem>>, vector<128x128xf32>,
    %c0_i32_8 = arith.constant 0 : i32
    %9 = arith.cmpi eq, %arg2, %c0_i32_8 : i32
    %10 = arith.extui %9 : i1 to i32
    %c0_i32_9 = arith.constant 0 : i32
    %11 = arith.cmpi ne, %10, %c0_i32_9 : i32
    scf.if %11 {
      %c0_10 = arith.constant 0 : index
      %c0_11 = arith.constant 0 : index
      %12 = vector.load %arg8[%c0_10, %c0_11] : memref<128x128xf32, #tpu.memory_space<vmem>>, vector<128x128xf32>
      %cst_12 = arith.constant dense<0.000000e+00> : vector<128xf32>
      %13 = vector.multi_reduction <add>, %12, %cst_12 [0] : vector<128x128xf32> to vector<128xf32>
      %14 = vector.shape_cast %13 : vector<128xf32> to vector<1x128xf32>
      %15 = arith.mulf %12, %12 : vector<128x128xf32>
      %cst_13 = arith.constant dense<0.000000e+00> : vector<128xf32>
      %16 = vector.multi_reduction <add>, %15, %cst_13 [0] : vector<128x128xf32> to vector<128xf32>
      %17 = vector.shape_cast %16 : vector<128xf32> to vector<1x128xf32>
      %18 = vector.shape_cast %14 : vector<1x128xf32> to vector<1x1x128xf32>
      %19 = vector.broadcast %18 : vector<1x1x128xf32> to vector<1x8x128xf32>
      %c0_14 = arith.constant 0 : index
      %c0_15 = arith.constant 0 : index
      %c0_16 = arith.constant 0 : index
      %20 = vector.load %arg6[%c0_14, %c0_15, %c0_16] : memref<1x8x128xf32, #tpu.memory_space<vmem>>, vector<1x8x128xf32>
      tpu.vector_store %arg6[%c0_14, %c0_15, %c0_16], %19 {strides = array<i32>} : memref<1x8x128xf32, #tpu.memory_space<vmem>>, vector<1x8x128xf32>,
      %21 = vector.shape_cast %17 : vector<1x128xf32> to vector<1x1x128xf32>
      %22 = vector.broadcast %21 : vector<1x1x128xf32> to vector<1x8x128xf32>
      %c0_17 = arith.constant 0 : index
      %c0_18 = arith.constant 0 : index
      %c0_19 = arith.constant 0 : index
      %23 = vector.load %arg7[%c0_17, %c0_18, %c0_19] : memref<1x8x128xf32, #tpu.memory_space<vmem>>, vector<1x8x128xf32>
      tpu.vector_store %arg7[%c0_17, %c0_18, %c0_19], %22 {strides = array<i32>} : memref<1x8x128xf32, #tpu.memory_space<vmem>>, vector<1x8x128xf32>,
      %24 = arith.truncf %12 : vector<128x128xf32> to vector<128x128xbf16>
      %c0_20 = arith.constant 0 : index
      %c0_21 = arith.constant 0 : index
      %25 = vector.load %arg5[%c0_20, %c0_21] : memref<128x128xbf16, #tpu.memory_space<vmem>>, vector<128x128xbf16>
      tpu.vector_store %arg5[%c0_20, %c0_21], %24 {strides = array<i32>} : memref<128x128xbf16, #tpu.memory_space<vmem>>, vector<128x128xbf16>,
    } else {
    }
    return
  }
  func.func @transform_0(%arg0: i32, %arg1: i32, %arg2: i32) -> (i32, i32) {
    %c0_i32 = arith.constant 0 : i32
    return %arg0, %arg2 : i32, i32
  }
  func.func @transform_1(%arg0: i32, %arg1: i32, %arg2: i32) -> (i32, i32) {
    %c0_i32 = arith.constant 0 : i32
    return %arg2, %arg1 : i32, i32
  }
  func.func @transform_2(%arg0: i32, %arg1: i32, %arg2: i32) -> (i32, i32) {
    %c0_i32 = arith.constant 0 : i32
    return %arg0, %arg1 : i32, i32
  }
  func.func @transform_3(%arg0: i32, %arg1: i32, %arg2: i32) -> (i32, i32, i32) {
    %c0_i32 = arith.constant 0 : i32
    %c0_i32_0 = arith.constant 0 : i32
    return %arg0, %c0_i32, %arg1 : i32, i32, i32
  }
  func.func @transform_4(%arg0: i32, %arg1: i32, %arg2: i32) -> (i32, i32, i32) {
    %c0_i32 = arith.constant 0 : i32
    %c0_i32_0 = arith.constant 0 : i32
    return %arg0, %c0_i32, %arg1 : i32, i32, i32
  }
}

module attributes {stable_mosaic.version = 11 : i64} {
  func.func @_bn_relu_kernel(%arg0: i32, %arg1: memref<128x128xbf16, #tpu.memory_space<vmem>>, %arg2: memref<1x128xf32, #tpu.memory_space<vmem>>, %arg3: memref<1x128xf32, #tpu.memory_space<vmem>>, %arg4: memref<128x128xbf16, #tpu.memory_space<vmem>>) attributes {dimension_semantics = [#tpu.dimension_semantics<parallel>], iteration_bounds = array<i64: 1>, scalar_prefetch = 0 : i64, scratch_operands = 0 : i64, tpu.core_type = #tpu.core_type<tc>, window_params = [{transform_indices = @transform_0, window_bounds = array<i64: 128, 128>}, {pipeline_mode = #tpu.pipeline_mode<synchronous>, transform_indices = @transform_1, window_bounds = array<i64: 1, 128>}, {pipeline_mode = #tpu.pipeline_mode<synchronous>, transform_indices = @transform_2, window_bounds = array<i64: 1, 128>}, {transform_indices = @transform_3, window_bounds = array<i64: 128, 128>}]} {
    %c0 = arith.constant 0 : index
    %c0_0 = arith.constant 0 : index
    %0 = vector.load %arg1[%c0, %c0_0] : memref<128x128xbf16, #tpu.memory_space<vmem>>, vector<128x128xbf16>
    %1 = arith.extf %0 : vector<128x128xbf16> to vector<128x128xf32>
    %c0_1 = arith.constant 0 : index
    %c0_2 = arith.constant 0 : index
    %2 = vector.load %arg2[%c0_1, %c0_2] : memref<1x128xf32, #tpu.memory_space<vmem>>, vector<1x128xf32>
    %3 = vector.broadcast %2 : vector<1x128xf32> to vector<128x128xf32>
    %4 = arith.mulf %1, %3 : vector<128x128xf32>
    %c0_3 = arith.constant 0 : index
    %c0_4 = arith.constant 0 : index
    %5 = vector.load %arg3[%c0_3, %c0_4] : memref<1x128xf32, #tpu.memory_space<vmem>>, vector<1x128xf32>
    %6 = vector.broadcast %5 : vector<1x128xf32> to vector<128x128xf32>
    %7 = arith.addf %4, %6 : vector<128x128xf32>
    %cst = arith.constant 0.000000e+00 : f32
    %8 = vector.broadcast %cst : f32 to vector<128x128xf32>
    %9 = arith.maximumf %7, %8 : vector<128x128xf32>
    %10 = arith.truncf %9 : vector<128x128xf32> to vector<128x128xbf16>
    %c0_5 = arith.constant 0 : index
    %c0_6 = arith.constant 0 : index
    %11 = vector.load %arg4[%c0_5, %c0_6] : memref<128x128xbf16, #tpu.memory_space<vmem>>, vector<128x128xbf16>
    tpu.vector_store %arg4[%c0_5, %c0_6], %10 {strides = array<i32>} : memref<128x128xbf16, #tpu.memory_space<vmem>>, vector<128x128xbf16>,
    return
  }
  func.func @transform_0(%arg0: i32) -> (i32, i32) {
    %c0_i32 = arith.constant 0 : i32
    %c0_i32_0 = arith.constant 0 : i32
    return %arg0, %c0_i32 : i32, i32
  }
  func.func @transform_1(%arg0: i32) -> (i32, i32) {
    %c0_i32 = arith.constant 0 : i32
    %c0_i32_0 = arith.constant 0 : i32
    %c0_i32_1 = arith.constant 0 : i32
    return %c0_i32, %c0_i32_0 : i32, i32
  }
  func.func @transform_2(%arg0: i32) -> (i32, i32) {
    %c0_i32 = arith.constant 0 : i32
    %c0_i32_0 = arith.constant 0 : i32
    %c0_i32_1 = arith.constant 0 : i32
    return %c0_i32, %c0_i32_0 : i32, i32
  }
  func.func @transform_3(%arg0: i32) -> (i32, i32) {
    %c0_i32 = arith.constant 0 : i32
    %c0_i32_0 = arith.constant 0 : i32
    return %arg0, %c0_i32 : i32, i32
  }
}

module attributes {stable_mosaic.version = 11 : i64} {
  func.func @_mm_stats_kernel(%arg0: i32, %arg1: i32, %arg2: i32, %arg3: memref<32x512xbf16, #tpu.memory_space<vmem>>, %arg4: memref<512x128xbf16, #tpu.memory_space<vmem>>, %arg5: memref<32x128xf32, #tpu.memory_space<vmem>>, %arg6: memref<1x8x128xf32, #tpu.memory_space<vmem>>, %arg7: memref<1x8x128xf32, #tpu.memory_space<vmem>>, %arg8: memref<32x128xf32, #tpu.memory_space<vmem>>) attributes {dimension_semantics = [#tpu.dimension_semantics<parallel>, #tpu.dimension_semantics<parallel>, #tpu.dimension_semantics<arbitrary>], iteration_bounds = array<i64: 1, 1, 1>, scalar_prefetch = 0 : i64, scratch_operands = 1 : i64, tpu.core_type = #tpu.core_type<tc>, window_params = [{transform_indices = @transform_0, window_bounds = array<i64: 32, 512>}, {transform_indices = @transform_1, window_bounds = array<i64: 512, 128>}, {transform_indices = @transform_2, window_bounds = array<i64: 32, 128>}, {transform_indices = @transform_3, window_bounds = array<i64: 1, 8, 128>}, {transform_indices = @transform_4, window_bounds = array<i64: 1, 8, 128>}]} {
    %c0_i32 = arith.constant 0 : i32
    %0 = arith.cmpi eq, %arg2, %c0_i32 : i32
    %1 = arith.extui %0 : i1 to i32
    %c0_i32_0 = arith.constant 0 : i32
    %2 = arith.cmpi ne, %1, %c0_i32_0 : i32
    scf.if %2 {
      %cst_10 = arith.constant 0.000000e+00 : f32
      %12 = vector.broadcast %cst_10 : f32 to vector<32x128xf32>
      %c0_11 = arith.constant 0 : index
      %c0_12 = arith.constant 0 : index
      %13 = vector.load %arg8[%c0_11, %c0_12] : memref<32x128xf32, #tpu.memory_space<vmem>>, vector<32x128xf32>
      tpu.vector_store %arg8[%c0_11, %c0_12], %12 {strides = array<i32>} : memref<32x128xf32, #tpu.memory_space<vmem>>, vector<32x128xf32>,
    } else {
    }
    %c0 = arith.constant 0 : index
    %c0_1 = arith.constant 0 : index
    %3 = vector.load %arg8[%c0, %c0_1] : memref<32x128xf32, #tpu.memory_space<vmem>>, vector<32x128xf32>
    %c0_2 = arith.constant 0 : index
    %c0_3 = arith.constant 0 : index
    %4 = vector.load %arg3[%c0_2, %c0_3] : memref<32x512xbf16, #tpu.memory_space<vmem>>, vector<32x512xbf16>
    %c0_4 = arith.constant 0 : index
    %c0_5 = arith.constant 0 : index
    %5 = vector.load %arg4[%c0_4, %c0_5] : memref<512x128xbf16, #tpu.memory_space<vmem>>, vector<512x128xbf16>
    %cst = arith.constant dense<0.000000e+00> : vector<32x128xf32>
    %6 = tpu.matmul %4, %5, %cst {dimension_numbers = #tpu.dot_dimension_numbers<[1], [0], [0], [1], [0, 0, 1, 1], [], []>} : vector<32x512xbf16>, vector<512x128xbf16>, vector<32x128xf32> -> vector<32x128xf32>
    %7 = arith.addf %3, %6 : vector<32x128xf32>
    %c0_6 = arith.constant 0 : index
    %c0_7 = arith.constant 0 : index
    %8 = vector.load %arg8[%c0_6, %c0_7] : memref<32x128xf32, #tpu.memory_space<vmem>>, vector<32x128xf32>
    tpu.vector_store %arg8[%c0_6, %c0_7], %7 {strides = array<i32>} : memref<32x128xf32, #tpu.memory_space<vmem>>, vector<32x128xf32>,
    %c0_i32_8 = arith.constant 0 : i32
    %9 = arith.cmpi eq, %arg2, %c0_i32_8 : i32
    %10 = arith.extui %9 : i1 to i32
    %c0_i32_9 = arith.constant 0 : i32
    %11 = arith.cmpi ne, %10, %c0_i32_9 : i32
    scf.if %11 {
      %c0_10 = arith.constant 0 : index
      %c0_11 = arith.constant 0 : index
      %12 = vector.load %arg8[%c0_10, %c0_11] : memref<32x128xf32, #tpu.memory_space<vmem>>, vector<32x128xf32>
      %cst_12 = arith.constant dense<0.000000e+00> : vector<128xf32>
      %13 = vector.multi_reduction <add>, %12, %cst_12 [0] : vector<32x128xf32> to vector<128xf32>
      %14 = vector.shape_cast %13 : vector<128xf32> to vector<1x128xf32>
      %15 = arith.mulf %12, %12 : vector<32x128xf32>
      %cst_13 = arith.constant dense<0.000000e+00> : vector<128xf32>
      %16 = vector.multi_reduction <add>, %15, %cst_13 [0] : vector<32x128xf32> to vector<128xf32>
      %17 = vector.shape_cast %16 : vector<128xf32> to vector<1x128xf32>
      %18 = vector.shape_cast %14 : vector<1x128xf32> to vector<1x1x128xf32>
      %19 = vector.broadcast %18 : vector<1x1x128xf32> to vector<1x8x128xf32>
      %c0_14 = arith.constant 0 : index
      %c0_15 = arith.constant 0 : index
      %c0_16 = arith.constant 0 : index
      %20 = vector.load %arg6[%c0_14, %c0_15, %c0_16] : memref<1x8x128xf32, #tpu.memory_space<vmem>>, vector<1x8x128xf32>
      tpu.vector_store %arg6[%c0_14, %c0_15, %c0_16], %19 {strides = array<i32>} : memref<1x8x128xf32, #tpu.memory_space<vmem>>, vector<1x8x128xf32>,
      %21 = vector.shape_cast %17 : vector<1x128xf32> to vector<1x1x128xf32>
      %22 = vector.broadcast %21 : vector<1x1x128xf32> to vector<1x8x128xf32>
      %c0_17 = arith.constant 0 : index
      %c0_18 = arith.constant 0 : index
      %c0_19 = arith.constant 0 : index
      %23 = vector.load %arg7[%c0_17, %c0_18, %c0_19] : memref<1x8x128xf32, #tpu.memory_space<vmem>>, vector<1x8x128xf32>
      tpu.vector_store %arg7[%c0_17, %c0_18, %c0_19], %22 {strides = array<i32>} : memref<1x8x128xf32, #tpu.memory_space<vmem>>, vector<1x8x128xf32>,
      %c0_20 = arith.constant 0 : index
      %c0_21 = arith.constant 0 : index
      %24 = vector.load %arg5[%c0_20, %c0_21] : memref<32x128xf32, #tpu.memory_space<vmem>>, vector<32x128xf32>
      tpu.vector_store %arg5[%c0_20, %c0_21], %12 {strides = array<i32>} : memref<32x128xf32, #tpu.memory_space<vmem>>, vector<32x128xf32>,
    } else {
    }
    return
  }
  func.func @transform_0(%arg0: i32, %arg1: i32, %arg2: i32) -> (i32, i32) {
    %c0_i32 = arith.constant 0 : i32
    return %arg0, %arg2 : i32, i32
  }
  func.func @transform_1(%arg0: i32, %arg1: i32, %arg2: i32) -> (i32, i32) {
    %c0_i32 = arith.constant 0 : i32
    return %arg2, %arg1 : i32, i32
  }
  func.func @transform_2(%arg0: i32, %arg1: i32, %arg2: i32) -> (i32, i32) {
    %c0_i32 = arith.constant 0 : i32
    return %arg0, %arg1 : i32, i32
  }
  func.func @transform_3(%arg0: i32, %arg1: i32, %arg2: i32) -> (i32, i32, i32) {
    %c0_i32 = arith.constant 0 : i32
    %c0_i32_0 = arith.constant 0 : i32
    return %arg0, %c0_i32, %arg1 : i32, i32, i32
  }
  func.func @transform_4(%arg0: i32, %arg1: i32, %arg2: i32) -> (i32, i32, i32) {
    %c0_i32 = arith.constant 0 : i32
    %c0_i32_0 = arith.constant 0 : i32
    return %arg0, %c0_i32, %arg1 : i32, i32, i32
  }
}

module attributes {stable_mosaic.version = 11 : i64} {
  func.func @_bn_relu_kernel(%arg0: i32, %arg1: memref<32x128xf32, #tpu.memory_space<vmem>>, %arg2: memref<1x128xf32, #tpu.memory_space<vmem>>, %arg3: memref<1x128xf32, #tpu.memory_space<vmem>>, %arg4: memref<32x128xbf16, #tpu.memory_space<vmem>>) attributes {dimension_semantics = [#tpu.dimension_semantics<parallel>], iteration_bounds = array<i64: 1>, scalar_prefetch = 0 : i64, scratch_operands = 0 : i64, tpu.core_type = #tpu.core_type<tc>, window_params = [{transform_indices = @transform_0, window_bounds = array<i64: 32, 128>}, {pipeline_mode = #tpu.pipeline_mode<synchronous>, transform_indices = @transform_1, window_bounds = array<i64: 1, 128>}, {pipeline_mode = #tpu.pipeline_mode<synchronous>, transform_indices = @transform_2, window_bounds = array<i64: 1, 128>}, {transform_indices = @transform_3, window_bounds = array<i64: 32, 128>}]} {
    %c0 = arith.constant 0 : index
    %c0_0 = arith.constant 0 : index
    %0 = vector.load %arg1[%c0, %c0_0] : memref<32x128xf32, #tpu.memory_space<vmem>>, vector<32x128xf32>
    %c0_1 = arith.constant 0 : index
    %c0_2 = arith.constant 0 : index
    %1 = vector.load %arg2[%c0_1, %c0_2] : memref<1x128xf32, #tpu.memory_space<vmem>>, vector<1x128xf32>
    %2 = vector.broadcast %1 : vector<1x128xf32> to vector<32x128xf32>
    %3 = arith.mulf %0, %2 : vector<32x128xf32>
    %c0_3 = arith.constant 0 : index
    %c0_4 = arith.constant 0 : index
    %4 = vector.load %arg3[%c0_3, %c0_4] : memref<1x128xf32, #tpu.memory_space<vmem>>, vector<1x128xf32>
    %5 = vector.broadcast %4 : vector<1x128xf32> to vector<32x128xf32>
    %6 = arith.addf %3, %5 : vector<32x128xf32>
    %cst = arith.constant 0.000000e+00 : f32
    %7 = vector.broadcast %cst : f32 to vector<32x128xf32>
    %8 = arith.maximumf %6, %7 : vector<32x128xf32>
    %9 = arith.truncf %8 : vector<32x128xf32> to vector<32x128xbf16>
    %c0_5 = arith.constant 0 : index
    %c0_6 = arith.constant 0 : index
    %10 = vector.load %arg4[%c0_5, %c0_6] : memref<32x128xbf16, #tpu.memory_space<vmem>>, vector<32x128xbf16>
    tpu.vector_store %arg4[%c0_5, %c0_6], %9 {strides = array<i32>} : memref<32x128xbf16, #tpu.memory_space<vmem>>, vector<32x128xbf16>,
    return
  }
  func.func @transform_0(%arg0: i32) -> (i32, i32) {
    %c0_i32 = arith.constant 0 : i32
    %c0_i32_0 = arith.constant 0 : i32
    return %arg0, %c0_i32 : i32, i32
  }
  func.func @transform_1(%arg0: i32) -> (i32, i32) {
    %c0_i32 = arith.constant 0 : i32
    %c0_i32_0 = arith.constant 0 : i32
    %c0_i32_1 = arith.constant 0 : i32
    return %c0_i32, %c0_i32_0 : i32, i32
  }
  func.func @transform_2(%arg0: i32) -> (i32, i32) {
    %c0_i32 = arith.constant 0 : i32
    %c0_i32_0 = arith.constant 0 : i32
    %c0_i32_1 = arith.constant 0 : i32
    return %c0_i32, %c0_i32_0 : i32, i32
  }
  func.func @transform_3(%arg0: i32) -> (i32, i32) {
    %c0_i32 = arith.constant 0 : i32
    %c0_i32_0 = arith.constant 0 : i32
    return %arg0, %c0_i32 : i32, i32
  }
}

module attributes {stable_mosaic.version = 11 : i64} {
  func.func @_mm_kernel(%arg0: i32, %arg1: i32, %arg2: i32, %arg3: memref<8x512xbf16, #tpu.memory_space<vmem>>, %arg4: memref<512x128xbf16, #tpu.memory_space<vmem>>, %arg5: memref<8x128xf32, #tpu.memory_space<vmem>>, %arg6: memref<8x128xf32, #tpu.memory_space<vmem>>) attributes {dimension_semantics = [#tpu.dimension_semantics<parallel>, #tpu.dimension_semantics<parallel>, #tpu.dimension_semantics<arbitrary>], iteration_bounds = array<i64: 1, 1, 2>, scalar_prefetch = 0 : i64, scratch_operands = 1 : i64, tpu.core_type = #tpu.core_type<tc>, window_params = [{transform_indices = @transform_0, window_bounds = array<i64: 8, 512>}, {transform_indices = @transform_1, window_bounds = array<i64: 512, 128>}, {transform_indices = @transform_2, window_bounds = array<i64: 8, 128>}]} {
    %c0_i32 = arith.constant 0 : i32
    %0 = arith.cmpi eq, %arg2, %c0_i32 : i32
    %1 = arith.extui %0 : i1 to i32
    %c0_i32_0 = arith.constant 0 : i32
    %2 = arith.cmpi ne, %1, %c0_i32_0 : i32
    scf.if %2 {
      %cst_9 = arith.constant 0.000000e+00 : f32
      %12 = vector.broadcast %cst_9 : f32 to vector<8x128xf32>
      %c0_10 = arith.constant 0 : index
      %c0_11 = arith.constant 0 : index
      %13 = vector.load %arg6[%c0_10, %c0_11] : memref<8x128xf32, #tpu.memory_space<vmem>>, vector<8x128xf32>
      tpu.vector_store %arg6[%c0_10, %c0_11], %12 {strides = array<i32>} : memref<8x128xf32, #tpu.memory_space<vmem>>, vector<8x128xf32>,
    } else {
    }
    %c0 = arith.constant 0 : index
    %c0_1 = arith.constant 0 : index
    %3 = vector.load %arg6[%c0, %c0_1] : memref<8x128xf32, #tpu.memory_space<vmem>>, vector<8x128xf32>
    %c0_2 = arith.constant 0 : index
    %c0_3 = arith.constant 0 : index
    %4 = vector.load %arg3[%c0_2, %c0_3] : memref<8x512xbf16, #tpu.memory_space<vmem>>, vector<8x512xbf16>
    %c0_4 = arith.constant 0 : index
    %c0_5 = arith.constant 0 : index
    %5 = vector.load %arg4[%c0_4, %c0_5] : memref<512x128xbf16, #tpu.memory_space<vmem>>, vector<512x128xbf16>
    %cst = arith.constant dense<0.000000e+00> : vector<8x128xf32>
    %6 = tpu.matmul %4, %5, %cst {dimension_numbers = #tpu.dot_dimension_numbers<[1], [0], [0], [1], [0, 0, 1, 1], [], []>} : vector<8x512xbf16>, vector<512x128xbf16>, vector<8x128xf32> -> vector<8x128xf32>
    %7 = arith.addf %3, %6 : vector<8x128xf32>
    %c0_6 = arith.constant 0 : index
    %c0_7 = arith.constant 0 : index
    %8 = vector.load %arg6[%c0_6, %c0_7] : memref<8x128xf32, #tpu.memory_space<vmem>>, vector<8x128xf32>
    tpu.vector_store %arg6[%c0_6, %c0_7], %7 {strides = array<i32>} : memref<8x128xf32, #tpu.memory_space<vmem>>, vector<8x128xf32>,
    %c1_i32 = arith.constant 1 : i32
    %9 = arith.cmpi eq, %arg2, %c1_i32 : i32
    %10 = arith.extui %9 : i1 to i32
    %c0_i32_8 = arith.constant 0 : i32
    %11 = arith.cmpi ne, %10, %c0_i32_8 : i32
    scf.if %11 {
      %c0_9 = arith.constant 0 : index
      %c0_10 = arith.constant 0 : index
      %12 = vector.load %arg6[%c0_9, %c0_10] : memref<8x128xf32, #tpu.memory_space<vmem>>, vector<8x128xf32>
      %c0_11 = arith.constant 0 : index
      %c0_12 = arith.constant 0 : index
      %13 = vector.load %arg5[%c0_11, %c0_12] : memref<8x128xf32, #tpu.memory_space<vmem>>, vector<8x128xf32>
      tpu.vector_store %arg5[%c0_11, %c0_12], %12 {strides = array<i32>} : memref<8x128xf32, #tpu.memory_space<vmem>>, vector<8x128xf32>,
    } else {
    }
    return
  }
  func.func @transform_0(%arg0: i32, %arg1: i32, %arg2: i32) -> (i32, i32) {
    %c0_i32 = arith.constant 0 : i32
    return %arg0, %arg2 : i32, i32
  }
  func.func @transform_1(%arg0: i32, %arg1: i32, %arg2: i32) -> (i32, i32) {
    %c0_i32 = arith.constant 0 : i32
    return %arg2, %arg1 : i32, i32
  }
  func.func @transform_2(%arg0: i32, %arg1: i32, %arg2: i32) -> (i32, i32) {
    %c0_i32 = arith.constant 0 : i32
    return %arg0, %arg1 : i32, i32
  }
}

</mosaic_0001>

<llo_original>
// kernel: gand_forward.8
$region0: #{gand_forward.8}
  #allocation0 [shape = 'u32[]', space=smem, size = 0x4, offset = 0x4, fixed_abs, tag = 'smem constant byte address 0x4 - core index']
  #allocation1 [shape = 'u32[144,128]{1,0:T(1,128)}', space=vmem, size = 0x12000, scoped, tag = 'internal scratch']
  #allocation2 [shape = 'f32[512,128]{1,0:T(8,128)}', space=vmem, size = 0x40000, scoped, tag = 'scratch operand']
  %s0 = inlined_call_operand.vmem [shape: bf16[2048,128], index: 0, kind: input, shape index: {}]
  %s1 = inlined_call_operand.vmem [shape: bf16[128,128], index: 1, kind: input, shape index: {}]
  %s2 = inlined_call_operand.vmem [shape: bf16[2048,128], index: 2, kind: output, shape index: {}]
  %s3 = sld [smem:[#allocation0]]
  $region49: #{gand_forward.8} parent=0
    _
  %s5 = ssub.s32 1, %s3
  %s6 = scalar_select 0, %s5, %s3
  loop: start=0, step=1, limit=6
  $region2: #{gand_forward.8} parent=0 // loop_pre_header
    _
  $region3: #{gand_forward.8} parent=0 // loop_header
    %s8 = sphi 0, %s12
    %p9 = scmp.ge.s32.totalorder %s8, 6
    %s15 = sphi 0, %s34
    %s16 = sphi 0, %s30
    %s17 = sphi 0, %s26
    %s18 = sphi 0, %s15
    %s19 = sphi 0, %s16
    %s20 = sphi 0, %s17
    %s21 = sphi 0, %s18
    %s22 = sphi 0, %s19
    %s23 = sphi 0, %s20
    %s39 = sphi 0, %s41
    %s42 = sphi 0, %s39
    %s43 = sphi 0, %s42
    %s59 = sphi 0, %s43
    %s67 = sphi 0, %s69
    %s70 = sphi 0, %s67
    %s71 = sphi 0, %s70
    %s87 = sphi 0, %s71
    %s95 = sphi 0, %s97
    %s98 = sphi 0, %s95
    %s99 = sphi 0, %s98
    %s115 = sphi 0, %s99
  $region4: #{gand_forward.8} parent=0 // loop_header_branch
    %11 = sbr.rel (%p9) target = $region8
  $region5: #{gand_forward.8} parent=0 // loop_body
    %s13 = ssub.s32 %s8, 1
    %s14 = ssub.s32 %s8, 2
    %s24 = sadd.s32 1, %s17
    %p25 = scmp.ge.s32.totalorder %s24, 1
    %s26 = scalar_select %p25, 0, %s24
    %s27 = sadd.s32 1, %s16
    %s28 = scalar_select %p25, %s27, %s16
    %p29 = scmp.ge.s32.totalorder %s28, 1
    %s30 = scalar_select %p29, 0, %s28
    %s31 = sadd.s32 1, %s15
    %s32 = scalar_select %p29, %s31, %s15
    %p33 = scmp.ge.s32.totalorder %s32, 4
    %s34 = scalar_select %p33, 0, %s32
    %s35 = ssub.s32 %s15, %s34
    %s36 = ssub.s32 %s17, %s26
    %s37 = sor.u32 %s35, %s36
    %p38 = scmp.eq.s32.totalorder %s37, 0
    %s40 = sadd.s32 %s39, 1
    %s41 = scalar_select %p38, %s39, %s40
    %p44 = pneg %p38
    %p45 = scmp.eq.s32.totalorder %s8, 3
    %p46 = por %p44, %p45
    %p47 = scmp.ne.s32.totalorder %s39, %s42
    %p48 = scmp.eq.s32.totalorder %s8, 0
    %p49 = por %p47, %p48
    %p50 = scmp.ne.s32.totalorder %s39, %s42
    %p51 = scmp.eq.s32.totalorder %s13, 3
    %p52 = por %p50, %p51
    %p53 = scmp.ne.s32.totalorder %s42, %s43
    %p54 = scmp.eq.s32.totalorder %s13, 0
    %p55 = por %p53, %p54
    %p56 = scmp.ne.s32.totalorder %s42, %s43
    %p57 = scmp.eq.s32.totalorder %s14, 3
    %p58 = por %p56, %p57
    %p60 = scmp.ne.s32.totalorder %s43, %s59
    %p61 = scmp.eq.s32.totalorder %s14, 0
    %p62 = por %p60, %p61
    %s63 = ssub.s32 %s17, %s26
    %s64 = ssub.s32 %s16, %s30
    %s65 = sor.u32 %s63, %s64
    %p66 = scmp.eq.s32.totalorder %s65, 0
    %s68 = sadd.s32 %s67, 1
    %s69 = scalar_select %p66, %s67, %s68
    %p72 = pneg %p66
    %p73 = scmp.eq.s32.totalorder %s8, 3
    %p74 = por %p72, %p73
    %p75 = scmp.ne.s32.totalorder %s67, %s70
    %p76 = scmp.eq.s32.totalorder %s8, 0
    %p77 = por %p75, %p76
    %p78 = scmp.ne.s32.totalorder %s67, %s70
    %p79 = scmp.eq.s32.totalorder %s13, 3
    %p80 = por %p78, %p79
    %p81 = scmp.ne.s32.totalorder %s70, %s71
    %p82 = scmp.eq.s32.totalorder %s13, 0
    %p83 = por %p81, %p82
    %p84 = scmp.ne.s32.totalorder %s70, %s71
    %p85 = scmp.eq.s32.totalorder %s14, 3
    %p86 = por %p84, %p85
    %p88 = scmp.ne.s32.totalorder %s71, %s87
    %p89 = scmp.eq.s32.totalorder %s14, 0
    %p90 = por %p88, %p89
    %s91 = ssub.s32 %s15, %s34
    %s92 = ssub.s32 %s16, %s30
    %s93 = sor.u32 %s91, %s92
    %p94 = scmp.eq.s32.totalorder %s93, 0
    %s96 = sadd.s32 %s95, 1
    %s97 = scalar_select %p94, %s95, %s96
    %p100 = pneg %p94
    %p101 = scmp.eq.s32.totalorder %s8, 3
    %p102 = por %p100, %p101
    %p103 = scmp.ne.s32.totalorder %s95, %s98
    %p104 = scmp.eq.s32.totalorder %s8, 0
    %p105 = por %p103, %p104
    %p106 = scmp.ne.s32.totalorder %s95, %s98
    %p107 = scmp.eq.s32.totalorder %s13, 3
    %p108 = por %p106, %p107
    %p109 = scmp.ne.s32.totalorder %s98, %s99
    %p110 = scmp.eq.s32.totalorder %s13, 0
    %p111 = por %p109, %p110
    %p112 = scmp.ne.s32.totalorder %s98, %s99
    %p113 = scmp.eq.s32.totalorder %s14, 3
    %p114 = por %p112, %p113
    %p116 = scmp.ne.s32.totalorder %s99, %s115
    %p117 = scmp.eq.s32.totalorder %s14, 0
    %p118 = por %p116, %p117
    %p119 = scmp.le.s32.totalorder 1, %s8
    %p120 = scmp.lt.s32.totalorder %s8, 5
    %p121 = pnand %p119, %p120
    %p122 = pneg %p121
    // Predicated region
    $region9: #{gand_forward.8} parent=5 // pred_check
      _
    $region10: #{gand_forward.8} parent=5 // pred_check_branch
      %124 = sbr.rel (%p121) target = $region12
    $region11: #{gand_forward.8} parent=5 // pred_region
      %s125 = ssub.s32 %s8, 1
      // Predicated region
      $region13: #{gand_forward.8} parent=11 // pred_check
        %p126 = pneg %p83
      $region14: #{gand_forward.8} parent=11 // pred_check_branch
        %128 = sbr.rel (%p126) target = $region16
      $region15: #{gand_forward.8} parent=11 // pred_region
        %s129 = smul.u32 16, %s20
        %p130 = scmp.lt.s32.totalorder %s129, 15
        %s131 = scalar_select %p130, %s129, 15
        %p132 = scmp.lt.s32.totalorder %s19, 0
        %s133 = scalar_select %p132, %s19, 0
        %s134 = sadd.s32 %s133, %s131
        %s135 = smul.addr %s134, 4
        %s136 = scalar_lea.vmem %s1, %s135
        %s137 = smul.u32 16, %s20
      $region16: #{gand_forward.8} parent=11 // pred_fallthru
        _
    $region12: #{gand_forward.8} parent=5 // pred_fallthru
      _
    %p138 = scmp.lt.s32.totalorder %s8, 4
    // Predicated region
    $region17: #{gand_forward.8} parent=5 // pred_check
      %p139 = pneg %p138
    $region18: #{gand_forward.8} parent=5 // pred_check_branch
      %141 = sbr.rel (%p139) target = $region20
    $region19: #{gand_forward.8} parent=5 // pred_region
      // Predicated region
      $region21: #{gand_forward.8} parent=19 // pred_check
        %p142 = pneg %p49
      $region22: #{gand_forward.8} parent=19 // pred_check_branch
        %144 = sbr.rel (%p142) target = $region24
      $region23: #{gand_forward.8} parent=19 // pred_region
        %s145 = smul.u32 64, %s15
        %p146 = scmp.lt.s32.totalorder %s145, 255
        %s147 = scalar_select %p146, %s145, 255
        %p148 = scmp.lt.s32.totalorder %s17, 0
        %s149 = scalar_select %p148, %s17, 0
        %s150 = sadd.s32 %s149, %s147
        %s151 = smul.addr %s150, 4
        %s152 = scalar_lea.vmem %s0, %s151
        %s153 = smul.u32 64, %s15
      $region24: #{gand_forward.8} parent=19 // pred_fallthru
        _
    $region20: #{gand_forward.8} parent=5 // pred_fallthru
      _
    %p154 = scmp.le.s32.totalorder 1, %s8
    %p155 = scmp.lt.s32.totalorder %s8, 5
    %p156 = pnand %p154, %p155
    %p157 = pneg %p156
    // Predicated region
    $region25: #{gand_forward.8} parent=5 // pred_check
      _
    $region26: #{gand_forward.8} parent=5 // pred_check_branch
      %159 = sbr.rel (%p156) target = $region28
    $region27: #{gand_forward.8} parent=5 // pred_region
      %s160 = ssub.s32 %s8, 1
      %s161 = smul.u32 64, %s18
      %p162 = scmp.lt.s32.totalorder %s161, 255
      %s163 = scalar_select %p162, %s161, 255
      %p164 = scmp.lt.s32.totalorder %s20, 0
      %s165 = scalar_select %p164, %s20, 0
      %s166 = sadd.s32 %s165, %s163
      %s167 = smul.addr %s166, 4
      %s168 = scalar_lea.vmem %s0, %s167
      %p169 = pneg %p55
      %p170 = pneg %p52
      %s171 = smul.u32 16, %s20
      %p172 = scmp.lt.s32.totalorder %s171, 15
      %s173 = scalar_select %p172, %s171, 15
      %p174 = scmp.lt.s32.totalorder %s19, 0
      %s175 = scalar_select %p174, %s19, 0
      %s176 = sadd.s32 %s175, %s173
      %s177 = smul.addr %s176, 4
      %s178 = scalar_lea.vmem %s1, %s177
      %p179 = pneg %p83
      %p180 = pneg %p80
      %p181 = pneg %p111
      %p182 = pneg %p108
      %s183 = smul.u32 64, %s18
      %p184 = scmp.lt.s32.totalorder %s183, 255
      %s185 = scalar_select %p184, %s183, 255
      %p186 = scmp.lt.s32.totalorder %s19, 0
      %s187 = scalar_select %p186, %s19, 0
      %s188 = sadd.s32 %s187, %s185
      %s189 = smul.addr %s188, 4
      %s190 = scalar_lea.vmem %s2, %s189
      %s191 = smul.u32 64, %s18
      %p192 = scmp.lt.s32.totalorder %s191, 255
      %s193 = scalar_select %p192, %s191, 255
      %p194 = scmp.lt.s32.totalorder %s20, 0
      %s195 = scalar_select %p194, %s20, 0
      %s196 = sadd.s32 %s195, %s193
      %s197 = smul.addr %s196, 4
      %s198 = scalar_lea.vmem %s0, %s197
      %s199 = smul.u32 64, %s18
      %s200 = smul.u32 16, %s20
      %p201 = scmp.lt.s32.totalorder %s200, 15
      %s202 = scalar_select %p201, %s200, 15
      %p203 = scmp.lt.s32.totalorder %s19, 0
      %s204 = scalar_select %p203, %s19, 0
      %s205 = sadd.s32 %s204, %s202
      %s206 = smul.addr %s205, 4
      %s207 = scalar_lea.vmem %s1, %s206
      %s208 = smul.u32 16, %s20
      %s209 = smul.u32 64, %s18
      %p210 = scmp.lt.s32.totalorder %s209, 255
      %s211 = scalar_select %p210, %s209, 255
      %p212 = scmp.lt.s32.totalorder %s19, 0
      %s213 = scalar_select %p212, %s19, 0
      %s214 = sadd.s32 %s213, %s211
      %s215 = smul.addr %s214, 4
      %s216 = scalar_lea.vmem %s2, %s215
      %s217 = smul.u32 64, %s18
      %p219 = scmp.eq.s32.totalorder %s20, 0
      // Predicated region
      $region29: #{gand_forward.8} parent=27 // pred_check
        %p220 = pneg %p219
      $region30: #{gand_forward.8} parent=27 // pred_check_branch
        %222 = sbr.rel (%p220) target = $region32
      $region31: #{gand_forward.8} parent=27 // pred_region
        %223 = vst [vmem:[#allocation2] sm:$0xff] 0.0
        %224 = vst [vmem:[#allocation2 + $0x8] sm:$0xff] 0.0
        %225 = vst [vmem:[#allocation2 + $0x10] sm:$0xff] 0.0
        %226 = vst [vmem:[#allocation2 + $0x18] sm:$0xff] 0.0
        %227 = vst [vmem:[#allocation2 + $0x20] sm:$0xff] 0.0
        %228 = vst [vmem:[#allocation2 + $0x28] sm:$0xff] 0.0
        %229 = vst [vmem:[#allocation2 + $0x30] sm:$0xff] 0.0
        %230 = vst [vmem:[#allocation2 + $0x38] sm:$0xff] 0.0
        %231 = vst [vmem:[#allocation2 + $0x40] sm:$0xff] 0.0
        %232 = vst [vmem:[#allocation2 + $0x48] sm:$0xff] 0.0
        %233 = vst [vmem:[#allocation2 + $0x50] sm:$0xff] 0.0
        %234 = vst [vmem:[#allocation2 + $0x58] sm:$0xff] 0.0
        %235 = vst [vmem:[#allocation2 + $0x60] sm:$0xff] 0.0
        %236 = vst [vmem:[#allocation2 + $0x68] sm:$0xff] 0.0
        %237 = vst [vmem:[#allocation2 + $0x70] sm:$0xff] 0.0
        %238 = vst [vmem:[#allocation2 + $0x78] sm:$0xff] 0.0
        %239 = vst [vmem:[#allocation2 + $0x80] sm:$0xff] 0.0
        %240 = vst [vmem:[#allocation2 + $0x88] sm:$0xff] 0.0
        %241 = vst [vmem:[#allocation2 + $0x90] sm:$0xff] 0.0
        %242 = vst [vmem:[#allocation2 + $0x98] sm:$0xff] 0.0
        %243 = vst [vmem:[#allocation2 + $0xa0] sm:$0xff] 0.0
        %244 = vst [vmem:[#allocation2 + $0xa8] sm:$0xff] 0.0
        %245 = vst [vmem:[#allocation2 + $0xb0] sm:$0xff] 0.0
        %246 = vst [vmem:[#allocation2 + $0xb8] sm:$0xff] 0.0
        %247 = vst [vmem:[#allocation2 + $0xc0] sm:$0xff] 0.0
        %248 = vst [vmem:[#allocation2 + $0xc8] sm:$0xff] 0.0
        %249 = vst [vmem:[#allocation2 + $0xd0] sm:$0xff] 0.0
        %250 = vst [vmem:[#allocation2 + $0xd8] sm:$0xff] 0.0
        %251 = vst [vmem:[#allocation2 + $0xe0] sm:$0xff] 0.0
        %252 = vst [vmem:[#allocation2 + $0xe8] sm:$0xff] 0.0
        %253 = vst [vmem:[#allocation2 + $0xf0] sm:$0xff] 0.0
        %254 = vst [vmem:[#allocation2 + $0xf8] sm:$0xff] 0.0
        %255 = vst [vmem:[#allocation2 + $0x100] sm:$0xff] 0.0
        %256 = vst [vmem:[#allocation2 + $0x108] sm:$0xff] 0.0
        %257 = vst [vmem:[#allocation2 + $0x110] sm:$0xff] 0.0
        %258 = vst [vmem:[#allocation2 + $0x118] sm:$0xff] 0.0
        %259 = vst [vmem:[#allocation2 + $0x120] sm:$0xff] 0.0
        %260 = vst [vmem:[#allocation2 + $0x128] sm:$0xff] 0.0
        %261 = vst [vmem:[#allocation2 + $0x130] sm:$0xff] 0.0
        %262 = vst [vmem:[#allocation2 + $0x138] sm:$0xff] 0.0
        %263 = vst [vmem:[#allocation2 + $0x140] sm:$0xff] 0.0
        %264 = vst [vmem:[#allocation2 + $0x148] sm:$0xff] 0.0
        %265 = vst [vmem:[#allocation2 + $0x150] sm:$0xff] 0.0
        %266 = vst [vmem:[#allocation2 + $0x158] sm:$0xff] 0.0
        %267 = vst [vmem:[#allocation2 + $0x160] sm:$0xff] 0.0
        %268 = vst [vmem:[#allocation2 + $0x168] sm:$0xff] 0.0
        %269 = vst [vmem:[#allocation2 + $0x170] sm:$0xff] 0.0
        %270 = vst [vmem:[#allocation2 + $0x178] sm:$0xff] 0.0
        %271 = vst [vmem:[#allocation2 + $0x180] sm:$0xff] 0.0
        %272 = vst [vmem:[#allocation2 + $0x188] sm:$0xff] 0.0
        %273 = vst [vmem:[#allocation2 + $0x190] sm:$0xff] 0.0
        %274 = vst [vmem:[#allocation2 + $0x198] sm:$0xff] 0.0
        %275 = vst [vmem:[#allocation2 + $0x1a0] sm:$0xff] 0.0
        %276 = vst [vmem:[#allocation2 + $0x1a8] sm:$0xff] 0.0
        %277 = vst [vmem:[#allocation2 + $0x1b0] sm:$0xff] 0.0
        %278 = vst [vmem:[#allocation2 + $0x1b8] sm:$0xff] 0.0
        %279 = vst [vmem:[#allocation2 + $0x1c0] sm:$0xff] 0.0
        %280 = vst [vmem:[#allocation2 + $0x1c8] sm:$0xff] 0.0
        %281 = vst [vmem:[#allocation2 + $0x1d0] sm:$0xff] 0.0
        %282 = vst [vmem:[#allocation2 + $0x1d8] sm:$0xff] 0.0
        %283 = vst [vmem:[#allocation2 + $0x1e0] sm:$0xff] 0.0
        %284 = vst [vmem:[#allocation2 + $0x1e8] sm:$0xff] 0.0
        %285 = vst [vmem:[#allocation2 + $0x1f0] sm:$0xff] 0.0
        %286 = vst [vmem:[#allocation2 + $0x1f8] sm:$0xff] 0.0
      $region32: #{gand_forward.8} parent=27 // pred_fallthru
        _
      %v287 = vld [vmem:[#allocation2] sm:$0xff]
      %v288 = vld [vmem:[#allocation2 + $0x8] sm:$0xff]
      %v289 = vld [vmem:[#allocation2 + $0x10] sm:$0xff]
      %v290 = vld [vmem:[#allocation2 + $0x18] sm:$0xff]
      %v291 = vld [vmem:[#allocation2 + $0x20] sm:$0xff]
      %v292 = vld [vmem:[#allocation2 + $0x28] sm:$0xff]
      %v293 = vld [vmem:[#allocation2 + $0x30] sm:$0xff]
      %v294 = vld [vmem:[#allocation2 + $0x38] sm:$0xff]
      %v295 = vld [vmem:[#allocation2 + $0x40] sm:$0xff]
      %v296 = vld [vmem:[#allocation2 + $0x48] sm:$0xff]
      %v297 = vld [vmem:[#allocation2 + $0x50] sm:$0xff]
      %v298 = vld [vmem:[#allocation2 + $0x58] sm:$0xff]
      %v299 = vld [vmem:[#allocation2 + $0x60] sm:$0xff]
      %v300 = vld [vmem:[#allocation2 + $0x68] sm:$0xff]
      %v301 = vld [vmem:[#allocation2 + $0x70] sm:$0xff]
      %v302 = vld [vmem:[#allocation2 + $0x78] sm:$0xff]
      %v303 = vld [vmem:[#allocation2 + $0x80] sm:$0xff]
      %v304 = vld [vmem:[#allocation2 + $0x88] sm:$0xff]
      %v305 = vld [vmem:[#allocation2 + $0x90] sm:$0xff]
      %v306 = vld [vmem:[#allocation2 + $0x98] sm:$0xff]
      %v307 = vld [vmem:[#allocation2 + $0xa0] sm:$0xff]
      %v308 = vld [vmem:[#allocation2 + $0xa8] sm:$0xff]
      %v309 = vld [vmem:[#allocation2 + $0xb0] sm:$0xff]
      %v310 = vld [vmem:[#allocation2 + $0xb8] sm:$0xff]
      %v311 = vld [vmem:[#allocation2 + $0xc0] sm:$0xff]
      %v312 = vld [vmem:[#allocation2 + $0xc8] sm:$0xff]
      %v313 = vld [vmem:[#allocation2 + $0xd0] sm:$0xff]
      %v314 = vld [vmem:[#allocation2 + $0xd8] sm:$0xff]
      %v315 = vld [vmem:[#allocation2 + $0xe0] sm:$0xff]
      %v316 = vld [vmem:[#allocation2 + $0xe8] sm:$0xff]
      %v317 = vld [vmem:[#allocation2 + $0xf0] sm:$0xff]
      %v318 = vld [vmem:[#allocation2 + $0xf8] sm:$0xff]
      %v319 = vld [vmem:[#allocation2 + $0x100] sm:$0xff]
      %v320 = vld [vmem:[#allocation2 + $0x108] sm:$0xff]
      %v321 = vld [vmem:[#allocation2 + $0x110] sm:$0xff]
      %v322 = vld [vmem:[#allocation2 + $0x118] sm:$0xff]
      %v323 = vld [vmem:[#allocation2 + $0x120] sm:$0xff]
      %v324 = vld [vmem:[#allocation2 + $0x128] sm:$0xff]
      %v325 = vld [vmem:[#allocation2 + $0x130] sm:$0xff]
      %v326 = vld [vmem:[#allocation2 + $0x138] sm:$0xff]
      %v327 = vld [vmem:[#allocation2 + $0x140] sm:$0xff]
      %v328 = vld [vmem:[#allocation2 + $0x148] sm:$0xff]
      %v329 = vld [vmem:[#allocation2 + $0x150] sm:$0xff]
      %v330 = vld [vmem:[#allocation2 + $0x158] sm:$0xff]
      %v331 = vld [vmem:[#allocation2 + $0x160] sm:$0xff]
      %v332 = vld [vmem:[#allocation2 + $0x168] sm:$0xff]
      %v333 = vld [vmem:[#allocation2 + $0x170] sm:$0xff]
      %v334 = vld [vmem:[#allocation2 + $0x178] sm:$0xff]
      %v335 = vld [vmem:[#allocation2 + $0x180] sm:$0xff]
      %v336 = vld [vmem:[#allocation2 + $0x188] sm:$0xff]
      %v337 = vld [vmem:[#allocation2 + $0x190] sm:$0xff]
      %v338 = vld [vmem:[#allocation2 + $0x198] sm:$0xff]
      %v339 = vld [vmem:[#allocation2 + $0x1a0] sm:$0xff]
      %v340 = vld [vmem:[#allocation2 + $0x1a8] sm:$0xff]
      %v341 = vld [vmem:[#allocation2 + $0x1b0] sm:$0xff]
      %v342 = vld [vmem:[#allocation2 + $0x1b8] sm:$0xff]
      %v343 = vld [vmem:[#allocation2 + $0x1c0] sm:$0xff]
      %v344 = vld [vmem:[#allocation2 + $0x1c8] sm:$0xff]
      %v345 = vld [vmem:[#allocation2 + $0x1d0] sm:$0xff]
      %v346 = vld [vmem:[#allocation2 + $0x1d8] sm:$0xff]
      %v347 = vld [vmem:[#allocation2 + $0x1e0] sm:$0xff]
      %v348 = vld [vmem:[#allocation2 + $0x1e8] sm:$0xff]
      %v349 = vld [vmem:[#allocation2 + $0x1f0] sm:$0xff]
      %v350 = vld [vmem:[#allocation2 + $0x1f8] sm:$0xff]
      %v351 = vld [vmem:[%s198] sm:$0xf]
      %v352 = vld [vmem:[%s198 + $0x4] sm:$0xf]
      %v353 = vld [vmem:[%s198 + $0x8] sm:$0xf]
      %v354 = vld [vmem:[%s198 + $0xc] sm:$0xf]
      %v355 = vld [vmem:[%s198 + $0x10] sm:$0xf]
      %v356 = vld [vmem:[%s198 + $0x14] sm:$0xf]
      %v357 = vld [vmem:[%s198 + $0x18] sm:$0xf]
      %v358 = vld [vmem:[%s198 + $0x1c] sm:$0xf]
      %v359 = vld [vmem:[%s198 + $0x20] sm:$0xf]
      %v360 = vld [vmem:[%s198 + $0x24] sm:$0xf]
      %v361 = vld [vmem:[%s198 + $0x28] sm:$0xf]
      %v362 = vld [vmem:[%s198 + $0x2c] sm:$0xf]
      %v363 = vld [vmem:[%s198 + $0x30] sm:$0xf]
      %v364 = vld [vmem:[%s198 + $0x34] sm:$0xf]
      %v365 = vld [vmem:[%s198 + $0x38] sm:$0xf]
      %v366 = vld [vmem:[%s198 + $0x3c] sm:$0xf]
      %v367 = vld [vmem:[%s198 + $0x40] sm:$0xf]
      %v368 = vld [vmem:[%s198 + $0x44] sm:$0xf]
      %v369 = vld [vmem:[%s198 + $0x48] sm:$0xf]
      %v370 = vld [vmem:[%s198 + $0x4c] sm:$0xf]
      %v371 = vld [vmem:[%s198 + $0x50] sm:$0xf]
      %v372 = vld [vmem:[%s198 + $0x54] sm:$0xf]
      %v373 = vld [vmem:[%s198 + $0x58] sm:$0xf]
      %v374 = vld [vmem:[%s198 + $0x5c] sm:$0xf]
      %v375 = vld [vmem:[%s198 + $0x60] sm:$0xf]
      %v376 = vld [vmem:[%s198 + $0x64] sm:$0xf]
      %v377 = vld [vmem:[%s198 + $0x68] sm:$0xf]
      %v378 = vld [vmem:[%s198 + $0x6c] sm:$0xf]
      %v379 = vld [vmem:[%s198 + $0x70] sm:$0xf]
      %v380 = vld [vmem:[%s198 + $0x74] sm:$0xf]
      %v381 = vld [vmem:[%s198 + $0x78] sm:$0xf]
      %v382 = vld [vmem:[%s198 + $0x7c] sm:$0xf]
      %v383 = vld [vmem:[%s198 + $0x80] sm:$0xf]
      %v384 = vld [vmem:[%s198 + $0x84] sm:$0xf]
      %v385 = vld [vmem:[%s198 + $0x88] sm:$0xf]
      %v386 = vld [vmem:[%s198 + $0x8c] sm:$0xf]
      %v387 = vld [vmem:[%s198 + $0x90] sm:$0xf]
      %v388 = vld [vmem:[%s198 + $0x94] sm:$0xf]
      %v389 = vld [vmem:[%s198 + $0x98] sm:$0xf]
      %v390 = vld [vmem:[%s198 + $0x9c] sm:$0xf]
      %v391 = vld [vmem:[%s198 + $0xa0] sm:$0xf]
      %v392 = vld [vmem:[%s198 + $0xa4] sm:$0xf]
      %v393 = vld [vmem:[%s198 + $0xa8] sm:$0xf]
      %v394 = vld [vmem:[%s198 + $0xac] sm:$0xf]
      %v395 = vld [vmem:[%s198 + $0xb0] sm:$0xf]
      %v396 = vld [vmem:[%s198 + $0xb4] sm:$0xf]
      %v397 = vld [vmem:[%s198 + $0xb8] sm:$0xf]
      %v398 = vld [vmem:[%s198 + $0xbc] sm:$0xf]
      %v399 = vld [vmem:[%s198 + $0xc0] sm:$0xf]
      %v400 = vld [vmem:[%s198 + $0xc4] sm:$0xf]
      %v401 = vld [vmem:[%s198 + $0xc8] sm:$0xf]
      %v402 = vld [vmem:[%s198 + $0xcc] sm:$0xf]
      %v403 = vld [vmem:[%s198 + $0xd0] sm:$0xf]
      %v404 = vld [vmem:[%s198 + $0xd4] sm:$0xf]
      %v405 = vld [vmem:[%s198 + $0xd8] sm:$0xf]
      %v406 = vld [vmem:[%s198 + $0xdc] sm:$0xf]
      %v407 = vld [vmem:[%s198 + $0xe0] sm:$0xf]
      %v408 = vld [vmem:[%s198 + $0xe4] sm:$0xf]
      %v409 = vld [vmem:[%s198 + $0xe8] sm:$0xf]
      %v410 = vld [vmem:[%s198 + $0xec] sm:$0xf]
      %v411 = vld [vmem:[%s198 + $0xf0] sm:$0xf]
      %v412 = vld [vmem:[%s198 + $0xf4] sm:$0xf]
      %v413 = vld [vmem:[%s198 + $0xf8] sm:$0xf]
      %v414 = vld [vmem:[%s198 + $0xfc] sm:$0xf]
      %v415 = vld [vmem:[%s207] sm:$0xf]
      %v416 = vld [vmem:[%s207 + $0x4] sm:$0xf]
      %v417 = vld [vmem:[%s207 + $0x8] sm:$0xf]
      %v418 = vld [vmem:[%s207 + $0xc] sm:$0xf]
      %v419 = vld [vmem:[%s207 + $0x10] sm:$0xf]
      %v420 = vld [vmem:[%s207 + $0x14] sm:$0xf]
      %v421 = vld [vmem:[%s207 + $0x18] sm:$0xf]
      %v422 = vld [vmem:[%s207 + $0x1c] sm:$0xf]
      %v423 = vld [vmem:[%s207 + $0x20] sm:$0xf]
      %v424 = vld [vmem:[%s207 + $0x24] sm:$0xf]
      %v425 = vld [vmem:[%s207 + $0x28] sm:$0xf]
      %v426 = vld [vmem:[%s207 + $0x2c] sm:$0xf]
      %v427 = vld [vmem:[%s207 + $0x30] sm:$0xf]
      %v428 = vld [vmem:[%s207 + $0x34] sm:$0xf]
      %v429 = vld [vmem:[%s207 + $0x38] sm:$0xf]
      %v430 = vld [vmem:[%s207 + $0x3c] sm:$0xf]
      %v495 = vunpack.c.l.b16 %v351
      %v496 = vunpack.c.l.b16 %v352
      %v497 = vunpack.c.l.b16 %v353
      %v498 = vunpack.c.l.b16 %v354
      %v499 = vunpack.c.l.b16 %v355
      %v500 = vunpack.c.l.b16 %v356
      %v501 = vunpack.c.l.b16 %v357
      %v502 = vunpack.c.l.b16 %v358
      %v503 = vunpack.c.l.b16 %v359
      %v504 = vunpack.c.l.b16 %v360
      %v505 = vunpack.c.l.b16 %v361
      %v506 = vunpack.c.l.b16 %v362
      %v507 = vunpack.c.l.b16 %v363
      %v508 = vunpack.c.l.b16 %v364
      %v509 = vunpack.c.l.b16 %v365
      %v510 = vunpack.c.l.b16 %v366
      %v511 = vunpack.c.l.b16 %v367
      %v512 = vunpack.c.l.b16 %v368
      %v513 = vunpack.c.l.b16 %v369
      %v514 = vunpack.c.l.b16 %v370
      %v515 = vunpack.c.l.b16 %v371
      %v516 = vunpack.c.l.b16 %v372
      %v517 = vunpack.c.l.b16 %v373
      %v518 = vunpack.c.l.b16 %v374
      %v519 = vunpack.c.l.b16 %v375
      %v520 = vunpack.c.l.b16 %v376
      %v521 = vunpack.c.l.b16 %v377
      %v522 = vunpack.c.l.b16 %v378
      %v523 = vunpack.c.l.b16 %v379
      %v524 = vunpack.c.l.b16 %v380
      %v525 = vunpack.c.l.b16 %v381
      %v526 = vunpack.c.l.b16 %v382
      %v527 = vunpack.c.l.b16 %v383
      %v528 = vunpack.c.l.b16 %v384
      %v529 = vunpack.c.l.b16 %v385
      %v530 = vunpack.c.l.b16 %v386
      %v531 = vunpack.c.l.b16 %v387
      %v532 = vunpack.c.l.b16 %v388
      %v533 = vunpack.c.l.b16 %v389
      %v534 = vunpack.c.l.b16 %v390
      %v535 = vunpack.c.l.b16 %v391
      %v536 = vunpack.c.l.b16 %v392
      %v537 = vunpack.c.l.b16 %v393
      %v538 = vunpack.c.l.b16 %v394
      %v539 = vunpack.c.l.b16 %v395
      %v540 = vunpack.c.l.b16 %v396
      %v541 = vunpack.c.l.b16 %v397
      %v542 = vunpack.c.l.b16 %v398
      %v543 = vunpack.c.l.b16 %v399
      %v544 = vunpack.c.l.b16 %v400
      %v545 = vunpack.c.l.b16 %v401
      %v546 = vunpack.c.l.b16 %v402
      %v547 = vunpack.c.l.b16 %v403
      %v548 = vunpack.c.l.b16 %v404
      %v549 = vunpack.c.l.b16 %v405
      %v550 = vunpack.c.l.b16 %v406
      %v551 = vunpack.c.l.b16 %v407
      %v552 = vunpack.c.l.b16 %v408
      %v553 = vunpack.c.l.b16 %v409
      %v554 = vunpack.c.l.b16 %v410
      %v555 = vunpack.c.l.b16 %v411
      %v556 = vunpack.c.l.b16 %v412
      %v557 = vunpack.c.l.b16 %v413
      %v558 = vunpack.c.l.b16 %v414
      %v559 = vpack.c.b16 %v496, %v495
      %v560 = vpack.c.b16 %v498, %v497
      %v561 = vpack.c.b16 %v500, %v499
      %v562 = vpack.c.b16 %v502, %v501
      %v563 = vpack.c.b16 %v504, %v503
      %v564 = vpack.c.b16 %v506, %v505
      %v565 = vpack.c.b16 %v508, %v507
      %v566 = vpack.c.b16 %v510, %v509
      %v567 = vpack.c.b16 %v512, %v511
      %v568 = vpack.c.b16 %v514, %v513
      %v569 = vpack.c.b16 %v516, %v515
      %v570 = vpack.c.b16 %v518, %v517
      %v571 = vpack.c.b16 %v520, %v519
      %v572 = vpack.c.b16 %v522, %v521
      %v573 = vpack.c.b16 %v524, %v523
      %v574 = vpack.c.b16 %v526, %v525
      %v575 = vpack.c.b16 %v528, %v527
      %v576 = vpack.c.b16 %v530, %v529
      %v577 = vpack.c.b16 %v532, %v531
      %v578 = vpack.c.b16 %v534, %v533
      %v579 = vpack.c.b16 %v536, %v535
      %v580 = vpack.c.b16 %v538, %v537
      %v581 = vpack.c.b16 %v540, %v539
      %v582 = vpack.c.b16 %v542, %v541
      %v583 = vpack.c.b16 %v544, %v543
      %v584 = vpack.c.b16 %v546, %v545
      %v585 = vpack.c.b16 %v548, %v547
      %v586 = vpack.c.b16 %v550, %v549
      %v587 = vpack.c.b16 %v552, %v551
      %v588 = vpack.c.b16 %v554, %v553
      %v589 = vpack.c.b16 %v556, %v555
      %v590 = vpack.c.b16 %v558, %v557
      %v639 = vunpack.c.l.b16 %v415
      %v640 = vunpack.c.l.b16 %v416
      %v641 = vunpack.c.l.b16 %v417
      %v642 = vunpack.c.l.b16 %v418
      %v643 = vunpack.c.l.b16 %v419
      %v644 = vunpack.c.l.b16 %v420
      %v645 = vunpack.c.l.b16 %v421
      %v646 = vunpack.c.l.b16 %v422
      %v647 = vunpack.c.l.b16 %v423
      %v648 = vunpack.c.l.b16 %v424
      %v649 = vunpack.c.l.b16 %v425
      %v650 = vunpack.c.l.b16 %v426
      %v651 = vunpack.c.l.b16 %v427
      %v652 = vunpack.c.l.b16 %v428
      %v653 = vunpack.c.l.b16 %v429
      %v654 = vunpack.c.l.b16 %v430
      %v655 = vpack.c.b16 %v640, %v639
      %v656 = vpack.c.b16 %v642, %v641
      %v657 = vpack.c.b16 %v644, %v643
      %v658 = vpack.c.b16 %v646, %v645
      %v659 = vpack.c.b16 %v648, %v647
      %v660 = vpack.c.b16 %v650, %v649
      %v661 = vpack.c.b16 %v652, %v651
      %v662 = vpack.c.b16 %v654, %v653
      %671 = vmatprep.subr.bf16.mxu0 0
      %672 = vmatpush1.bf16.msra.mxu0 %v662
      %673 = vmatprep.subr.bf16.mxu0 0
      %674 = vmatpush1.bf16.msra.mxu0 %v661
      %675 = vmatprep.subr.bf16.mxu0 0
      %676 = vmatpush1.bf16.msra.mxu0 %v660
      %677 = vmatprep.subr.bf16.mxu0 0
      %678 = vmatpush1.bf16.msra.mxu0 %v659
      %679 = vmatprep.subr.bf16.mxu0 0
      %680 = vmatpush1.bf16.msra.mxu0 %v658
      %681 = vmatprep.subr.bf16.mxu0 0
      %682 = vmatpush1.bf16.msra.mxu0 %v657
      %683 = vmatprep.subr.bf16.mxu0 0
      %684 = vmatpush1.bf16.msra.mxu0 %v656
      %685 = vmatprep.subr.bf16.mxu0 0
      %686 = vmatpush1.bf16.msra.mxu0 %v655
      %687 = vmatprep.subr.bf16.mxu0 0
      %688 = vmatpush2.bf16.msra.mxu0 0
      %689 = vmatprep.subr.bf16.mxu0 0
      %690 = vmatpush2.bf16.msra.mxu0 0
      %691 = vmatprep.subr.bf16.mxu0 0
      %692 = vmatpush2.bf16.msra.mxu0 0
      %693 = vmatprep.subr.bf16.mxu0 0
      %694 = vmatpush2.bf16.msra.mxu0 0
      %695 = vmatprep.subr.bf16.mxu0 0
      %696 = vmatpush2.bf16.msra.mxu0 0
      %697 = vmatprep.subr.bf16.mxu0 0
      %698 = vmatpush2.bf16.msra.mxu0 0
      %699 = vmatprep.subr.bf16.mxu0 0
      %700 = vmatpush2.bf16.msra.mxu0 0
      %701 = vmatprep.subr.bf16.mxu0 0
      %702 = vmatpush2.bf16.msra.mxu0 0
      %703 = vmatprep.mubr.bf16.mxu0 0
      %704 = vmatmul.mubr.bf16.gmra.mxu0 %v559
      %v705 = vpop.f32.mrf.mxu0
      %v706 = vadd.f32 0.0, %v705
      %v707 = vpop.f32.mrf.mxu0
      %v708 = vpop.f32.mrf.mxu0
      %v709 = vadd.f32 0.0, %v708
      %v710 = vpop.f32.mrf.mxu0
      %711 = vmatprep.mubr.bf16.mxu0 0
      %712 = vmatmul.mubr.bf16.gmra.mxu0 %v560
      %v713 = vpop.f32.mrf.mxu0
      %v714 = vadd.f32 0.0, %v713
      %v715 = vpop.f32.mrf.mxu0
      %v716 = vpop.f32.mrf.mxu0
      %v717 = vadd.f32 0.0, %v716
      %v718 = vpop.f32.mrf.mxu0
      %719 = vmatprep.mubr.bf16.mxu0 0
      %720 = vmatmul.mubr.bf16.gmra.mxu0 %v561
      %v721 = vpop.f32.mrf.mxu0
      %v722 = vadd.f32 0.0, %v721
      %v723 = vpop.f32.mrf.mxu0
      %v724 = vpop.f32.mrf.mxu0
      %v725 = vadd.f32 0.0, %v724
      %v726 = vpop.f32.mrf.mxu0
      %727 = vmatprep.mubr.bf16.mxu0 0
      %728 = vmatmul.mubr.bf16.gmra.mxu0 %v562
      %v729 = vpop.f32.mrf.mxu0
      %v730 = vadd.f32 0.0, %v729
      %v731 = vpop.f32.mrf.mxu0
      %v732 = vpop.f32.mrf.mxu0
      %v733 = vadd.f32 0.0, %v732
      %v734 = vpop.f32.mrf.mxu0
      %735 = vmatprep.mubr.bf16.mxu0 0
      %736 = vmatmul.mubr.bf16.gmra.mxu0 %v563
      %v737 = vpop.f32.mrf.mxu0
      %v738 = vadd.f32 0.0, %v737
      %v739 = vpop.f32.mrf.mxu0
      %v740 = vpop.f32.mrf.mxu0
      %v741 = vadd.f32 0.0, %v740
      %v742 = vpop.f32.mrf.mxu0
      %743 = vmatprep.mubr.bf16.mxu0 0
      %744 = vmatmul.mubr.bf16.gmra.mxu0 %v564
      %v745 = vpop.f32.mrf.mxu0
      %v746 = vadd.f32 0.0, %v745
      %v747 = vpop.f32.mrf.mxu0
      %v748 = vpop.f32.mrf.mxu0
      %v749 = vadd.f32 0.0, %v748
      %v750 = vpop.f32.mrf.mxu0
      %751 = vmatprep.mubr.bf16.mxu0 0
      %752 = vmatmul.mubr.bf16.gmra.mxu0 %v565
      %v753 = vpop.f32.mrf.mxu0
      %v754 = vadd.f32 0.0, %v753
      %v755 = vpop.f32.mrf.mxu0
      %v756 = vpop.f32.mrf.mxu0
      %v757 = vadd.f32 0.0, %v756
      %v758 = vpop.f32.mrf.mxu0
      %759 = vmatprep.mubr.bf16.mxu0 0
      %760 = vmatmul.mubr.bf16.gmra.mxu0 %v566
      %v761 = vpop.f32.mrf.mxu0
      %v762 = vadd.f32 0.0, %v761
      %v763 = vpop.f32.mrf.mxu0
      %v764 = vpop.f32.mrf.mxu0
      %v765 = vadd.f32 0.0, %v764
      %v766 = vpop.f32.mrf.mxu0
      %767 = vmatprep.mubr.bf16.mxu0 0
      %768 = vmatmul.mubr.bf16.gmra.mxu0 %v567
      %v769 = vpop.f32.mrf.mxu0
      %v770 = vadd.f32 0.0, %v769
      %v771 = vpop.f32.mrf.mxu0
      %v772 = vpop.f32.mrf.mxu0
      %v773 = vadd.f32 0.0, %v772
      %v774 = vpop.f32.mrf.mxu0
      %775 = vmatprep.mubr.bf16.mxu0 0
      %776 = vmatmul.mubr.bf16.gmra.mxu0 %v568
      %v777 = vpop.f32.mrf.mxu0
      %v778 = vadd.f32 0.0, %v777
      %v779 = vpop.f32.mrf.mxu0
      %v780 = vpop.f32.mrf.mxu0
      %v781 = vadd.f32 0.0, %v780
      %v782 = vpop.f32.mrf.mxu0
      %783 = vmatprep.mubr.bf16.mxu0 0
      %784 = vmatmul.mubr.bf16.gmra.mxu0 %v569
      %v785 = vpop.f32.mrf.mxu0
      %v786 = vadd.f32 0.0, %v785
      %v787 = vpop.f32.mrf.mxu0
      %v788 = vpop.f32.mrf.mxu0
      %v789 = vadd.f32 0.0, %v788
      %v790 = vpop.f32.mrf.mxu0
      %791 = vmatprep.mubr.bf16.mxu0 0
      %792 = vmatmul.mubr.bf16.gmra.mxu0 %v570
      %v793 = vpop.f32.mrf.mxu0
      %v794 = vadd.f32 0.0, %v793
      %v795 = vpop.f32.mrf.mxu0
      %v796 = vpop.f32.mrf.mxu0
      %v797 = vadd.f32 0.0, %v796
      %v798 = vpop.f32.mrf.mxu0
      %799 = vmatprep.mubr.bf16.mxu0 0
      %800 = vmatmul.mubr.bf16.gmra.mxu0 %v571
      %v801 = vpop.f32.mrf.mxu0
      %v802 = vadd.f32 0.0, %v801
      %v803 = vpop.f32.mrf.mxu0
      %v804 = vpop.f32.mrf.mxu0
      %v805 = vadd.f32 0.0, %v804
      %v806 = vpop.f32.mrf.mxu0
      %807 = vmatprep.mubr.bf16.mxu0 0
      %808 = vmatmul.mubr.bf16.gmra.mxu0 %v572
      %v809 = vpop.f32.mrf.mxu0
      %v810 = vadd.f32 0.0, %v809
      %v811 = vpop.f32.mrf.mxu0
      %v812 = vpop.f32.mrf.mxu0
      %v813 = vadd.f32 0.0, %v812
      %v814 = vpop.f32.mrf.mxu0
      %815 = vmatprep.mubr.bf16.mxu0 0
      %816 = vmatmul.mubr.bf16.gmra.mxu0 %v573
      %v817 = vpop.f32.mrf.mxu0
      %v818 = vadd.f32 0.0, %v817
      %v819 = vpop.f32.mrf.mxu0
      %v820 = vpop.f32.mrf.mxu0
      %v821 = vadd.f32 0.0, %v820
      %v822 = vpop.f32.mrf.mxu0
      %823 = vmatprep.mubr.bf16.mxu0 0
      %824 = vmatmul.mubr.bf16.gmra.mxu0 %v574
      %v825 = vpop.f32.mrf.mxu0
      %v826 = vadd.f32 0.0, %v825
      %v827 = vpop.f32.mrf.mxu0
      %v828 = vpop.f32.mrf.mxu0
      %v829 = vadd.f32 0.0, %v828
      %v830 = vpop.f32.mrf.mxu0
      %831 = vmatprep.mubr.bf16.mxu0 0
      %832 = vmatmul.mubr.bf16.gmra.mxu0 %v575
      %v833 = vpop.f32.mrf.mxu0
      %v834 = vadd.f32 0.0, %v833
      %v835 = vpop.f32.mrf.mxu0
      %v836 = vpop.f32.mrf.mxu0
      %v837 = vadd.f32 0.0, %v836
      %v838 = vpop.f32.mrf.mxu0
      %839 = vmatprep.mubr.bf16.mxu0 0
      %840 = vmatmul.mubr.bf16.gmra.mxu0 %v576
      %v841 = vpop.f32.mrf.mxu0
      %v842 = vadd.f32 0.0, %v841
      %v843 = vpop.f32.mrf.mxu0
      %v844 = vpop.f32.mrf.mxu0
      %v845 = vadd.f32 0.0, %v844
      %v846 = vpop.f32.mrf.mxu0
      %847 = vmatprep.mubr.bf16.mxu0 0
      %848 = vmatmul.mubr.bf16.gmra.mxu0 %v577
      %v849 = vpop.f32.mrf.mxu0
      %v850 = vadd.f32 0.0, %v849
      %v851 = vpop.f32.mrf.mxu0
      %v852 = vpop.f32.mrf.mxu0
      %v853 = vadd.f32 0.0, %v852
      %v854 = vpop.f32.mrf.mxu0
      %855 = vmatprep.mubr.bf16.mxu0 0
      %856 = vmatmul.mubr.bf16.gmra.mxu0 %v578
      %v857 = vpop.f32.mrf.mxu0
      %v858 = vadd.f32 0.0, %v857
      %v859 = vpop.f32.mrf.mxu0
      %v860 = vpop.f32.mrf.mxu0
      %v861 = vadd.f32 0.0, %v860
      %v862 = vpop.f32.mrf.mxu0
      %863 = vmatprep.mubr.bf16.mxu0 0
      %864 = vmatmul.mubr.bf16.gmra.mxu0 %v579
      %v865 = vpop.f32.mrf.mxu0
      %v866 = vadd.f32 0.0, %v865
      %v867 = vpop.f32.mrf.mxu0
      %v868 = vpop.f32.mrf.mxu0
      %v869 = vadd.f32 0.0, %v868
      %v870 = vpop.f32.mrf.mxu0
      %871 = vmatprep.mubr.bf16.mxu0 0
      %872 = vmatmul.mubr.bf16.gmra.mxu0 %v580
      %v873 = vpop.f32.mrf.mxu0
      %v874 = vadd.f32 0.0, %v873
      %v875 = vpop.f32.mrf.mxu0
      %v876 = vpop.f32.mrf.mxu0
      %v877 = vadd.f32 0.0, %v876
      %v878 = vpop.f32.mrf.mxu0
      %879 = vmatprep.mubr.bf16.mxu0 0
      %880 = vmatmul.mubr.bf16.gmra.mxu0 %v581
      %v881 = vpop.f32.mrf.mxu0
      %v882 = vadd.f32 0.0, %v881
      %v883 = vpop.f32.mrf.mxu0
      %v884 = vpop.f32.mrf.mxu0
      %v885 = vadd.f32 0.0, %v884
      %v886 = vpop.f32.mrf.mxu0
      %887 = vmatprep.mubr.bf16.mxu0 0
      %888 = vmatmul.mubr.bf16.gmra.mxu0 %v582
      %v889 = vpop.f32.mrf.mxu0
      %v890 = vadd.f32 0.0, %v889
      %v891 = vpop.f32.mrf.mxu0
      %v892 = vpop.f32.mrf.mxu0
      %v893 = vadd.f32 0.0, %v892
      %v894 = vpop.f32.mrf.mxu0
      %895 = vmatprep.mubr.bf16.mxu0 0
      %896 = vmatmul.mubr.bf16.gmra.mxu0 %v583
      %v897 = vpop.f32.mrf.mxu0
      %v898 = vadd.f32 0.0, %v897
      %v899 = vpop.f32.mrf.mxu0
      %v900 = vpop.f32.mrf.mxu0
      %v901 = vadd.f32 0.0, %v900
      %v902 = vpop.f32.mrf.mxu0
      %903 = vmatprep.mubr.bf16.mxu0 0
      %904 = vmatmul.mubr.bf16.gmra.mxu0 %v584
      %v905 = vpop.f32.mrf.mxu0
      %v906 = vadd.f32 0.0, %v905
      %v907 = vpop.f32.mrf.mxu0
      %v908 = vpop.f32.mrf.mxu0
      %v909 = vadd.f32 0.0, %v908
      %v910 = vpop.f32.mrf.mxu0
      %911 = vmatprep.mubr.bf16.mxu0 0
      %912 = vmatmul.mubr.bf16.gmra.mxu0 %v585
      %v913 = vpop.f32.mrf.mxu0
      %v914 = vadd.f32 0.0, %v913
      %v915 = vpop.f32.mrf.mxu0
      %v916 = vpop.f32.mrf.mxu0
      %v917 = vadd.f32 0.0, %v916
      %v918 = vpop.f32.mrf.mxu0
      %919 = vmatprep.mubr.bf16.mxu0 0
      %920 = vmatmul.mubr.bf16.gmra.mxu0 %v586
      %v921 = vpop.f32.mrf.mxu0
      %v922 = vadd.f32 0.0, %v921
      %v923 = vpop.f32.mrf.mxu0
      %v924 = vpop.f32.mrf.mxu0
      %v925 = vadd.f32 0.0, %v924
      %v926 = vpop.f32.mrf.mxu0
      %927 = vmatprep.mubr.bf16.mxu0 0
      %928 = vmatmul.mubr.bf16.gmra.mxu0 %v587
      %v929 = vpop.f32.mrf.mxu0
      %v930 = vadd.f32 0.0, %v929
      %v931 = vpop.f32.mrf.mxu0
      %v932 = vpop.f32.mrf.mxu0
      %v933 = vadd.f32 0.0, %v932
      %v934 = vpop.f32.mrf.mxu0
      %935 = vmatprep.mubr.bf16.mxu0 0
      %936 = vmatmul.mubr.bf16.gmra.mxu0 %v588
      %v937 = vpop.f32.mrf.mxu0
      %v938 = vadd.f32 0.0, %v937
      %v939 = vpop.f32.mrf.mxu0
      %v940 = vpop.f32.mrf.mxu0
      %v941 = vadd.f32 0.0, %v940
      %v942 = vpop.f32.mrf.mxu0
      %943 = vmatprep.mubr.bf16.mxu0 0
      %944 = vmatmul.mubr.bf16.gmra.mxu0 %v589
      %v945 = vpop.f32.mrf.mxu0
      %v946 = vadd.f32 0.0, %v945
      %v947 = vpop.f32.mrf.mxu0
      %v948 = vpop.f32.mrf.mxu0
      %v949 = vadd.f32 0.0, %v948
      %v950 = vpop.f32.mrf.mxu0
      %951 = vmatprep.mubr.bf16.mxu0 0
      %952 = vmatmul.mubr.bf16.gmra.mxu0 %v590
      %v953 = vpop.f32.mrf.mxu0
      %v954 = vadd.f32 0.0, %v953
      %v955 = vpop.f32.mrf.mxu0
      %v956 = vpop.f32.mrf.mxu0
      %v957 = vadd.f32 0.0, %v956
      %v958 = vpop.f32.mrf.mxu0
      %959 = vdwg.mxu0
      %v960 = vadd.f32 %v287, %v706
      %v961 = vadd.f32 %v288, %v709
      %v962 = vadd.f32 %v289, %v714
      %v963 = vadd.f32 %v290, %v717
      %v964 = vadd.f32 %v291, %v722
      %v965 = vadd.f32 %v292, %v725
      %v966 = vadd.f32 %v293, %v730
      %v967 = vadd.f32 %v294, %v733
      %v968 = vadd.f32 %v295, %v738
      %v969 = vadd.f32 %v296, %v741
      %v970 = vadd.f32 %v297, %v746
      %v971 = vadd.f32 %v298, %v749
      %v972 = vadd.f32 %v299, %v754
      %v973 = vadd.f32 %v300, %v757
      %v974 = vadd.f32 %v301, %v762
      %v975 = vadd.f32 %v302, %v765
      %v976 = vadd.f32 %v303, %v770
      %v977 = vadd.f32 %v304, %v773
      %v978 = vadd.f32 %v305, %v778
      %v979 = vadd.f32 %v306, %v781
      %v980 = vadd.f32 %v307, %v786
      %v981 = vadd.f32 %v308, %v789
      %v982 = vadd.f32 %v309, %v794
      %v983 = vadd.f32 %v310, %v797
      %v984 = vadd.f32 %v311, %v802
      %v985 = vadd.f32 %v312, %v805
      %v986 = vadd.f32 %v313, %v810
      %v987 = vadd.f32 %v314, %v813
      %v988 = vadd.f32 %v315, %v818
      %v989 = vadd.f32 %v316, %v821
      %v990 = vadd.f32 %v317, %v826
      %v991 = vadd.f32 %v318, %v829
      %v992 = vadd.f32 %v319, %v834
      %v993 = vadd.f32 %v320, %v837
      %v994 = vadd.f32 %v321, %v842
      %v995 = vadd.f32 %v322, %v845
      %v996 = vadd.f32 %v323, %v850
      %v997 = vadd.f32 %v324, %v853
      %v998 = vadd.f32 %v325, %v858
      %v999 = vadd.f32 %v326, %v861
      %v1000 = vadd.f32 %v327, %v866
      %v1001 = vadd.f32 %v328, %v869
      %v1002 = vadd.f32 %v329, %v874
      %v1003 = vadd.f32 %v330, %v877
      %v1004 = vadd.f32 %v331, %v882
      %v1005 = vadd.f32 %v332, %v885
      %v1006 = vadd.f32 %v333, %v890
      %v1007 = vadd.f32 %v334, %v893
      %v1008 = vadd.f32 %v335, %v898
      %v1009 = vadd.f32 %v336, %v901
      %v1010 = vadd.f32 %v337, %v906
      %v1011 = vadd.f32 %v338, %v909
      %v1012 = vadd.f32 %v339, %v914
      %v1013 = vadd.f32 %v340, %v917
      %v1014 = vadd.f32 %v341, %v922
      %v1015 = vadd.f32 %v342, %v925
      %v1016 = vadd.f32 %v343, %v930
      %v1017 = vadd.f32 %v344, %v933
      %v1018 = vadd.f32 %v345, %v938
      %v1019 = vadd.f32 %v346, %v941
      %v1020 = vadd.f32 %v347, %v946
      %v1021 = vadd.f32 %v348, %v949
      %v1022 = vadd.f32 %v349, %v954
      %v1023 = vadd.f32 %v350, %v957
      %1024 = vst [vmem:[#allocation2] sm:$0xff] %v960
      %1025 = vst [vmem:[#allocation2 + $0x8] sm:$0xff] %v961
      %1026 = vst [vmem:[#allocation2 + $0x10] sm:$0xff] %v962
      %1027 = vst [vmem:[#allocation2 + $0x18] sm:$0xff] %v963
      %1028 = vst [vmem:[#allocation2 + $0x20] sm:$0xff] %v964
      %1029 = vst [vmem:[#allocation2 + $0x28] sm:$0xff] %v965
      %1030 = vst [vmem:[#allocation2 + $0x30] sm:$0xff] %v966
      %1031 = vst [vmem:[#allocation2 + $0x38] sm:$0xff] %v967
      %1032 = vst [vmem:[#allocation2 + $0x40] sm:$0xff] %v968
      %1033 = vst [vmem:[#allocation2 + $0x48] sm:$0xff] %v969
      %1034 = vst [vmem:[#allocation2 + $0x50] sm:$0xff] %v970
      %1035 = vst [vmem:[#allocation2 + $0x58] sm:$0xff] %v971
      %1036 = vst [vmem:[#allocation2 + $0x60] sm:$0xff] %v972
      %1037 = vst [vmem:[#allocation2 + $0x68] sm:$0xff] %v973
      %1038 = vst [vmem:[#allocation2 + $0x70] sm:$0xff] %v974
      %1039 = vst [vmem:[#allocation2 + $0x78] sm:$0xff] %v975
      %1040 = vst [vmem:[#allocation2 + $0x80] sm:$0xff] %v976
      %1041 = vst [vmem:[#allocation2 + $0x88] sm:$0xff] %v977
      %1042 = vst [vmem:[#allocation2 + $0x90] sm:$0xff] %v978
      %1043 = vst [vmem:[#allocation2 + $0x98] sm:$0xff] %v979
      %1044 = vst [vmem:[#allocation2 + $0xa0] sm:$0xff] %v980
      %1045 = vst [vmem:[#allocation2 + $0xa8] sm:$0xff] %v981
      %1046 = vst [vmem:[#allocation2 + $0xb0] sm:$0xff] %v982
      %1047 = vst [vmem:[#allocation2 + $0xb8] sm:$0xff] %v983
      %1048 = vst [vmem:[#allocation2 + $0xc0] sm:$0xff] %v984
      %1049 = vst [vmem:[#allocation2 + $0xc8] sm:$0xff] %v985
      %1050 = vst [vmem:[#allocation2 + $0xd0] sm:$0xff] %v986
      %1051 = vst [vmem:[#allocation2 + $0xd8] sm:$0xff] %v987
      %1052 = vst [vmem:[#allocation2 + $0xe0] sm:$0xff] %v988
      %1053 = vst [vmem:[#allocation2 + $0xe8] sm:$0xff] %v989
      %1054 = vst [vmem:[#allocation2 + $0xf0] sm:$0xff] %v990
      %1055 = vst [vmem:[#allocation2 + $0xf8] sm:$0xff] %v991
      %1056 = vst [vmem:[#allocation2 + $0x100] sm:$0xff] %v992
      %1057 = vst [vmem:[#allocation2 + $0x108] sm:$0xff] %v993
      %1058 = vst [vmem:[#allocation2 + $0x110] sm:$0xff] %v994
      %1059 = vst [vmem:[#allocation2 + $0x118] sm:$0xff] %v995
      %1060 = vst [vmem:[#allocation2 + $0x120] sm:$0xff] %v996
      %1061 = vst [vmem:[#allocation2 + $0x128] sm:$0xff] %v997
      %1062 = vst [vmem:[#allocation2 + $0x130] sm:$0xff] %v998
      %1063 = vst [vmem:[#allocation2 + $0x138] sm:$0xff] %v999
      %1064 = vst [vmem:[#allocation2 + $0x140] sm:$0xff] %v1000
      %1065 = vst [vmem:[#allocation2 + $0x148] sm:$0xff] %v1001
      %1066 = vst [vmem:[#allocation2 + $0x150] sm:$0xff] %v1002
      %1067 = vst [vmem:[#allocation2 + $0x158] sm:$0xff] %v1003
      %1068 = vst [vmem:[#allocation2 + $0x160] sm:$0xff] %v1004
      %1069 = vst [vmem:[#allocation2 + $0x168] sm:$0xff] %v1005
      %1070 = vst [vmem:[#allocation2 + $0x170] sm:$0xff] %v1006
      %1071 = vst [vmem:[#allocation2 + $0x178] sm:$0xff] %v1007
      %1072 = vst [vmem:[#allocation2 + $0x180] sm:$0xff] %v1008
      %1073 = vst [vmem:[#allocation2 + $0x188] sm:$0xff] %v1009
      %1074 = vst [vmem:[#allocation2 + $0x190] sm:$0xff] %v1010
      %1075 = vst [vmem:[#allocation2 + $0x198] sm:$0xff] %v1011
      %1076 = vst [vmem:[#allocation2 + $0x1a0] sm:$0xff] %v1012
      %1077 = vst [vmem:[#allocation2 + $0x1a8] sm:$0xff] %v1013
      %1078 = vst [vmem:[#allocation2 + $0x1b0] sm:$0xff] %v1014
      %1079 = vst [vmem:[#allocation2 + $0x1b8] sm:$0xff] %v1015
      %1080 = vst [vmem:[#allocation2 + $0x1c0] sm:$0xff] %v1016
      %1081 = vst [vmem:[#allocation2 + $0x1c8] sm:$0xff] %v1017
      %1082 = vst [vmem:[#allocation2 + $0x1d0] sm:$0xff] %v1018
      %1083 = vst [vmem:[#allocation2 + $0x1d8] sm:$0xff] %v1019
      %1084 = vst [vmem:[#allocation2 + $0x1e0] sm:$0xff] %v1020
      %1085 = vst [vmem:[#allocation2 + $0x1e8] sm:$0xff] %v1021
      %1086 = vst [vmem:[#allocation2 + $0x1f0] sm:$0xff] %v1022
      %1087 = vst [vmem:[#allocation2 + $0x1f8] sm:$0xff] %v1023
      // Predicated region
      $region33: #{gand_forward.8} parent=27 // pred_check
        %p1088 = pneg %p219
      $region34: #{gand_forward.8} parent=27 // pred_check_branch
        %1090 = sbr.rel (%p1088) target = $region36
      $region35: #{gand_forward.8} parent=27 // pred_region
        %v1091 = vld [vmem:[#allocation2] sm:$0xff]
        %v1092 = vld [vmem:[#allocation2 + $0x8] sm:$0xff]
        %v1093 = vld [vmem:[#allocation2 + $0x10] sm:$0xff]
        %v1094 = vld [vmem:[#allocation2 + $0x18] sm:$0xff]
        %v1095 = vld [vmem:[#allocation2 + $0x20] sm:$0xff]
        %v1096 = vld [vmem:[#allocation2 + $0x28] sm:$0xff]
        %v1097 = vld [vmem:[#allocation2 + $0x30] sm:$0xff]
        %v1098 = vld [vmem:[#allocation2 + $0x38] sm:$0xff]
        %v1099 = vld [vmem:[#allocation2 + $0x40] sm:$0xff]
        %v1100 = vld [vmem:[#allocation2 + $0x48] sm:$0xff]
        %v1101 = vld [vmem:[#allocation2 + $0x50] sm:$0xff]
        %v1102 = vld [vmem:[#allocation2 + $0x58] sm:$0xff]
        %v1103 = vld [vmem:[#allocation2 + $0x60] sm:$0xff]
        %v1104 = vld [vmem:[#allocation2 + $0x68] sm:$0xff]
        %v1105 = vld [vmem:[#allocation2 + $0x70] sm:$0xff]
        %v1106 = vld [vmem:[#allocation2 + $0x78] sm:$0xff]
        %v1107 = vld [vmem:[#allocation2 + $0x80] sm:$0xff]
        %v1108 = vld [vmem:[#allocation2 + $0x88] sm:$0xff]
        %v1109 = vld [vmem:[#allocation2 + $0x90] sm:$0xff]
        %v1110 = vld [vmem:[#allocation2 + $0x98] sm:$0xff]
        %v1111 = vld [vmem:[#allocation2 + $0xa0] sm:$0xff]
        %v1112 = vld [vmem:[#allocation2 + $0xa8] sm:$0xff]
        %v1113 = vld [vmem:[#allocation2 + $0xb0] sm:$0xff]
        %v1114 = vld [vmem:[#allocation2 + $0xb8] sm:$0xff]
        %v1115 = vld [vmem:[#allocation2 + $0xc0] sm:$0xff]
        %v1116 = vld [vmem:[#allocation2 + $0xc8] sm:$0xff]
        %v1117 = vld [vmem:[#allocation2 + $0xd0] sm:$0xff]
        %v1118 = vld [vmem:[#allocation2 + $0xd8] sm:$0xff]
        %v1119 = vld [vmem:[#allocation2 + $0xe0] sm:$0xff]
        %v1120 = vld [vmem:[#allocation2 + $0xe8] sm:$0xff]
        %v1121 = vld [vmem:[#allocation2 + $0xf0] sm:$0xff]
        %v1122 = vld [vmem:[#allocation2 + $0xf8] sm:$0xff]
        %v1123 = vld [vmem:[#allocation2 + $0x100] sm:$0xff]
        %v1124 = vld [vmem:[#allocation2 + $0x108] sm:$0xff]
        %v1125 = vld [vmem:[#allocation2 + $0x110] sm:$0xff]
        %v1126 = vld [vmem:[#allocation2 + $0x118] sm:$0xff]
        %v1127 = vld [vmem:[#allocation2 + $0x120] sm:$0xff]
        %v1128 = vld [vmem:[#allocation2 + $0x128] sm:$0xff]
        %v1129 = vld [vmem:[#allocation2 + $0x130] sm:$0xff]
        %v1130 = vld [vmem:[#allocation2 + $0x138] sm:$0xff]
        %v1131 = vld [vmem:[#allocation2 + $0x140] sm:$0xff]
        %v1132 = vld [vmem:[#allocation2 + $0x148] sm:$0xff]
        %v1133 = vld [vmem:[#allocation2 + $0x150] sm:$0xff]
        %v1134 = vld [vmem:[#allocation2 + $0x158] sm:$0xff]
        %v1135 = vld [vmem:[#allocation2 + $0x160] sm:$0xff]
        %v1136 = vld [vmem:[#allocation2 + $0x168] sm:$0xff]
        %v1137 = vld [vmem:[#allocation2 + $0x170] sm:$0xff]
        %v1138 = vld [vmem:[#allocation2 + $0x178] sm:$0xff]
        %v1139 = vld [vmem:[#allocation2 + $0x180] sm:$0xff]
        %v1140 = vld [vmem:[#allocation2 + $0x188] sm:$0xff]
        %v1141 = vld [vmem:[#allocation2 + $0x190] sm:$0xff]
        %v1142 = vld [vmem:[#allocation2 + $0x198] sm:$0xff]
        %v1143 = vld [vmem:[#allocation2 + $0x1a0] sm:$0xff]
        %v1144 = vld [vmem:[#allocation2 + $0x1a8] sm:$0xff]
        %v1145 = vld [vmem:[#allocation2 + $0x1b0] sm:$0xff]
        %v1146 = vld [vmem:[#allocation2 + $0x1b8] sm:$0xff]
        %v1147 = vld [vmem:[#allocation2 + $0x1c0] sm:$0xff]
        %v1148 = vld [vmem:[#allocation2 + $0x1c8] sm:$0xff]
        %v1149 = vld [vmem:[#allocation2 + $0x1d0] sm:$0xff]
        %v1150 = vld [vmem:[#allocation2 + $0x1d8] sm:$0xff]
        %v1151 = vld [vmem:[#allocation2 + $0x1e0] sm:$0xff]
        %v1152 = vld [vmem:[#allocation2 + $0x1e8] sm:$0xff]
        %v1153 = vld [vmem:[#allocation2 + $0x1f0] sm:$0xff]
        %v1154 = vld [vmem:[#allocation2 + $0x1f8] sm:$0xff]
        %v1155 = vmax.f32 %v1091, 0.0
        %v1156 = vmax.f32 %v1092, 0.0
        %v1157 = vmax.f32 %v1093, 0.0
        %v1158 = vmax.f32 %v1094, 0.0
        %v1159 = vmax.f32 %v1095, 0.0
        %v1160 = vmax.f32 %v1096, 0.0
        %v1161 = vmax.f32 %v1097, 0.0
        %v1162 = vmax.f32 %v1098, 0.0
        %v1163 = vmax.f32 %v1099, 0.0
        %v1164 = vmax.f32 %v1100, 0.0
        %v1165 = vmax.f32 %v1101, 0.0
        %v1166 = vmax.f32 %v1102, 0.0
        %v1167 = vmax.f32 %v1103, 0.0
        %v1168 = vmax.f32 %v1104, 0.0
        %v1169 = vmax.f32 %v1105, 0.0
        %v1170 = vmax.f32 %v1106, 0.0
        %v1171 = vmax.f32 %v1107, 0.0
        %v1172 = vmax.f32 %v1108, 0.0
        %v1173 = vmax.f32 %v1109, 0.0
        %v1174 = vmax.f32 %v1110, 0.0
        %v1175 = vmax.f32 %v1111, 0.0
        %v1176 = vmax.f32 %v1112, 0.0
        %v1177 = vmax.f32 %v1113, 0.0
        %v1178 = vmax.f32 %v1114, 0.0
        %v1179 = vmax.f32 %v1115, 0.0
        %v1180 = vmax.f32 %v1116, 0.0
        %v1181 = vmax.f32 %v1117, 0.0
        %v1182 = vmax.f32 %v1118, 0.0
        %v1183 = vmax.f32 %v1119, 0.0
        %v1184 = vmax.f32 %v1120, 0.0
        %v1185 = vmax.f32 %v1121, 0.0
        %v1186 = vmax.f32 %v1122, 0.0
        %v1187 = vmax.f32 %v1123, 0.0
        %v1188 = vmax.f32 %v1124, 0.0
        %v1189 = vmax.f32 %v1125, 0.0
        %v1190 = vmax.f32 %v1126, 0.0
        %v1191 = vmax.f32 %v1127, 0.0
        %v1192 = vmax.f32 %v1128, 0.0
        %v1193 = vmax.f32 %v1129, 0.0
        %v1194 = vmax.f32 %v1130, 0.0
        %v1195 = vmax.f32 %v1131, 0.0
        %v1196 = vmax.f32 %v1132, 0.0
        %v1197 = vmax.f32 %v1133, 0.0
        %v1198 = vmax.f32 %v1134, 0.0
        %v1199 = vmax.f32 %v1135, 0.0
        %v1200 = vmax.f32 %v1136, 0.0
        %v1201 = vmax.f32 %v1137, 0.0
        %v1202 = vmax.f32 %v1138, 0.0
        %v1203 = vmax.f32 %v1139, 0.0
        %v1204 = vmax.f32 %v1140, 0.0
        %v1205 = vmax.f32 %v1141, 0.0
        %v1206 = vmax.f32 %v1142, 0.0
        %v1207 = vmax.f32 %v1143, 0.0
        %v1208 = vmax.f32 %v1144, 0.0
        %v1209 = vmax.f32 %v1145, 0.0
        %v1210 = vmax.f32 %v1146, 0.0
        %v1211 = vmax.f32 %v1147, 0.0
        %v1212 = vmax.f32 %v1148, 0.0
        %v1213 = vmax.f32 %v1149, 0.0
        %v1214 = vmax.f32 %v1150, 0.0
        %v1215 = vmax.f32 %v1151, 0.0
        %v1216 = vmax.f32 %v1152, 0.0
        %v1217 = vmax.f32 %v1153, 0.0
        %v1218 = vmax.f32 %v1154, 0.0
        %v1219 = vpack.c.bf16 %v1156, %v1155
        %v1220 = vpack.c.bf16 %v1158, %v1157
        %v1221 = vpack.c.bf16 %v1160, %v1159
        %v1222 = vpack.c.bf16 %v1162, %v1161
        %v1223 = vpack.c.bf16 %v1164, %v1163
        %v1224 = vpack.c.bf16 %v1166, %v1165
        %v1225 = vpack.c.bf16 %v1168, %v1167
        %v1226 = vpack.c.bf16 %v1170, %v1169
        %v1227 = vpack.c.bf16 %v1172, %v1171
        %v1228 = vpack.c.bf16 %v1174, %v1173
        %v1229 = vpack.c.bf16 %v1176, %v1175
        %v1230 = vpack.c.bf16 %v1178, %v1177
        %v1231 = vpack.c.bf16 %v1180, %v1179
        %v1232 = vpack.c.bf16 %v1182, %v1181
        %v1233 = vpack.c.bf16 %v1184, %v1183
        %v1234 = vpack.c.bf16 %v1186, %v1185
        %v1235 = vpack.c.bf16 %v1188, %v1187
        %v1236 = vpack.c.bf16 %v1190, %v1189
        %v1237 = vpack.c.bf16 %v1192, %v1191
        %v1238 = vpack.c.bf16 %v1194, %v1193
        %v1239 = vpack.c.bf16 %v1196, %v1195
        %v1240 = vpack.c.bf16 %v1198, %v1197
        %v1241 = vpack.c.bf16 %v1200, %v1199
        %v1242 = vpack.c.bf16 %v1202, %v1201
        %v1243 = vpack.c.bf16 %v1204, %v1203
        %v1244 = vpack.c.bf16 %v1206, %v1205
        %v1245 = vpack.c.bf16 %v1208, %v1207
        %v1246 = vpack.c.bf16 %v1210, %v1209
        %v1247 = vpack.c.bf16 %v1212, %v1211
        %v1248 = vpack.c.bf16 %v1214, %v1213
        %v1249 = vpack.c.bf16 %v1216, %v1215
        %v1250 = vpack.c.bf16 %v1218, %v1217
        %v1283 = vunpack.c.l.b16 %v1219
        %v1284 = vunpack.c.h.b16 %v1219
        %v1285 = vunpack.c.l.b16 %v1220
        %v1286 = vunpack.c.h.b16 %v1220
        %v1287 = vunpack.c.l.b16 %v1221
        %v1288 = vunpack.c.h.b16 %v1221
        %v1289 = vunpack.c.l.b16 %v1222
        %v1290 = vunpack.c.h.b16 %v1222
        %v1291 = vunpack.c.l.b16 %v1223
        %v1292 = vunpack.c.h.b16 %v1223
        %v1293 = vunpack.c.l.b16 %v1224
        %v1294 = vunpack.c.h.b16 %v1224
        %v1295 = vunpack.c.l.b16 %v1225
        %v1296 = vunpack.c.h.b16 %v1225
        %v1297 = vunpack.c.l.b16 %v1226
        %v1298 = vunpack.c.h.b16 %v1226
        %v1299 = vunpack.c.l.b16 %v1227
        %v1300 = vunpack.c.h.b16 %v1227
        %v1301 = vunpack.c.l.b16 %v1228
        %v1302 = vunpack.c.h.b16 %v1228
        %v1303 = vunpack.c.l.b16 %v1229
        %v1304 = vunpack.c.h.b16 %v1229
        %v1305 = vunpack.c.l.b16 %v1230
        %v1306 = vunpack.c.h.b16 %v1230
        %v1307 = vunpack.c.l.b16 %v1231
        %v1308 = vunpack.c.h.b16 %v1231
        %v1309 = vunpack.c.l.b16 %v1232
        %v1310 = vunpack.c.h.b16 %v1232
        %v1311 = vunpack.c.l.b16 %v1233
        %v1312 = vunpack.c.h.b16 %v1233
        %v1313 = vunpack.c.l.b16 %v1234
        %v1314 = vunpack.c.h.b16 %v1234
        %v1315 = vunpack.c.l.b16 %v1235
        %v1316 = vunpack.c.h.b16 %v1235
        %v1317 = vunpack.c.l.b16 %v1236
        %v1318 = vunpack.c.h.b16 %v1236
        %v1319 = vunpack.c.l.b16 %v1237
        %v1320 = vunpack.c.h.b16 %v1237
        %v1321 = vunpack.c.l.b16 %v1238
        %v1322 = vunpack.c.h.b16 %v1238
        %v1323 = vunpack.c.l.b16 %v1239
        %v1324 = vunpack.c.h.b16 %v1239
        %v1325 = vunpack.c.l.b16 %v1240
        %v1326 = vunpack.c.h.b16 %v1240
        %v1327 = vunpack.c.l.b16 %v1241
        %v1328 = vunpack.c.h.b16 %v1241
        %v1329 = vunpack.c.l.b16 %v1242
        %v1330 = vunpack.c.h.b16 %v1242
        %v1331 = vunpack.c.l.b16 %v1243
        %v1332 = vunpack.c.h.b16 %v1243
        %v1333 = vunpack.c.l.b16 %v1244
        %v1334 = vunpack.c.h.b16 %v1244
        %v1335 = vunpack.c.l.b16 %v1245
        %v1336 = vunpack.c.h.b16 %v1245
        %v1337 = vunpack.c.l.b16 %v1246
        %v1338 = vunpack.c.h.b16 %v1246
        %v1339 = vunpack.c.l.b16 %v1247
        %v1340 = vunpack.c.h.b16 %v1247
        %v1341 = vunpack.c.l.b16 %v1248
        %v1342 = vunpack.c.h.b16 %v1248
        %v1343 = vunpack.c.l.b16 %v1249
        %v1344 = vunpack.c.h.b16 %v1249
        %v1345 = vunpack.c.l.b16 %v1250
        %v1346 = vunpack.c.h.b16 %v1250
        %v1347 = vpack.c.b16 %v1283, %v1283
        %v1348 = vpack.c.b16 %v1284, %v1284
        %v1349 = vpack.c.b16 %v1285, %v1285
        %v1350 = vpack.c.b16 %v1286, %v1286
        %v1351 = vpack.c.b16 %v1287, %v1287
        %v1352 = vpack.c.b16 %v1288, %v1288
        %v1353 = vpack.c.b16 %v1289, %v1289
        %v1354 = vpack.c.b16 %v1290, %v1290
        %v1355 = vpack.c.b16 %v1291, %v1291
        %v1356 = vpack.c.b16 %v1292, %v1292
        %v1357 = vpack.c.b16 %v1293, %v1293
        %v1358 = vpack.c.b16 %v1294, %v1294
        %v1359 = vpack.c.b16 %v1295, %v1295
        %v1360 = vpack.c.b16 %v1296, %v1296
        %v1361 = vpack.c.b16 %v1297, %v1297
        %v1362 = vpack.c.b16 %v1298, %v1298
        %v1363 = vpack.c.b16 %v1299, %v1299
        %v1364 = vpack.c.b16 %v1300, %v1300
        %v1365 = vpack.c.b16 %v1301, %v1301
        %v1366 = vpack.c.b16 %v1302, %v1302
        %v1367 = vpack.c.b16 %v1303, %v1303
        %v1368 = vpack.c.b16 %v1304, %v1304
        %v1369 = vpack.c.b16 %v1305, %v1305
        %v1370 = vpack.c.b16 %v1306, %v1306
        %v1371 = vpack.c.b16 %v1307, %v1307
        %v1372 = vpack.c.b16 %v1308, %v1308
        %v1373 = vpack.c.b16 %v1309, %v1309
        %v1374 = vpack.c.b16 %v1310, %v1310
        %v1375 = vpack.c.b16 %v1311, %v1311
        %v1376 = vpack.c.b16 %v1312, %v1312
        %v1377 = vpack.c.b16 %v1313, %v1313
        %v1378 = vpack.c.b16 %v1314, %v1314
        %v1379 = vpack.c.b16 %v1315, %v1315
        %v1380 = vpack.c.b16 %v1316, %v1316
        %v1381 = vpack.c.b16 %v1317, %v1317
        %v1382 = vpack.c.b16 %v1318, %v1318
        %v1383 = vpack.c.b16 %v1319, %v1319
        %v1384 = vpack.c.b16 %v1320, %v1320
        %v1385 = vpack.c.b16 %v1321, %v1321
        %v1386 = vpack.c.b16 %v1322, %v1322
        %v1387 = vpack.c.b16 %v1323, %v1323
        %v1388 = vpack.c.b16 %v1324, %v1324
        %v1389 = vpack.c.b16 %v1325, %v1325
        %v1390 = vpack.c.b16 %v1326, %v1326
        %v1391 = vpack.c.b16 %v1327, %v1327
        %v1392 = vpack.c.b16 %v1328, %v1328
        %v1393 = vpack.c.b16 %v1329, %v1329
        %v1394 = vpack.c.b16 %v1330, %v1330
        %v1395 = vpack.c.b16 %v1331, %v1331
        %v1396 = vpack.c.b16 %v1332, %v1332
        %v1397 = vpack.c.b16 %v1333, %v1333
        %v1398 = vpack.c.b16 %v1334, %v1334
        %v1399 = vpack.c.b16 %v1335, %v1335
        %v1400 = vpack.c.b16 %v1336, %v1336
        %v1401 = vpack.c.b16 %v1337, %v1337
        %v1402 = vpack.c.b16 %v1338, %v1338
        %v1403 = vpack.c.b16 %v1339, %v1339
        %v1404 = vpack.c.b16 %v1340, %v1340
        %v1405 = vpack.c.b16 %v1341, %v1341
        %v1406 = vpack.c.b16 %v1342, %v1342
        %v1407 = vpack.c.b16 %v1343, %v1343
        %v1408 = vpack.c.b16 %v1344, %v1344
        %v1409 = vpack.c.b16 %v1345, %v1345
        %v1410 = vpack.c.b16 %v1346, %v1346
        %1475 = vst [vmem:[%s216] sm:$0xf] %v1347
        %1476 = vst [vmem:[%s216 + $0x4] sm:$0xf] %v1348
        %1477 = vst [vmem:[%s216 + $0x8] sm:$0xf] %v1349
        %1478 = vst [vmem:[%s216 + $0xc] sm:$0xf] %v1350
        %1479 = vst [vmem:[%s216 + $0x10] sm:$0xf] %v1351
        %1480 = vst [vmem:[%s216 + $0x14] sm:$0xf] %v1352
        %1481 = vst [vmem:[%s216 + $0x18] sm:$0xf] %v1353
        %1482 = vst [vmem:[%s216 + $0x1c] sm:$0xf] %v1354
        %1483 = vst [vmem:[%s216 + $0x20] sm:$0xf] %v1355
        %1484 = vst [vmem:[%s216 + $0x24] sm:$0xf] %v1356
        %1485 = vst [vmem:[%s216 + $0x28] sm:$0xf] %v1357
        %1486 = vst [vmem:[%s216 + $0x2c] sm:$0xf] %v1358
        %1487 = vst [vmem:[%s216 + $0x30] sm:$0xf] %v1359
        %1488 = vst [vmem:[%s216 + $0x34] sm:$0xf] %v1360
        %1489 = vst [vmem:[%s216 + $0x38] sm:$0xf] %v1361
        %1490 = vst [vmem:[%s216 + $0x3c] sm:$0xf] %v1362
        %1491 = vst [vmem:[%s216 + $0x40] sm:$0xf] %v1363
        %1492 = vst [vmem:[%s216 + $0x44] sm:$0xf] %v1364
        %1493 = vst [vmem:[%s216 + $0x48] sm:$0xf] %v1365
        %1494 = vst [vmem:[%s216 + $0x4c] sm:$0xf] %v1366
        %1495 = vst [vmem:[%s216 + $0x50] sm:$0xf] %v1367
        %1496 = vst [vmem:[%s216 + $0x54] sm:$0xf] %v1368
        %1497 = vst [vmem:[%s216 + $0x58] sm:$0xf] %v1369
        %1498 = vst [vmem:[%s216 + $0x5c] sm:$0xf] %v1370
        %1499 = vst [vmem:[%s216 + $0x60] sm:$0xf] %v1371
        %1500 = vst [vmem:[%s216 + $0x64] sm:$0xf] %v1372
        %1501 = vst [vmem:[%s216 + $0x68] sm:$0xf] %v1373
        %1502 = vst [vmem:[%s216 + $0x6c] sm:$0xf] %v1374
        %1503 = vst [vmem:[%s216 + $0x70] sm:$0xf] %v1375
        %1504 = vst [vmem:[%s216 + $0x74] sm:$0xf] %v1376
        %1505 = vst [vmem:[%s216 + $0x78] sm:$0xf] %v1377
        %1506 = vst [vmem:[%s216 + $0x7c] sm:$0xf] %v1378
        %1507 = vst [vmem:[%s216 + $0x80] sm:$0xf] %v1379
        %1508 = vst [vmem:[%s216 + $0x84] sm:$0xf] %v1380
        %1509 = vst [vmem:[%s216 + $0x88] sm:$0xf] %v1381
        %1510 = vst [vmem:[%s216 + $0x8c] sm:$0xf] %v1382
        %1511 = vst [vmem:[%s216 + $0x90] sm:$0xf] %v1383
        %1512 = vst [vmem:[%s216 + $0x94] sm:$0xf] %v1384
        %1513 = vst [vmem:[%s216 + $0x98] sm:$0xf] %v1385
        %1514 = vst [vmem:[%s216 + $0x9c] sm:$0xf] %v1386
        %1515 = vst [vmem:[%s216 + $0xa0] sm:$0xf] %v1387
        %1516 = vst [vmem:[%s216 + $0xa4] sm:$0xf] %v1388
        %1517 = vst [vmem:[%s216 + $0xa8] sm:$0xf] %v1389
        %1518 = vst [vmem:[%s216 + $0xac] sm:$0xf] %v1390
        %1519 = vst [vmem:[%s216 + $0xb0] sm:$0xf] %v1391
        %1520 = vst [vmem:[%s216 + $0xb4] sm:$0xf] %v1392
        %1521 = vst [vmem:[%s216 + $0xb8] sm:$0xf] %v1393
        %1522 = vst [vmem:[%s216 + $0xbc] sm:$0xf] %v1394
        %1523 = vst [vmem:[%s216 + $0xc0] sm:$0xf] %v1395
        %1524 = vst [vmem:[%s216 + $0xc4] sm:$0xf] %v1396
        %1525 = vst [vmem:[%s216 + $0xc8] sm:$0xf] %v1397
        %1526 = vst [vmem:[%s216 + $0xcc] sm:$0xf] %v1398
        %1527 = vst [vmem:[%s216 + $0xd0] sm:$0xf] %v1399
        %1528 = vst [vmem:[%s216 + $0xd4] sm:$0xf] %v1400
        %1529 = vst [vmem:[%s216 + $0xd8] sm:$0xf] %v1401
        %1530 = vst [vmem:[%s216 + $0xdc] sm:$0xf] %v1402
        %1531 = vst [vmem:[%s216 + $0xe0] sm:$0xf] %v1403
        %1532 = vst [vmem:[%s216 + $0xe4] sm:$0xf] %v1404
        %1533 = vst [vmem:[%s216 + $0xe8] sm:$0xf] %v1405
        %1534 = vst [vmem:[%s216 + $0xec] sm:$0xf] %v1406
        %1535 = vst [vmem:[%s216 + $0xf0] sm:$0xf] %v1407
        %1536 = vst [vmem:[%s216 + $0xf4] sm:$0xf] %v1408
        %1537 = vst [vmem:[%s216 + $0xf8] sm:$0xf] %v1409
        %1538 = vst [vmem:[%s216 + $0xfc] sm:$0xf] %v1410
      $region36: #{gand_forward.8} parent=27 // pred_fallthru
        _
      %s1539 = smul.u32 64, %s18
      %p1540 = scmp.lt.s32.totalorder %s1539, 255
      %s1541 = scalar_select %p1540, %s1539, 255
      %p1542 = scmp.lt.s32.totalorder %s19, 0
      %s1543 = scalar_select %p1542, %s19, 0
      %s1544 = sadd.s32 %s1543, %s1541
      %s1545 = smul.addr %s1544, 4
      %s1546 = scalar_lea.vmem %s2, %s1545
      // Predicated region
      $region37: #{gand_forward.8} parent=27 // pred_check
        %p1547 = pneg %p108
      $region38: #{gand_forward.8} parent=27 // pred_check_branch
        %1549 = sbr.rel (%p1547) target = $region40
      $region39: #{gand_forward.8} parent=27 // pred_region
        %s1550 = smul.u32 64, %s18
      $region40: #{gand_forward.8} parent=27 // pred_fallthru
        _
    $region28: #{gand_forward.8} parent=5 // pred_fallthru
      _
    %p1551 = scmp.le.s32.totalorder 2, %s8
    // Predicated region
    $region41: #{gand_forward.8} parent=5 // pred_check
      %p1552 = pneg %p1551
    $region42: #{gand_forward.8} parent=5 // pred_check_branch
      %1554 = sbr.rel (%p1552) target = $region44
    $region43: #{gand_forward.8} parent=5 // pred_region
      %s1555 = ssub.s32 %s8, 2
      // Predicated region
      $region45: #{gand_forward.8} parent=43 // pred_check
        %p1556 = pneg %p114
      $region46: #{gand_forward.8} parent=43 // pred_check_branch
        %1558 = sbr.rel (%p1556) target = $region48
      $region47: #{gand_forward.8} parent=43 // pred_region
        %s1559 = smul.u32 64, %s21
        %p1560 = scmp.lt.s32.totalorder %s1559, 255
        %s1561 = scalar_select %p1560, %s1559, 255
        %p1562 = scmp.lt.s32.totalorder %s22, 0
        %s1563 = scalar_select %p1562, %s22, 0
        %s1564 = sadd.s32 %s1563, %s1561
        %s1565 = smul.addr %s1564, 4
        %s1566 = scalar_lea.vmem %s2, %s1565
      $region48: #{gand_forward.8} parent=43 // pred_fallthru
        _
    $region44: #{gand_forward.8} parent=5 // pred_fallthru
      _
  $region6: #{gand_forward.8} parent=0 // loop_footer
    %s12 = sadd.s32 1, %s8
  $region7: #{gand_forward.8} parent=0 // loop_footer_branch
    %7 = sbr.rel target = $region3
  $region8: #{gand_forward.8} parent=0 // loop_exit
    _

// kernel: gand_forward.9
$region0: #{gand_forward.9}
  #allocation0 [shape = 'u32[]', space=smem, size = 0x4, offset = 0x4, fixed_abs, tag = 'smem constant byte address 0x4 - core index']
  #allocation1 [shape = 'u32[144,128]{1,0:T(1,128)}', space=vmem, size = 0x12000, scoped, tag = 'internal scratch']
  #allocation2 [shape = 'f32[512,128]{1,0:T(8,128)}', space=vmem, size = 0x40000, scoped, tag = 'scratch operand']
  %s0 = inlined_call_operand.vmem [shape: bf16[512,128], index: 0, kind: input, shape index: {}]
  %s1 = inlined_call_operand.vmem [shape: bf16[128,128], index: 1, kind: input, shape index: {}]
  %s2 = inlined_call_operand.vmem [shape: bf16[512,128], index: 2, kind: output, shape index: {0}]
  %s3 = inlined_call_operand.vmem [shape: f32[1,8,128], index: 3, kind: output, shape index: {1}]
  %s4 = inlined_call_operand.vmem [shape: f32[1,8,128], index: 4, kind: output, shape index: {2}]
  %5 = xla_tuple %s2, %s3, %s4
  %s6 = sld [smem:[#allocation0]]
  $region42: #{gand_forward.9} parent=0
    _
  %s8 = ssub.s32 1, %s6
  %s9 = scalar_select 0, %s8, %s6
  // Predicated region
  $region2: #{gand_forward.9} parent=0 // pred_check
    _
  $region3: #{gand_forward.9} parent=0 // pred_check_branch
    %11 = sbr.rel (0) target = $region5
  $region4: #{gand_forward.9} parent=0 // pred_region
    _
  $region5: #{gand_forward.9} parent=0 // pred_fallthru
    _
  // Predicated region
  $region6: #{gand_forward.9} parent=0 // pred_check
    _
  $region7: #{gand_forward.9} parent=0 // pred_check_branch
    %13 = sbr.rel (0) target = $region9
  $region8: #{gand_forward.9} parent=0 // pred_region
    _
  $region9: #{gand_forward.9} parent=0 // pred_fallthru
    _
  %p15 = scmp.eq.s32.totalorder 0, 0
  // Predicated region
  $region10: #{gand_forward.9} parent=0 // pred_check
    %p16 = pneg %p15
  $region11: #{gand_forward.9} parent=0 // pred_check_branch
    %18 = sbr.rel (%p16) target = $region13
  $region12: #{gand_forward.9} parent=0 // pred_region
    %19 = vst [vmem:[#allocation2] sm:$0xff] 0.0
    %20 = vst [vmem:[#allocation2 + $0x8] sm:$0xff] 0.0
    %21 = vst [vmem:[#allocation2 + $0x10] sm:$0xff] 0.0
    %22 = vst [vmem:[#allocation2 + $0x18] sm:$0xff] 0.0
    %23 = vst [vmem:[#allocation2 + $0x20] sm:$0xff] 0.0
    %24 = vst [vmem:[#allocation2 + $0x28] sm:$0xff] 0.0
    %25 = vst [vmem:[#allocation2 + $0x30] sm:$0xff] 0.0
    %26 = vst [vmem:[#allocation2 + $0x38] sm:$0xff] 0.0
    %27 = vst [vmem:[#allocation2 + $0x40] sm:$0xff] 0.0
    %28 = vst [vmem:[#allocation2 + $0x48] sm:$0xff] 0.0
    %29 = vst [vmem:[#allocation2 + $0x50] sm:$0xff] 0.0
    %30 = vst [vmem:[#allocation2 + $0x58] sm:$0xff] 0.0
    %31 = vst [vmem:[#allocation2 + $0x60] sm:$0xff] 0.0
    %32 = vst [vmem:[#allocation2 + $0x68] sm:$0xff] 0.0
    %33 = vst [vmem:[#allocation2 + $0x70] sm:$0xff] 0.0
    %34 = vst [vmem:[#allocation2 + $0x78] sm:$0xff] 0.0
    %35 = vst [vmem:[#allocation2 + $0x80] sm:$0xff] 0.0
    %36 = vst [vmem:[#allocation2 + $0x88] sm:$0xff] 0.0
    %37 = vst [vmem:[#allocation2 + $0x90] sm:$0xff] 0.0
    %38 = vst [vmem:[#allocation2 + $0x98] sm:$0xff] 0.0
    %39 = vst [vmem:[#allocation2 + $0xa0] sm:$0xff] 0.0
    %40 = vst [vmem:[#allocation2 + $0xa8] sm:$0xff] 0.0
    %41 = vst [vmem:[#allocation2 + $0xb0] sm:$0xff] 0.0
    %42 = vst [vmem:[#allocation2 + $0xb8] sm:$0xff] 0.0
    %43 = vst [vmem:[#allocation2 + $0xc0] sm:$0xff] 0.0
    %44 = vst [vmem:[#allocation2 + $0xc8] sm:$0xff] 0.0
    %45 = vst [vmem:[#allocation2 + $0xd0] sm:$0xff] 0.0
    %46 = vst [vmem:[#allocation2 + $0xd8] sm:$0xff] 0.0
    %47 = vst [vmem:[#allocation2 + $0xe0] sm:$0xff] 0.0
    %48 = vst [vmem:[#allocation2 + $0xe8] sm:$0xff] 0.0
    %49 = vst [vmem:[#allocation2 + $0xf0] sm:$0xff] 0.0
    %50 = vst [vmem:[#allocation2 + $0xf8] sm:$0xff] 0.0
    %51 = vst [vmem:[#allocation2 + $0x100] sm:$0xff] 0.0
    %52 = vst [vmem:[#allocation2 + $0x108] sm:$0xff] 0.0
    %53 = vst [vmem:[#allocation2 + $0x110] sm:$0xff] 0.0
    %54 = vst [vmem:[#allocation2 + $0x118] sm:$0xff] 0.0
    %55 = vst [vmem:[#allocation2 + $0x120] sm:$0xff] 0.0
    %56 = vst [vmem:[#allocation2 + $0x128] sm:$0xff] 0.0
    %57 = vst [vmem:[#allocation2 + $0x130] sm:$0xff] 0.0
    %58 = vst [vmem:[#allocation2 + $0x138] sm:$0xff] 0.0
    %59 = vst [vmem:[#allocation2 + $0x140] sm:$0xff] 0.0
    %60 = vst [vmem:[#allocation2 + $0x148] sm:$0xff] 0.0
    %61 = vst [vmem:[#allocation2 + $0x150] sm:$0xff] 0.0
    %62 = vst [vmem:[#allocation2 + $0x158] sm:$0xff] 0.0
    %63 = vst [vmem:[#allocation2 + $0x160] sm:$0xff] 0.0
    %64 = vst [vmem:[#allocation2 + $0x168] sm:$0xff] 0.0
    %65 = vst [vmem:[#allocation2 + $0x170] sm:$0xff] 0.0
    %66 = vst [vmem:[#allocation2 + $0x178] sm:$0xff] 0.0
    %67 = vst [vmem:[#allocation2 + $0x180] sm:$0xff] 0.0
    %68 = vst [vmem:[#allocation2 + $0x188] sm:$0xff] 0.0
    %69 = vst [vmem:[#allocation2 + $0x190] sm:$0xff] 0.0
    %70 = vst [vmem:[#allocation2 + $0x198] sm:$0xff] 0.0
    %71 = vst [vmem:[#allocation2 + $0x1a0] sm:$0xff] 0.0
    %72 = vst [vmem:[#allocation2 + $0x1a8] sm:$0xff] 0.0
    %73 = vst [vmem:[#allocation2 + $0x1b0] sm:$0xff] 0.0
    %74 = vst [vmem:[#allocation2 + $0x1b8] sm:$0xff] 0.0
    %75 = vst [vmem:[#allocation2 + $0x1c0] sm:$0xff] 0.0
    %76 = vst [vmem:[#allocation2 + $0x1c8] sm:$0xff] 0.0
    %77 = vst [vmem:[#allocation2 + $0x1d0] sm:$0xff] 0.0
    %78 = vst [vmem:[#allocation2 + $0x1d8] sm:$0xff] 0.0
    %79 = vst [vmem:[#allocation2 + $0x1e0] sm:$0xff] 0.0
    %80 = vst [vmem:[#allocation2 + $0x1e8] sm:$0xff] 0.0
    %81 = vst [vmem:[#allocation2 + $0x1f0] sm:$0xff] 0.0
    %82 = vst [vmem:[#allocation2 + $0x1f8] sm:$0xff] 0.0
  $region13: #{gand_forward.9} parent=0 // pred_fallthru
    _
  %v83 = vld [vmem:[#allocation2] sm:$0xff]
  %v84 = vld [vmem:[#allocation2 + $0x8] sm:$0xff]
  %v85 = vld [vmem:[#allocation2 + $0x10] sm:$0xff]
  %v86 = vld [vmem:[#allocation2 + $0x18] sm:$0xff]
  %v87 = vld [vmem:[#allocation2 + $0x20] sm:$0xff]
  %v88 = vld [vmem:[#allocation2 + $0x28] sm:$0xff]
  %v89 = vld [vmem:[#allocation2 + $0x30] sm:$0xff]
  %v90 = vld [vmem:[#allocation2 + $0x38] sm:$0xff]
  %v91 = vld [vmem:[#allocation2 + $0x40] sm:$0xff]
  %v92 = vld [vmem:[#allocation2 + $0x48] sm:$0xff]
  %v93 = vld [vmem:[#allocation2 + $0x50] sm:$0xff]
  %v94 = vld [vmem:[#allocation2 + $0x58] sm:$0xff]
  %v95 = vld [vmem:[#allocation2 + $0x60] sm:$0xff]
  %v96 = vld [vmem:[#allocation2 + $0x68] sm:$0xff]
  %v97 = vld [vmem:[#allocation2 + $0x70] sm:$0xff]
  %v98 = vld [vmem:[#allocation2 + $0x78] sm:$0xff]
  %v99 = vld [vmem:[#allocation2 + $0x80] sm:$0xff]
  %v100 = vld [vmem:[#allocation2 + $0x88] sm:$0xff]
  %v101 = vld [vmem:[#allocation2 + $0x90] sm:$0xff]
  %v102 = vld [vmem:[#allocation2 + $0x98] sm:$0xff]
  %v103 = vld [vmem:[#allocation2 + $0xa0] sm:$0xff]
  %v104 = vld [vmem:[#allocation2 + $0xa8] sm:$0xff]
  %v105 = vld [vmem:[#allocation2 + $0xb0] sm:$0xff]
  %v106 = vld [vmem:[#allocation2 + $0xb8] sm:$0xff]
  %v107 = vld [vmem:[#allocation2 + $0xc0] sm:$0xff]
  %v108 = vld [vmem:[#allocation2 + $0xc8] sm:$0xff]
  %v109 = vld [vmem:[#allocation2 + $0xd0] sm:$0xff]
  %v110 = vld [vmem:[#allocation2 + $0xd8] sm:$0xff]
  %v111 = vld [vmem:[#allocation2 + $0xe0] sm:$0xff]
  %v112 = vld [vmem:[#allocation2 + $0xe8] sm:$0xff]
  %v113 = vld [vmem:[#allocation2 + $0xf0] sm:$0xff]
  %v114 = vld [vmem:[#allocation2 + $0xf8] sm:$0xff]
  %v115 = vld [vmem:[#allocation2 + $0x100] sm:$0xff]
  %v116 = vld [vmem:[#allocation2 + $0x108] sm:$0xff]
  %v117 = vld [vmem:[#allocation2 + $0x110] sm:$0xff]
  %v118 = vld [vmem:[#allocation2 + $0x118] sm:$0xff]
  %v119 = vld [vmem:[#allocation2 + $0x120] sm:$0xff]
  %v120 = vld [vmem:[#allocation2 + $0x128] sm:$0xff]
  %v121 = vld [vmem:[#allocation2 + $0x130] sm:$0xff]
  %v122 = vld [vmem:[#allocation2 + $0x138] sm:$0xff]
  %v123 = vld [vmem:[#allocation2 + $0x140] sm:$0xff]
  %v124 = vld [vmem:[#allocation2 + $0x148] sm:$0xff]
  %v125 = vld [vmem:[#allocation2 + $0x150] sm:$0xff]
  %v126 = vld [vmem:[#allocation2 + $0x158] sm:$0xff]
  %v127 = vld [vmem:[#allocation2 + $0x160] sm:$0xff]
  %v128 = vld [vmem:[#allocation2 + $0x168] sm:$0xff]
  %v129 = vld [vmem:[#allocation2 + $0x170] sm:$0xff]
  %v130 = vld [vmem:[#allocation2 + $0x178] sm:$0xff]
  %v131 = vld [vmem:[#allocation2 + $0x180] sm:$0xff]
  %v132 = vld [vmem:[#allocation2 + $0x188] sm:$0xff]
  %v133 = vld [vmem:[#allocation2 + $0x190] sm:$0xff]
  %v134 = vld [vmem:[#allocation2 + $0x198] sm:$0xff]
  %v135 = vld [vmem:[#allocation2 + $0x1a0] sm:$0xff]
  %v136 = vld [vmem:[#allocation2 + $0x1a8] sm:$0xff]
  %v137 = vld [vmem:[#allocation2 + $0x1b0] sm:$0xff]
  %v138 = vld [vmem:[#allocation2 + $0x1b8] sm:$0xff]
  %v139 = vld [vmem:[#allocation2 + $0x1c0] sm:$0xff]
  %v140 = vld [vmem:[#allocation2 + $0x1c8] sm:$0xff]
  %v141 = vld [vmem:[#allocation2 + $0x1d0] sm:$0xff]
  %v142 = vld [vmem:[#allocation2 + $0x1d8] sm:$0xff]
  %v143 = vld [vmem:[#allocation2 + $0x1e0] sm:$0xff]
  %v144 = vld [vmem:[#allocation2 + $0x1e8] sm:$0xff]
  %v145 = vld [vmem:[#allocation2 + $0x1f0] sm:$0xff]
  %v146 = vld [vmem:[#allocation2 + $0x1f8] sm:$0xff]
  %v147 = vld [vmem:[%s0] sm:$0xf]
  %v148 = vld [vmem:[%s0 + $0x4] sm:$0xf]
  %v149 = vld [vmem:[%s0 + $0x8] sm:$0xf]
  %v150 = vld [vmem:[%s0 + $0xc] sm:$0xf]
  %v151 = vld [vmem:[%s0 + $0x10] sm:$0xf]
  %v152 = vld [vmem:[%s0 + $0x14] sm:$0xf]
  %v153 = vld [vmem:[%s0 + $0x18] sm:$0xf]
  %v154 = vld [vmem:[%s0 + $0x1c] sm:$0xf]
  %v155 = vld [vmem:[%s0 + $0x20] sm:$0xf]
  %v156 = vld [vmem:[%s0 + $0x24] sm:$0xf]
  %v157 = vld [vmem:[%s0 + $0x28] sm:$0xf]
  %v158 = vld [vmem:[%s0 + $0x2c] sm:$0xf]
  %v159 = vld [vmem:[%s0 + $0x30] sm:$0xf]
  %v160 = vld [vmem:[%s0 + $0x34] sm:$0xf]
  %v161 = vld [vmem:[%s0 + $0x38] sm:$0xf]
  %v162 = vld [vmem:[%s0 + $0x3c] sm:$0xf]
  %v163 = vld [vmem:[%s0 + $0x40] sm:$0xf]
  %v164 = vld [vmem:[%s0 + $0x44] sm:$0xf]
  %v165 = vld [vmem:[%s0 + $0x48] sm:$0xf]
  %v166 = vld [vmem:[%s0 + $0x4c] sm:$0xf]
  %v167 = vld [vmem:[%s0 + $0x50] sm:$0xf]
  %v168 = vld [vmem:[%s0 + $0x54] sm:$0xf]
  %v169 = vld [vmem:[%s0 + $0x58] sm:$0xf]
  %v170 = vld [vmem:[%s0 + $0x5c] sm:$0xf]
  %v171 = vld [vmem:[%s0 + $0x60] sm:$0xf]
  %v172 = vld [vmem:[%s0 + $0x64] sm:$0xf]
  %v173 = vld [vmem:[%s0 + $0x68] sm:$0xf]
  %v174 = vld [vmem:[%s0 + $0x6c] sm:$0xf]
  %v175 = vld [vmem:[%s0 + $0x70] sm:$0xf]
  %v176 = vld [vmem:[%s0 + $0x74] sm:$0xf]
  %v177 = vld [vmem:[%s0 + $0x78] sm:$0xf]
  %v178 = vld [vmem:[%s0 + $0x7c] sm:$0xf]
  %v179 = vld [vmem:[%s0 + $0x80] sm:$0xf]
  %v180 = vld [vmem:[%s0 + $0x84] sm:$0xf]
  %v181 = vld [vmem:[%s0 + $0x88] sm:$0xf]
  %v182 = vld [vmem:[%s0 + $0x8c] sm:$0xf]
  %v183 = vld [vmem:[%s0 + $0x90] sm:$0xf]
  %v184 = vld [vmem:[%s0 + $0x94] sm:$0xf]
  %v185 = vld [vmem:[%s0 + $0x98] sm:$0xf]
  %v186 = vld [vmem:[%s0 + $0x9c] sm:$0xf]
  %v187 = vld [vmem:[%s0 + $0xa0] sm:$0xf]
  %v188 = vld [vmem:[%s0 + $0xa4] sm:$0xf]
  %v189 = vld [vmem:[%s0 + $0xa8] sm:$0xf]
  %v190 = vld [vmem:[%s0 + $0xac] sm:$0xf]
  %v191 = vld [vmem:[%s0 + $0xb0] sm:$0xf]
  %v192 = vld [vmem:[%s0 + $0xb4] sm:$0xf]
  %v193 = vld [vmem:[%s0 + $0xb8] sm:$0xf]
  %v194 = vld [vmem:[%s0 + $0xbc] sm:$0xf]
  %v195 = vld [vmem:[%s0 + $0xc0] sm:$0xf]
  %v196 = vld [vmem:[%s0 + $0xc4] sm:$0xf]
  %v197 = vld [vmem:[%s0 + $0xc8] sm:$0xf]
  %v198 = vld [vmem:[%s0 + $0xcc] sm:$0xf]
  %v199 = vld [vmem:[%s0 + $0xd0] sm:$0xf]
  %v200 = vld [vmem:[%s0 + $0xd4] sm:$0xf]
  %v201 = vld [vmem:[%s0 + $0xd8] sm:$0xf]
  %v202 = vld [vmem:[%s0 + $0xdc] sm:$0xf]
  %v203 = vld [vmem:[%s0 + $0xe0] sm:$0xf]
  %v204 = vld [vmem:[%s0 + $0xe4] sm:$0xf]
  %v205 = vld [vmem:[%s0 + $0xe8] sm:$0xf]
  %v206 = vld [vmem:[%s0 + $0xec] sm:$0xf]
  %v207 = vld [vmem:[%s0 + $0xf0] sm:$0xf]
  %v208 = vld [vmem:[%s0 + $0xf4] sm:$0xf]
  %v209 = vld [vmem:[%s0 + $0xf8] sm:$0xf]
  %v210 = vld [vmem:[%s0 + $0xfc] sm:$0xf]
  %v211 = vld [vmem:[%s1] sm:$0xf]
  %v212 = vld [vmem:[%s1 + $0x4] sm:$0xf]
  %v213 = vld [vmem:[%s1 + $0x8] sm:$0xf]
  %v214 = vld [vmem:[%s1 + $0xc] sm:$0xf]
  %v215 = vld [vmem:[%s1 + $0x10] sm:$0xf]
  %v216 = vld [vmem:[%s1 + $0x14] sm:$0xf]
  %v217 = vld [vmem:[%s1 + $0x18] sm:$0xf]
  %v218 = vld [vmem:[%s1 + $0x1c] sm:$0xf]
  %v219 = vld [vmem:[%s1 + $0x20] sm:$0xf]
  %v220 = vld [vmem:[%s1 + $0x24] sm:$0xf]
  %v221 = vld [vmem:[%s1 + $0x28] sm:$0xf]
  %v222 = vld [vmem:[%s1 + $0x2c] sm:$0xf]
  %v223 = vld [vmem:[%s1 + $0x30] sm:$0xf]
  %v224 = vld [vmem:[%s1 + $0x34] sm:$0xf]
  %v225 = vld [vmem:[%s1 + $0x38] sm:$0xf]
  %v226 = vld [vmem:[%s1 + $0x3c] sm:$0xf]
  %v291 = vunpack.c.l.b16 %v147
  %v292 = vunpack.c.l.b16 %v148
  %v293 = vunpack.c.l.b16 %v149
  %v294 = vunpack.c.l.b16 %v150
  %v295 = vunpack.c.l.b16 %v151
  %v296 = vunpack.c.l.b16 %v152
  %v297 = vunpack.c.l.b16 %v153
  %v298 = vunpack.c.l.b16 %v154
  %v299 = vunpack.c.l.b16 %v155
  %v300 = vunpack.c.l.b16 %v156
  %v301 = vunpack.c.l.b16 %v157
  %v302 = vunpack.c.l.b16 %v158
  %v303 = vunpack.c.l.b16 %v159
  %v304 = vunpack.c.l.b16 %v160
  %v305 = vunpack.c.l.b16 %v161
  %v306 = vunpack.c.l.b16 %v162
  %v307 = vunpack.c.l.b16 %v163
  %v308 = vunpack.c.l.b16 %v164
  %v309 = vunpack.c.l.b16 %v165
  %v310 = vunpack.c.l.b16 %v166
  %v311 = vunpack.c.l.b16 %v167
  %v312 = vunpack.c.l.b16 %v168
  %v313 = vunpack.c.l.b16 %v169
  %v314 = vunpack.c.l.b16 %v170
  %v315 = vunpack.c.l.b16 %v171
  %v316 = vunpack.c.l.b16 %v172
  %v317 = vunpack.c.l.b16 %v173
  %v318 = vunpack.c.l.b16 %v174
  %v319 = vunpack.c.l.b16 %v175
  %v320 = vunpack.c.l.b16 %v176
  %v321 = vunpack.c.l.b16 %v177
  %v322 = vunpack.c.l.b16 %v178
  %v323 = vunpack.c.l.b16 %v179
  %v324 = vunpack.c.l.b16 %v180
  %v325 = vunpack.c.l.b16 %v181
  %v326 = vunpack.c.l.b16 %v182
  %v327 = vunpack.c.l.b16 %v183
  %v328 = vunpack.c.l.b16 %v184
  %v329 = vunpack.c.l.b16 %v185
  %v330 = vunpack.c.l.b16 %v186
  %v331 = vunpack.c.l.b16 %v187
  %v332 = vunpack.c.l.b16 %v188
  %v333 = vunpack.c.l.b16 %v189
  %v334 = vunpack.c.l.b16 %v190
  %v335 = vunpack.c.l.b16 %v191
  %v336 = vunpack.c.l.b16 %v192
  %v337 = vunpack.c.l.b16 %v193
  %v338 = vunpack.c.l.b16 %v194
  %v339 = vunpack.c.l.b16 %v195
  %v340 = vunpack.c.l.b16 %v196
  %v341 = vunpack.c.l.b16 %v197
  %v342 = vunpack.c.l.b16 %v198
  %v343 = vunpack.c.l.b16 %v199
  %v344 = vunpack.c.l.b16 %v200
  %v345 = vunpack.c.l.b16 %v201
  %v346 = vunpack.c.l.b16 %v202
  %v347 = vunpack.c.l.b16 %v203
  %v348 = vunpack.c.l.b16 %v204
  %v349 = vunpack.c.l.b16 %v205
  %v350 = vunpack.c.l.b16 %v206
  %v351 = vunpack.c.l.b16 %v207
  %v352 = vunpack.c.l.b16 %v208
  %v353 = vunpack.c.l.b16 %v209
  %v354 = vunpack.c.l.b16 %v210
  %v355 = vpack.c.b16 %v292, %v291
  %v356 = vpack.c.b16 %v294, %v293
  %v357 = vpack.c.b16 %v296, %v295
  %v358 = vpack.c.b16 %v298, %v297
  %v359 = vpack.c.b16 %v300, %v299
  %v360 = vpack.c.b16 %v302, %v301
  %v361 = vpack.c.b16 %v304, %v303
  %v362 = vpack.c.b16 %v306, %v305
  %v363 = vpack.c.b16 %v308, %v307
  %v364 = vpack.c.b16 %v310, %v309
  %v365 = vpack.c.b16 %v312, %v311
  %v366 = vpack.c.b16 %v314, %v313
  %v367 = vpack.c.b16 %v316, %v315
  %v368 = vpack.c.b16 %v318, %v317
  %v369 = vpack.c.b16 %v320, %v319
  %v370 = vpack.c.b16 %v322, %v321
  %v371 = vpack.c.b16 %v324, %v323
  %v372 = vpack.c.b16 %v326, %v325
  %v373 = vpack.c.b16 %v328, %v327
  %v374 = vpack.c.b16 %v330, %v329
  %v375 = vpack.c.b16 %v332, %v331
  %v376 = vpack.c.b16 %v334, %v333
  %v377 = vpack.c.b16 %v336, %v335
  %v378 = vpack.c.b16 %v338, %v337
  %v379 = vpack.c.b16 %v340, %v339
  %v380 = vpack.c.b16 %v342, %v341
  %v381 = vpack.c.b16 %v344, %v343
  %v382 = vpack.c.b16 %v346, %v345
  %v383 = vpack.c.b16 %v348, %v347
  %v384 = vpack.c.b16 %v350, %v349
  %v385 = vpack.c.b16 %v352, %v351
  %v386 = vpack.c.b16 %v354, %v353
  %v435 = vunpack.c.l.b16 %v211
  %v436 = vunpack.c.l.b16 %v212
  %v437 = vunpack.c.l.b16 %v213
  %v438 = vunpack.c.l.b16 %v214
  %v439 = vunpack.c.l.b16 %v215
  %v440 = vunpack.c.l.b16 %v216
  %v441 = vunpack.c.l.b16 %v217
  %v442 = vunpack.c.l.b16 %v218
  %v443 = vunpack.c.l.b16 %v219
  %v444 = vunpack.c.l.b16 %v220
  %v445 = vunpack.c.l.b16 %v221
  %v446 = vunpack.c.l.b16 %v222
  %v447 = vunpack.c.l.b16 %v223
  %v448 = vunpack.c.l.b16 %v224
  %v449 = vunpack.c.l.b16 %v225
  %v450 = vunpack.c.l.b16 %v226
  %v451 = vpack.c.b16 %v436, %v435
  %v452 = vpack.c.b16 %v438, %v437
  %v453 = vpack.c.b16 %v440, %v439
  %v454 = vpack.c.b16 %v442, %v441
  %v455 = vpack.c.b16 %v444, %v443
  %v456 = vpack.c.b16 %v446, %v445
  %v457 = vpack.c.b16 %v448, %v447
  %v458 = vpack.c.b16 %v450, %v449
  %467 = vmatprep.subr.bf16.mxu0 0
  %468 = vmatpush1.bf16.msra.mxu0 %v458
  %469 = vmatprep.subr.bf16.mxu0 0
  %470 = vmatpush1.bf16.msra.mxu0 %v457
  %471 = vmatprep.subr.bf16.mxu0 0
  %472 = vmatpush1.bf16.msra.mxu0 %v456
  %473 = vmatprep.subr.bf16.mxu0 0
  %474 = vmatpush1.bf16.msra.mxu0 %v455
  %475 = vmatprep.subr.bf16.mxu0 0
  %476 = vmatpush1.bf16.msra.mxu0 %v454
  %477 = vmatprep.subr.bf16.mxu0 0
  %478 = vmatpush1.bf16.msra.mxu0 %v453
  %479 = vmatprep.subr.bf16.mxu0 0
  %480 = vmatpush1.bf16.msra.mxu0 %v452
  %481 = vmatprep.subr.bf16.mxu0 0
  %482 = vmatpush1.bf16.msra.mxu0 %v451
  %483 = vmatprep.subr.bf16.mxu0 0
  %484 = vmatpush2.bf16.msra.mxu0 0
  %485 = vmatprep.subr.bf16.mxu0 0
  %486 = vmatpush2.bf16.msra.mxu0 0
  %487 = vmatprep.subr.bf16.mxu0 0
  %488 = vmatpush2.bf16.msra.mxu0 0
  %489 = vmatprep.subr.bf16.mxu0 0
  %490 = vmatpush2.bf16.msra.mxu0 0
  %491 = vmatprep.subr.bf16.mxu0 0
  %492 = vmatpush2.bf16.msra.mxu0 0
  %493 = vmatprep.subr.bf16.mxu0 0
  %494 = vmatpush2.bf16.msra.mxu0 0
  %495 = vmatprep.subr.bf16.mxu0 0
  %496 = vmatpush2.bf16.msra.mxu0 0
  %497 = vmatprep.subr.bf16.mxu0 0
  %498 = vmatpush2.bf16.msra.mxu0 0
  %499 = vmatprep.mubr.bf16.mxu0 0
  %500 = vmatmul.mubr.bf16.gmra.mxu0 %v355
  %v501 = vpop.f32.mrf.mxu0
  %v502 = vadd.f32 0.0, %v501
  %v503 = vpop.f32.mrf.mxu0
  %v504 = vpop.f32.mrf.mxu0
  %v505 = vadd.f32 0.0, %v504
  %v506 = vpop.f32.mrf.mxu0
  %507 = vmatprep.mubr.bf16.mxu0 0
  %508 = vmatmul.mubr.bf16.gmra.mxu0 %v356
  %v509 = vpop.f32.mrf.mxu0
  %v510 = vadd.f32 0.0, %v509
  %v511 = vpop.f32.mrf.mxu0
  %v512 = vpop.f32.mrf.mxu0
  %v513 = vadd.f32 0.0, %v512
  %v514 = vpop.f32.mrf.mxu0
  %515 = vmatprep.mubr.bf16.mxu0 0
  %516 = vmatmul.mubr.bf16.gmra.mxu0 %v357
  %v517 = vpop.f32.mrf.mxu0
  %v518 = vadd.f32 0.0, %v517
  %v519 = vpop.f32.mrf.mxu0
  %v520 = vpop.f32.mrf.mxu0
  %v521 = vadd.f32 0.0, %v520
  %v522 = vpop.f32.mrf.mxu0
  %523 = vmatprep.mubr.bf16.mxu0 0
  %524 = vmatmul.mubr.bf16.gmra.mxu0 %v358
  %v525 = vpop.f32.mrf.mxu0
  %v526 = vadd.f32 0.0, %v525
  %v527 = vpop.f32.mrf.mxu0
  %v528 = vpop.f32.mrf.mxu0
  %v529 = vadd.f32 0.0, %v528
  %v530 = vpop.f32.mrf.mxu0
  %531 = vmatprep.mubr.bf16.mxu0 0
  %532 = vmatmul.mubr.bf16.gmra.mxu0 %v359
  %v533 = vpop.f32.mrf.mxu0
  %v534 = vadd.f32 0.0, %v533
  %v535 = vpop.f32.mrf.mxu0
  %v536 = vpop.f32.mrf.mxu0
  %v537 = vadd.f32 0.0, %v536
  %v538 = vpop.f32.mrf.mxu0
  %539 = vmatprep.mubr.bf16.mxu0 0
  %540 = vmatmul.mubr.bf16.gmra.mxu0 %v360
  %v541 = vpop.f32.mrf.mxu0
  %v542 = vadd.f32 0.0, %v541
  %v543 = vpop.f32.mrf.mxu0
  %v544 = vpop.f32.mrf.mxu0
  %v545 = vadd.f32 0.0, %v544
  %v546 = vpop.f32.mrf.mxu0
  %547 = vmatprep.mubr.bf16.mxu0 0
  %548 = vmatmul.mubr.bf16.gmra.mxu0 %v361
  %v549 = vpop.f32.mrf.mxu0
  %v550 = vadd.f32 0.0, %v549
  %v551 = vpop.f32.mrf.mxu0
  %v552 = vpop.f32.mrf.mxu0
  %v553 = vadd.f32 0.0, %v552
  %v554 = vpop.f32.mrf.mxu0
  %555 = vmatprep.mubr.bf16.mxu0 0
  %556 = vmatmul.mubr.bf16.gmra.mxu0 %v362
  %v557 = vpop.f32.mrf.mxu0
  %v558 = vadd.f32 0.0, %v557
  %v559 = vpop.f32.mrf.mxu0
  %v560 = vpop.f32.mrf.mxu0
  %v561 = vadd.f32 0.0, %v560
  %v562 = vpop.f32.mrf.mxu0
  %563 = vmatprep.mubr.bf16.mxu0 0
  %564 = vmatmul.mubr.bf16.gmra.mxu0 %v363
  %v565 = vpop.f32.mrf.mxu0
  %v566 = vadd.f32 0.0, %v565
  %v567 = vpop.f32.mrf.mxu0
  %v568 = vpop.f32.mrf.mxu0
  %v569 = vadd.f32 0.0, %v568
  %v570 = vpop.f32.mrf.mxu0
  %571 = vmatprep.mubr.bf16.mxu0 0
  %572 = vmatmul.mubr.bf16.gmra.mxu0 %v364
  %v573 = vpop.f32.mrf.mxu0
  %v574 = vadd.f32 0.0, %v573
  %v575 = vpop.f32.mrf.mxu0
  %v576 = vpop.f32.mrf.mxu0
  %v577 = vadd.f32 0.0, %v576
  %v578 = vpop.f32.mrf.mxu0
  %579 = vmatprep.mubr.bf16.mxu0 0
  %580 = vmatmul.mubr.bf16.gmra.mxu0 %v365
  %v581 = vpop.f32.mrf.mxu0
  %v582 = vadd.f32 0.0, %v581
  %v583 = vpop.f32.mrf.mxu0
  %v584 = vpop.f32.mrf.mxu0
  %v585 = vadd.f32 0.0, %v584
  %v586 = vpop.f32.mrf.mxu0
  %587 = vmatprep.mubr.bf16.mxu0 0
  %588 = vmatmul.mubr.bf16.gmra.mxu0 %v366
  %v589 = vpop.f32.mrf.mxu0
  %v590 = vadd.f32 0.0, %v589
  %v591 = vpop.f32.mrf.mxu0
  %v592 = vpop.f32.mrf.mxu0
  %v593 = vadd.f32 0.0, %v592
  %v594 = vpop.f32.mrf.mxu0
  %595 = vmatprep.mubr.bf16.mxu0 0
  %596 = vmatmul.mubr.bf16.gmra.mxu0 %v367
  %v597 = vpop.f32.mrf.mxu0
  %v598 = vadd.f32 0.0, %v597
  %v599 = vpop.f32.mrf.mxu0
  %v600 = vpop.f32.mrf.mxu0
  %v601 = vadd.f32 0.0, %v600
  %v602 = vpop.f32.mrf.mxu0
  %603 = vmatprep.mubr.bf16.mxu0 0
  %604 = vmatmul.mubr.bf16.gmra.mxu0 %v368
  %v605 = vpop.f32.mrf.mxu0
  %v606 = vadd.f32 0.0, %v605
  %v607 = vpop.f32.mrf.mxu0
  %v608 = vpop.f32.mrf.mxu0
  %v609 = vadd.f32 0.0, %v608
  %v610 = vpop.f32.mrf.mxu0
  %611 = vmatprep.mubr.bf16.mxu0 0
  %612 = vmatmul.mubr.bf16.gmra.mxu0 %v369
  %v613 = vpop.f32.mrf.mxu0
  %v614 = vadd.f32 0.0, %v613
  %v615 = vpop.f32.mrf.mxu0
  %v616 = vpop.f32.mrf.mxu0
  %v617 = vadd.f32 0.0, %v616
  %v618 = vpop.f32.mrf.mxu0
  %619 = vmatprep.mubr.bf16.mxu0 0
  %620 = vmatmul.mubr.bf16.gmra.mxu0 %v370
  %v621 = vpop.f32.mrf.mxu0
  %v622 = vadd.f32 0.0, %v621
  %v623 = vpop.f32.mrf.mxu0
  %v624 = vpop.f32.mrf.mxu0
  %v625 = vadd.f32 0.0, %v624
  %v626 = vpop.f32.mrf.mxu0
  %627 = vmatprep.mubr.bf16.mxu0 0
  %628 = vmatmul.mubr.bf16.gmra.mxu0 %v371
  %v629 = vpop.f32.mrf.mxu0
  %v630 = vadd.f32 0.0, %v629
  %v631 = vpop.f32.mrf.mxu0
  %v632 = vpop.f32.mrf.mxu0
  %v633 = vadd.f32 0.0, %v632
  %v634 = vpop.f32.mrf.mxu0
  %635 = vmatprep.mubr.bf16.mxu0 0
  %636 = vmatmul.mubr.bf16.gmra.mxu0 %v372
  %v637 = vpop.f32.mrf.mxu0
  %v638 = vadd.f32 0.0, %v637
  %v639 = vpop.f32.mrf.mxu0
  %v640 = vpop.f32.mrf.mxu0
  %v641 = vadd.f32 0.0, %v640
  %v642 = vpop.f32.mrf.mxu0
  %643 = vmatprep.mubr.bf16.mxu0 0
  %644 = vmatmul.mubr.bf16.gmra.mxu0 %v373
  %v645 = vpop.f32.mrf.mxu0
  %v646 = vadd.f32 0.0, %v645
  %v647 = vpop.f32.mrf.mxu0
  %v648 = vpop.f32.mrf.mxu0
  %v649 = vadd.f32 0.0, %v648
  %v650 = vpop.f32.mrf.mxu0
  %651 = vmatprep.mubr.bf16.mxu0 0
  %652 = vmatmul.mubr.bf16.gmra.mxu0 %v374
  %v653 = vpop.f32.mrf.mxu0
  %v654 = vadd.f32 0.0, %v653
  %v655 = vpop.f32.mrf.mxu0
  %v656 = vpop.f32.mrf.mxu0
  %v657 = vadd.f32 0.0, %v656
  %v658 = vpop.f32.mrf.mxu0
  %659 = vmatprep.mubr.bf16.mxu0 0
  %660 = vmatmul.mubr.bf16.gmra.mxu0 %v375
  %v661 = vpop.f32.mrf.mxu0
  %v662 = vadd.f32 0.0, %v661
  %v663 = vpop.f32.mrf.mxu0
  %v664 = vpop.f32.mrf.mxu0
  %v665 = vadd.f32 0.0, %v664
  %v666 = vpop.f32.mrf.mxu0
  %667 = vmatprep.mubr.bf16.mxu0 0
  %668 = vmatmul.mubr.bf16.gmra.mxu0 %v376
  %v669 = vpop.f32.mrf.mxu0
  %v670 = vadd.f32 0.0, %v669
  %v671 = vpop.f32.mrf.mxu0
  %v672 = vpop.f32.mrf.mxu0
  %v673 = vadd.f32 0.0, %v672
  %v674 = vpop.f32.mrf.mxu0
  %675 = vmatprep.mubr.bf16.mxu0 0
  %676 = vmatmul.mubr.bf16.gmra.mxu0 %v377
  %v677 = vpop.f32.mrf.mxu0
  %v678 = vadd.f32 0.0, %v677
  %v679 = vpop.f32.mrf.mxu0
  %v680 = vpop.f32.mrf.mxu0
  %v681 = vadd.f32 0.0, %v680
  %v682 = vpop.f32.mrf.mxu0
  %683 = vmatprep.mubr.bf16.mxu0 0
  %684 = vmatmul.mubr.bf16.gmra.mxu0 %v378
  %v685 = vpop.f32.mrf.mxu0
  %v686 = vadd.f32 0.0, %v685
  %v687 = vpop.f32.mrf.mxu0
  %v688 = vpop.f32.mrf.mxu0
  %v689 = vadd.f32 0.0, %v688
  %v690 = vpop.f32.mrf.mxu0
  %691 = vmatprep.mubr.bf16.mxu0 0
  %692 = vmatmul.mubr.bf16.gmra.mxu0 %v379
  %v693 = vpop.f32.mrf.mxu0
  %v694 = vadd.f32 0.0, %v693
  %v695 = vpop.f32.mrf.mxu0
  %v696 = vpop.f32.mrf.mxu0
  %v697 = vadd.f32 0.0, %v696
  %v698 = vpop.f32.mrf.mxu0
  %699 = vmatprep.mubr.bf16.mxu0 0
  %700 = vmatmul.mubr.bf16.gmra.mxu0 %v380
  %v701 = vpop.f32.mrf.mxu0
  %v702 = vadd.f32 0.0, %v701
  %v703 = vpop.f32.mrf.mxu0
  %v704 = vpop.f32.mrf.mxu0
  %v705 = vadd.f32 0.0, %v704
  %v706 = vpop.f32.mrf.mxu0
  %707 = vmatprep.mubr.bf16.mxu0 0
  %708 = vmatmul.mubr.bf16.gmra.mxu0 %v381
  %v709 = vpop.f32.mrf.mxu0
  %v710 = vadd.f32 0.0, %v709
  %v711 = vpop.f32.mrf.mxu0
  %v712 = vpop.f32.mrf.mxu0
  %v713 = vadd.f32 0.0, %v712
  %v714 = vpop.f32.mrf.mxu0
  %715 = vmatprep.mubr.bf16.mxu0 0
  %716 = vmatmul.mubr.bf16.gmra.mxu0 %v382
  %v717 = vpop.f32.mrf.mxu0
  %v718 = vadd.f32 0.0, %v717
  %v719 = vpop.f32.mrf.mxu0
  %v720 = vpop.f32.mrf.mxu0
  %v721 = vadd.f32 0.0, %v720
  %v722 = vpop.f32.mrf.mxu0
  %723 = vmatprep.mubr.bf16.mxu0 0
  %724 = vmatmul.mubr.bf16.gmra.mxu0 %v383
  %v725 = vpop.f32.mrf.mxu0
  %v726 = vadd.f32 0.0, %v725
  %v727 = vpop.f32.mrf.mxu0
  %v728 = vpop.f32.mrf.mxu0
  %v729 = vadd.f32 0.0, %v728
  %v730 = vpop.f32.mrf.mxu0
  %731 = vmatprep.mubr.bf16.mxu0 0
  %732 = vmatmul.mubr.bf16.gmra.mxu0 %v384
  %v733 = vpop.f32.mrf.mxu0
  %v734 = vadd.f32 0.0, %v733
  %v735 = vpop.f32.mrf.mxu0
  %v736 = vpop.f32.mrf.mxu0
  %v737 = vadd.f32 0.0, %v736
  %v738 = vpop.f32.mrf.mxu0
  %739 = vmatprep.mubr.bf16.mxu0 0
  %740 = vmatmul.mubr.bf16.gmra.mxu0 %v385
  %v741 = vpop.f32.mrf.mxu0
  %v742 = vadd.f32 0.0, %v741
  %v743 = vpop.f32.mrf.mxu0
  %v744 = vpop.f32.mrf.mxu0
  %v745 = vadd.f32 0.0, %v744
  %v746 = vpop.f32.mrf.mxu0
  %747 = vmatprep.mubr.bf16.mxu0 0
  %748 = vmatmul.mubr.bf16.gmra.mxu0 %v386
  %v749 = vpop.f32.mrf.mxu0
  %v750 = vadd.f32 0.0, %v749
  %v751 = vpop.f32.mrf.mxu0
  %v752 = vpop.f32.mrf.mxu0
  %v753 = vadd.f32 0.0, %v752
  %v754 = vpop.f32.mrf.mxu0
  %755 = vdwg.mxu0
  %v756 = vadd.f32 %v83, %v502
  %v757 = vadd.f32 %v84, %v505
  %v758 = vadd.f32 %v85, %v510
  %v759 = vadd.f32 %v86, %v513
  %v760 = vadd.f32 %v87, %v518
  %v761 = vadd.f32 %v88, %v521
  %v762 = vadd.f32 %v89, %v526
  %v763 = vadd.f32 %v90, %v529
  %v764 = vadd.f32 %v91, %v534
  %v765 = vadd.f32 %v92, %v537
  %v766 = vadd.f32 %v93, %v542
  %v767 = vadd.f32 %v94, %v545
  %v768 = vadd.f32 %v95, %v550
  %v769 = vadd.f32 %v96, %v553
  %v770 = vadd.f32 %v97, %v558
  %v771 = vadd.f32 %v98, %v561
  %v772 = vadd.f32 %v99, %v566
  %v773 = vadd.f32 %v100, %v569
  %v774 = vadd.f32 %v101, %v574
  %v775 = vadd.f32 %v102, %v577
  %v776 = vadd.f32 %v103, %v582
  %v777 = vadd.f32 %v104, %v585
  %v778 = vadd.f32 %v105, %v590
  %v779 = vadd.f32 %v106, %v593
  %v780 = vadd.f32 %v107, %v598
  %v781 = vadd.f32 %v108, %v601
  %v782 = vadd.f32 %v109, %v606
  %v783 = vadd.f32 %v110, %v609
  %v784 = vadd.f32 %v111, %v614
  %v785 = vadd.f32 %v112, %v617
  %v786 = vadd.f32 %v113, %v622
  %v787 = vadd.f32 %v114, %v625
  %v788 = vadd.f32 %v115, %v630
  %v789 = vadd.f32 %v116, %v633
  %v790 = vadd.f32 %v117, %v638
  %v791 = vadd.f32 %v118, %v641
  %v792 = vadd.f32 %v119, %v646
  %v793 = vadd.f32 %v120, %v649
  %v794 = vadd.f32 %v121, %v654
  %v795 = vadd.f32 %v122, %v657
  %v796 = vadd.f32 %v123, %v662
  %v797 = vadd.f32 %v124, %v665
  %v798 = vadd.f32 %v125, %v670
  %v799 = vadd.f32 %v126, %v673
  %v800 = vadd.f32 %v127, %v678
  %v801 = vadd.f32 %v128, %v681
  %v802 = vadd.f32 %v129, %v686
  %v803 = vadd.f32 %v130, %v689
  %v804 = vadd.f32 %v131, %v694
  %v805 = vadd.f32 %v132, %v697
  %v806 = vadd.f32 %v133, %v702
  %v807 = vadd.f32 %v134, %v705
  %v808 = vadd.f32 %v135, %v710
  %v809 = vadd.f32 %v136, %v713
  %v810 = vadd.f32 %v137, %v718
  %v811 = vadd.f32 %v138, %v721
  %v812 = vadd.f32 %v139, %v726
  %v813 = vadd.f32 %v140, %v729
  %v814 = vadd.f32 %v141, %v734
  %v815 = vadd.f32 %v142, %v737
  %v816 = vadd.f32 %v143, %v742
  %v817 = vadd.f32 %v144, %v745
  %v818 = vadd.f32 %v145, %v750
  %v819 = vadd.f32 %v146, %v753
  %820 = vst [vmem:[#allocation2] sm:$0xff] %v756
  %821 = vst [vmem:[#allocation2 + $0x8] sm:$0xff] %v757
  %822 = vst [vmem:[#allocation2 + $0x10] sm:$0xff] %v758
  %823 = vst [vmem:[#allocation2 + $0x18] sm:$0xff] %v759
  %824 = vst [vmem:[#allocation2 + $0x20] sm:$0xff] %v760
  %825 = vst [vmem:[#allocation2 + $0x28] sm:$0xff] %v761
  %826 = vst [vmem:[#allocation2 + $0x30] sm:$0xff] %v762
  %827 = vst [vmem:[#allocation2 + $0x38] sm:$0xff] %v763
  %828 = vst [vmem:[#allocation2 + $0x40] sm:$0xff] %v764
  %829 = vst [vmem:[#allocation2 + $0x48] sm:$0xff] %v765
  %830 = vst [vmem:[#allocation2 + $0x50] sm:$0xff] %v766
  %831 = vst [vmem:[#allocation2 + $0x58] sm:$0xff] %v767
  %832 = vst [vmem:[#allocation2 + $0x60] sm:$0xff] %v768
  %833 = vst [vmem:[#allocation2 + $0x68] sm:$0xff] %v769
  %834 = vst [vmem:[#allocation2 + $0x70] sm:$0xff] %v770
  %835 = vst [vmem:[#allocation2 + $0x78] sm:$0xff] %v771
  %836 = vst [vmem:[#allocation2 + $0x80] sm:$0xff] %v772
  %837 = vst [vmem:[#allocation2 + $0x88] sm:$0xff] %v773
  %838 = vst [vmem:[#allocation2 + $0x90] sm:$0xff] %v774
  %839 = vst [vmem:[#allocation2 + $0x98] sm:$0xff] %v775
  %840 = vst [vmem:[#allocation2 + $0xa0] sm:$0xff] %v776
  %841 = vst [vmem:[#allocation2 + $0xa8] sm:$0xff] %v777
  %842 = vst [vmem:[#allocation2 + $0xb0] sm:$0xff] %v778
  %843 = vst [vmem:[#allocation2 + $0xb8] sm:$0xff] %v779
  %844 = vst [vmem:[#allocation2 + $0xc0] sm:$0xff] %v780
  %845 = vst [vmem:[#allocation2 + $0xc8] sm:$0xff] %v781
  %846 = vst [vmem:[#allocation2 + $0xd0] sm:$0xff] %v782
  %847 = vst [vmem:[#allocation2 + $0xd8] sm:$0xff] %v783
  %848 = vst [vmem:[#allocation2 + $0xe0] sm:$0xff] %v784
  %849 = vst [vmem:[#allocation2 + $0xe8] sm:$0xff] %v785
  %850 = vst [vmem:[#allocation2 + $0xf0] sm:$0xff] %v786
  %851 = vst [vmem:[#allocation2 + $0xf8] sm:$0xff] %v787
  %852 = vst [vmem:[#allocation2 + $0x100] sm:$0xff] %v788
  %853 = vst [vmem:[#allocation2 + $0x108] sm:$0xff] %v789
  %854 = vst [vmem:[#allocation2 + $0x110] sm:$0xff] %v790
  %855 = vst [vmem:[#allocation2 + $0x118] sm:$0xff] %v791
  %856 = vst [vmem:[#allocation2 + $0x120] sm:$0xff] %v792
  %857 = vst [vmem:[#allocation2 + $0x128] sm:$0xff] %v793
  %858 = vst [vmem:[#allocation2 + $0x130] sm:$0xff] %v794
  %859 = vst [vmem:[#allocation2 + $0x138] sm:$0xff] %v795
  %860 = vst [vmem:[#allocation2 + $0x140] sm:$0xff] %v796
  %861 = vst [vmem:[#allocation2 + $0x148] sm:$0xff] %v797
  %862 = vst [vmem:[#allocation2 + $0x150] sm:$0xff] %v798
  %863 = vst [vmem:[#allocation2 + $0x158] sm:$0xff] %v799
  %864 = vst [vmem:[#allocation2 + $0x160] sm:$0xff] %v800
  %865 = vst [vmem:[#allocation2 + $0x168] sm:$0xff] %v801
  %866 = vst [vmem:[#allocation2 + $0x170] sm:$0xff] %v802
  %867 = vst [vmem:[#allocation2 + $0x178] sm:$0xff] %v803
  %868 = vst [vmem:[#allocation2 + $0x180] sm:$0xff] %v804
  %869 = vst [vmem:[#allocation2 + $0x188] sm:$0xff] %v805
  %870 = vst [vmem:[#allocation2 + $0x190] sm:$0xff] %v806
  %871 = vst [vmem:[#allocation2 + $0x198] sm:$0xff] %v807
  %872 = vst [vmem:[#allocation2 + $0x1a0] sm:$0xff] %v808
  %873 = vst [vmem:[#allocation2 + $0x1a8] sm:$0xff] %v809
  %874 = vst [vmem:[#allocation2 + $0x1b0] sm:$0xff] %v810
  %875 = vst [vmem:[#allocation2 + $0x1b8] sm:$0xff] %v811
  %876 = vst [vmem:[#allocation2 + $0x1c0] sm:$0xff] %v812
  %877 = vst [vmem:[#allocation2 + $0x1c8] sm:$0xff] %v813
  %878 = vst [vmem:[#allocation2 + $0x1d0] sm:$0xff] %v814
  %879 = vst [vmem:[#allocation2 + $0x1d8] sm:$0xff] %v815
  %880 = vst [vmem:[#allocation2 + $0x1e0] sm:$0xff] %v816
  %881 = vst [vmem:[#allocation2 + $0x1e8] sm:$0xff] %v817
  %882 = vst [vmem:[#allocation2 + $0x1f0] sm:$0xff] %v818
  %883 = vst [vmem:[#allocation2 + $0x1f8] sm:$0xff] %v819
  // Predicated region
  $region14: #{gand_forward.9} parent=0 // pred_check
    %p884 = pneg %p15
  $region15: #{gand_forward.9} parent=0 // pred_check_branch
    %886 = sbr.rel (%p884) target = $region17
  $region16: #{gand_forward.9} parent=0 // pred_region
    %v887 = vld [vmem:[#allocation2] sm:$0xff]
    %v888 = vld [vmem:[#allocation2 + $0x8] sm:$0xff]
    %v889 = vld [vmem:[#allocation2 + $0x10] sm:$0xff]
    %v890 = vld [vmem:[#allocation2 + $0x18] sm:$0xff]
    %v891 = vld [vmem:[#allocation2 + $0x20] sm:$0xff]
    %v892 = vld [vmem:[#allocation2 + $0x28] sm:$0xff]
    %v893 = vld [vmem:[#allocation2 + $0x30] sm:$0xff]
    %v894 = vld [vmem:[#allocation2 + $0x38] sm:$0xff]
    %v895 = vld [vmem:[#allocation2 + $0x40] sm:$0xff]
    %v896 = vld [vmem:[#allocation2 + $0x48] sm:$0xff]
    %v897 = vld [vmem:[#allocation2 + $0x50] sm:$0xff]
    %v898 = vld [vmem:[#allocation2 + $0x58] sm:$0xff]
    %v899 = vld [vmem:[#allocation2 + $0x60] sm:$0xff]
    %v900 = vld [vmem:[#allocation2 + $0x68] sm:$0xff]
    %v901 = vld [vmem:[#allocation2 + $0x70] sm:$0xff]
    %v902 = vld [vmem:[#allocation2 + $0x78] sm:$0xff]
    %v903 = vld [vmem:[#allocation2 + $0x80] sm:$0xff]
    %v904 = vld [vmem:[#allocation2 + $0x88] sm:$0xff]
    %v905 = vld [vmem:[#allocation2 + $0x90] sm:$0xff]
    %v906 = vld [vmem:[#allocation2 + $0x98] sm:$0xff]
    %v907 = vld [vmem:[#allocation2 + $0xa0] sm:$0xff]
    %v908 = vld [vmem:[#allocation2 + $0xa8] sm:$0xff]
    %v909 = vld [vmem:[#allocation2 + $0xb0] sm:$0xff]
    %v910 = vld [vmem:[#allocation2 + $0xb8] sm:$0xff]
    %v911 = vld [vmem:[#allocation2 + $0xc0] sm:$0xff]
    %v912 = vld [vmem:[#allocation2 + $0xc8] sm:$0xff]
    %v913 = vld [vmem:[#allocation2 + $0xd0] sm:$0xff]
    %v914 = vld [vmem:[#allocation2 + $0xd8] sm:$0xff]
    %v915 = vld [vmem:[#allocation2 + $0xe0] sm:$0xff]
    %v916 = vld [vmem:[#allocation2 + $0xe8] sm:$0xff]
    %v917 = vld [vmem:[#allocation2 + $0xf0] sm:$0xff]
    %v918 = vld [vmem:[#allocation2 + $0xf8] sm:$0xff]
    %v919 = vld [vmem:[#allocation2 + $0x100] sm:$0xff]
    %v920 = vld [vmem:[#allocation2 + $0x108] sm:$0xff]
    %v921 = vld [vmem:[#allocation2 + $0x110] sm:$0xff]
    %v922 = vld [vmem:[#allocation2 + $0x118] sm:$0xff]
    %v923 = vld [vmem:[#allocation2 + $0x120] sm:$0xff]
    %v924 = vld [vmem:[#allocation2 + $0x128] sm:$0xff]
    %v925 = vld [vmem:[#allocation2 + $0x130] sm:$0xff]
    %v926 = vld [vmem:[#allocation2 + $0x138] sm:$0xff]
    %v927 = vld [vmem:[#allocation2 + $0x140] sm:$0xff]
    %v928 = vld [vmem:[#allocation2 + $0x148] sm:$0xff]
    %v929 = vld [vmem:[#allocation2 + $0x150] sm:$0xff]
    %v930 = vld [vmem:[#allocation2 + $0x158] sm:$0xff]
    %v931 = vld [vmem:[#allocation2 + $0x160] sm:$0xff]
    %v932 = vld [vmem:[#allocation2 + $0x168] sm:$0xff]
    %v933 = vld [vmem:[#allocation2 + $0x170] sm:$0xff]
    %v934 = vld [vmem:[#allocation2 + $0x178] sm:$0xff]
    %v935 = vld [vmem:[#allocation2 + $0x180] sm:$0xff]
    %v936 = vld [vmem:[#allocation2 + $0x188] sm:$0xff]
    %v937 = vld [vmem:[#allocation2 + $0x190] sm:$0xff]
    %v938 = vld [vmem:[#allocation2 + $0x198] sm:$0xff]
    %v939 = vld [vmem:[#allocation2 + $0x1a0] sm:$0xff]
    %v940 = vld [vmem:[#allocation2 + $0x1a8] sm:$0xff]
    %v941 = vld [vmem:[#allocation2 + $0x1b0] sm:$0xff]
    %v942 = vld [vmem:[#allocation2 + $0x1b8] sm:$0xff]
    %v943 = vld [vmem:[#allocation2 + $0x1c0] sm:$0xff]
    %v944 = vld [vmem:[#allocation2 + $0x1c8] sm:$0xff]
    %v945 = vld [vmem:[#allocation2 + $0x1d0] sm:$0xff]
    %v946 = vld [vmem:[#allocation2 + $0x1d8] sm:$0xff]
    %v947 = vld [vmem:[#allocation2 + $0x1e0] sm:$0xff]
    %v948 = vld [vmem:[#allocation2 + $0x1e8] sm:$0xff]
    %v949 = vld [vmem:[#allocation2 + $0x1f0] sm:$0xff]
    %v950 = vld [vmem:[#allocation2 + $0x1f8] sm:$0xff]
    %v951 = vadd.f32 %v887, %v888
    %v952 = vadd.f32 %v951, %v889
    %v953 = vadd.f32 %v952, %v890
    %v954 = vadd.f32 %v953, %v891
    %v955 = vadd.f32 %v954, %v892
    %v956 = vadd.f32 %v955, %v893
    %v957 = vadd.f32 %v956, %v894
    %v958 = vadd.f32 %v957, %v895
    %v959 = vadd.f32 %v958, %v896
    %v960 = vadd.f32 %v959, %v897
    %v961 = vadd.f32 %v960, %v898
    %v962 = vadd.f32 %v961, %v899
    %v963 = vadd.f32 %v962, %v900
    %v964 = vadd.f32 %v963, %v901
    %v965 = vadd.f32 %v964, %v902
    %v966 = vadd.f32 %v965, %v903
    %v967 = vadd.f32 %v966, %v904
    %v968 = vadd.f32 %v967, %v905
    %v969 = vadd.f32 %v968, %v906
    %v970 = vadd.f32 %v969, %v907
    %v971 = vadd.f32 %v970, %v908
    %v972 = vadd.f32 %v971, %v909
    %v973 = vadd.f32 %v972, %v910
    %v974 = vadd.f32 %v973, %v911
    %v975 = vadd.f32 %v974, %v912
    %v976 = vadd.f32 %v975, %v913
    %v977 = vadd.f32 %v976, %v914
    %v978 = vadd.f32 %v977, %v915
    %v979 = vadd.f32 %v978, %v916
    %v980 = vadd.f32 %v979, %v917
    %v981 = vadd.f32 %v980, %v918
    %v982 = vadd.f32 %v981, %v919
    %v983 = vadd.f32 %v982, %v920
    %v984 = vadd.f32 %v983, %v921
    %v985 = vadd.f32 %v984, %v922
    %v986 = vadd.f32 %v985, %v923
    %v987 = vadd.f32 %v986, %v924
    %v988 = vadd.f32 %v987, %v925
    %v989 = vadd.f32 %v988, %v926
    %v990 = vadd.f32 %v989, %v927
    %v991 = vadd.f32 %v990, %v928
    %v992 = vadd.f32 %v991, %v929
    %v993 = vadd.f32 %v992, %v930
    %v994 = vadd.f32 %v993, %v931
    %v995 = vadd.f32 %v994, %v932
    %v996 = vadd.f32 %v995, %v933
    %v997 = vadd.f32 %v996, %v934
    %v998 = vadd.f32 %v997, %v935
    %v999 = vadd.f32 %v998, %v936
    %v1000 = vadd.f32 %v999, %v937
    %v1001 = vadd.f32 %v1000, %v938
    %v1002 = vadd.f32 %v1001, %v939
    %v1003 = vadd.f32 %v1002, %v940
    %v1004 = vadd.f32 %v1003, %v941
    %v1005 = vadd.f32 %v1004, %v942
    %v1006 = vadd.f32 %v1005, %v943
    %v1007 = vadd.f32 %v1006, %v944
    %v1008 = vadd.f32 %v1007, %v945
    %v1009 = vadd.f32 %v1008, %v946
    %v1010 = vadd.f32 %v1009, %v947
    %v1011 = vadd.f32 %v1010, %v948
    %v1012 = vadd.f32 %v1011, %v949
    %v1013 = vadd.f32 %v1012, %v950
    %v1014 = vrot.slane %v1013, 4
    %v1015 = vadd.f32 %v1013, %v1014
    %v1016 = vrot.slane %v1015, 2
    %v1017 = vadd.f32 %v1015, %v1016
    %v1018 = vrot.slane %v1017, 1
    %v1019 = vadd.f32 %v1017, %v1018
    %v1020 = vmul.f32 %v887, %v887
    %v1021 = vmul.f32 %v888, %v888
    %v1022 = vmul.f32 %v889, %v889
    %v1023 = vmul.f32 %v890, %v890
    %v1024 = vmul.f32 %v891, %v891
    %v1025 = vmul.f32 %v892, %v892
    %v1026 = vmul.f32 %v893, %v893
    %v1027 = vmul.f32 %v894, %v894
    %v1028 = vmul.f32 %v895, %v895
    %v1029 = vmul.f32 %v896, %v896
    %v1030 = vmul.f32 %v897, %v897
    %v1031 = vmul.f32 %v898, %v898
    %v1032 = vmul.f32 %v899, %v899
    %v1033 = vmul.f32 %v900, %v900
    %v1034 = vmul.f32 %v901, %v901
    %v1035 = vmul.f32 %v902, %v902
    %v1036 = vmul.f32 %v903, %v903
    %v1037 = vmul.f32 %v904, %v904
    %v1038 = vmul.f32 %v905, %v905
    %v1039 = vmul.f32 %v906, %v906
    %v1040 = vmul.f32 %v907, %v907
    %v1041 = vmul.f32 %v908, %v908
    %v1042 = vmul.f32 %v909, %v909
    %v1043 = vmul.f32 %v910, %v910
    %v1044 = vmul.f32 %v911, %v911
    %v1045 = vmul.f32 %v912, %v912
    %v1046 = vmul.f32 %v913, %v913
    %v1047 = vmul.f32 %v914, %v914
    %v1048 = vmul.f32 %v915, %v915
    %v1049 = vmul.f32 %v916, %v916
    %v1050 = vmul.f32 %v917, %v917
    %v1051 = vmul.f32 %v918, %v918
    %v1052 = vmul.f32 %v919, %v919
    %v1053 = vmul.f32 %v920, %v920
    %v1054 = vmul.f32 %v921, %v921
    %v1055 = vmul.f32 %v922, %v922
    %v1056 = vmul.f32 %v923, %v923
    %v1057 = vmul.f32 %v924, %v924
    %v1058 = vmul.f32 %v925, %v925
    %v1059 = vmul.f32 %v926, %v926
    %v1060 = vmul.f32 %v927, %v927
    %v1061 = vmul.f32 %v928, %v928
    %v1062 = vmul.f32 %v929, %v929
    %v1063 = vmul.f32 %v930, %v930
    %v1064 = vmul.f32 %v931, %v931
    %v1065 = vmul.f32 %v932, %v932
    %v1066 = vmul.f32 %v933, %v933
    %v1067 = vmul.f32 %v934, %v934
    %v1068 = vmul.f32 %v935, %v935
    %v1069 = vmul.f32 %v936, %v936
    %v1070 = vmul.f32 %v937, %v937
    %v1071 = vmul.f32 %v938, %v938
    %v1072 = vmul.f32 %v939, %v939
    %v1073 = vmul.f32 %v940, %v940
    %v1074 = vmul.f32 %v941, %v941
    %v1075 = vmul.f32 %v942, %v942
    %v1076 = vmul.f32 %v943, %v943
    %v1077 = vmul.f32 %v944, %v944
    %v1078 = vmul.f32 %v945, %v945
    %v1079 = vmul.f32 %v946, %v946
    %v1080 = vmul.f32 %v947, %v947
    %v1081 = vmul.f32 %v948, %v948
    %v1082 = vmul.f32 %v949, %v949
    %v1083 = vmul.f32 %v950, %v950
    %v1084 = vadd.f32 %v1020, %v1021
    %v1085 = vadd.f32 %v1084, %v1022
    %v1086 = vadd.f32 %v1085, %v1023
    %v1087 = vadd.f32 %v1086, %v1024
    %v1088 = vadd.f32 %v1087, %v1025
    %v1089 = vadd.f32 %v1088, %v1026
    %v1090 = vadd.f32 %v1089, %v1027
    %v1091 = vadd.f32 %v1090, %v1028
    %v1092 = vadd.f32 %v1091, %v1029
    %v1093 = vadd.f32 %v1092, %v1030
    %v1094 = vadd.f32 %v1093, %v1031
    %v1095 = vadd.f32 %v1094, %v1032
    %v1096 = vadd.f32 %v1095, %v1033
    %v1097 = vadd.f32 %v1096, %v1034
    %v1098 = vadd.f32 %v1097, %v1035
    %v1099 = vadd.f32 %v1098, %v1036
    %v1100 = vadd.f32 %v1099, %v1037
    %v1101 = vadd.f32 %v1100, %v1038
    %v1102 = vadd.f32 %v1101, %v1039
    %v1103 = vadd.f32 %v1102, %v1040
    %v1104 = vadd.f32 %v1103, %v1041
    %v1105 = vadd.f32 %v1104, %v1042
    %v1106 = vadd.f32 %v1105, %v1043
    %v1107 = vadd.f32 %v1106, %v1044
    %v1108 = vadd.f32 %v1107, %v1045
    %v1109 = vadd.f32 %v1108, %v1046
    %v1110 = vadd.f32 %v1109, %v1047
    %v1111 = vadd.f32 %v1110, %v1048
    %v1112 = vadd.f32 %v1111, %v1049
    %v1113 = vadd.f32 %v1112, %v1050
    %v1114 = vadd.f32 %v1113, %v1051
    %v1115 = vadd.f32 %v1114, %v1052
    %v1116 = vadd.f32 %v1115, %v1053
    %v1117 = vadd.f32 %v1116, %v1054
    %v1118 = vadd.f32 %v1117, %v1055
    %v1119 = vadd.f32 %v1118, %v1056
    %v1120 = vadd.f32 %v1119, %v1057
    %v1121 = vadd.f32 %v1120, %v1058
    %v1122 = vadd.f32 %v1121, %v1059
    %v1123 = vadd.f32 %v1122, %v1060
    %v1124 = vadd.f32 %v1123, %v1061
    %v1125 = vadd.f32 %v1124, %v1062
    %v1126 = vadd.f32 %v1125, %v1063
    %v1127 = vadd.f32 %v1126, %v1064
    %v1128 = vadd.f32 %v1127, %v1065
    %v1129 = vadd.f32 %v1128, %v1066
    %v1130 = vadd.f32 %v1129, %v1067
    %v1131 = vadd.f32 %v1130, %v1068
    %v1132 = vadd.f32 %v1131, %v1069
    %v1133 = vadd.f32 %v1132, %v1070
    %v1134 = vadd.f32 %v1133, %v1071
    %v1135 = vadd.f32 %v1134, %v1072
    %v1136 = vadd.f32 %v1135, %v1073
    %v1137 = vadd.f32 %v1136, %v1074
    %v1138 = vadd.f32 %v1137, %v1075
    %v1139 = vadd.f32 %v1138, %v1076
    %v1140 = vadd.f32 %v1139, %v1077
    %v1141 = vadd.f32 %v1140, %v1078
    %v1142 = vadd.f32 %v1141, %v1079
    %v1143 = vadd.f32 %v1142, %v1080
    %v1144 = vadd.f32 %v1143, %v1081
    %v1145 = vadd.f32 %v1144, %v1082
    %v1146 = vadd.f32 %v1145, %v1083
    %v1147 = vrot.slane %v1146, 4
    %v1148 = vadd.f32 %v1146, %v1147
    %v1149 = vrot.slane %v1148, 2
    %v1150 = vadd.f32 %v1148, %v1149
    %v1151 = vrot.slane %v1150, 1
    %v1152 = vadd.f32 %v1150, %v1151
    %1153 = vst [vmem:[%s3] sm:$0xff] %v1019
    %1154 = vst [vmem:[%s4] sm:$0xff] %v1152
    %v1155 = vpack.c.bf16 %v888, %v887
    %v1156 = vpack.c.bf16 %v890, %v889
    %v1157 = vpack.c.bf16 %v892, %v891
    %v1158 = vpack.c.bf16 %v894, %v893
    %v1159 = vpack.c.bf16 %v896, %v895
    %v1160 = vpack.c.bf16 %v898, %v897
    %v1161 = vpack.c.bf16 %v900, %v899
    %v1162 = vpack.c.bf16 %v902, %v901
    %v1163 = vpack.c.bf16 %v904, %v903
    %v1164 = vpack.c.bf16 %v906, %v905
    %v1165 = vpack.c.bf16 %v908, %v907
    %v1166 = vpack.c.bf16 %v910, %v909
    %v1167 = vpack.c.bf16 %v912, %v911
    %v1168 = vpack.c.bf16 %v914, %v913
    %v1169 = vpack.c.bf16 %v916, %v915
    %v1170 = vpack.c.bf16 %v918, %v917
    %v1171 = vpack.c.bf16 %v920, %v919
    %v1172 = vpack.c.bf16 %v922, %v921
    %v1173 = vpack.c.bf16 %v924, %v923
    %v1174 = vpack.c.bf16 %v926, %v925
    %v1175 = vpack.c.bf16 %v928, %v927
    %v1176 = vpack.c.bf16 %v930, %v929
    %v1177 = vpack.c.bf16 %v932, %v931
    %v1178 = vpack.c.bf16 %v934, %v933
    %v1179 = vpack.c.bf16 %v936, %v935
    %v1180 = vpack.c.bf16 %v938, %v937
    %v1181 = vpack.c.bf16 %v940, %v939
    %v1182 = vpack.c.bf16 %v942, %v941
    %v1183 = vpack.c.bf16 %v944, %v943
    %v1184 = vpack.c.bf16 %v946, %v945
    %v1185 = vpack.c.bf16 %v948, %v947
    %v1186 = vpack.c.bf16 %v950, %v949
    %v1219 = vunpack.c.l.b16 %v1155
    %v1220 = vunpack.c.h.b16 %v1155
    %v1221 = vunpack.c.l.b16 %v1156
    %v1222 = vunpack.c.h.b16 %v1156
    %v1223 = vunpack.c.l.b16 %v1157
    %v1224 = vunpack.c.h.b16 %v1157
    %v1225 = vunpack.c.l.b16 %v1158
    %v1226 = vunpack.c.h.b16 %v1158
    %v1227 = vunpack.c.l.b16 %v1159
    %v1228 = vunpack.c.h.b16 %v1159
    %v1229 = vunpack.c.l.b16 %v1160
    %v1230 = vunpack.c.h.b16 %v1160
    %v1231 = vunpack.c.l.b16 %v1161
    %v1232 = vunpack.c.h.b16 %v1161
    %v1233 = vunpack.c.l.b16 %v1162
    %v1234 = vunpack.c.h.b16 %v1162
    %v1235 = vunpack.c.l.b16 %v1163
    %v1236 = vunpack.c.h.b16 %v1163
    %v1237 = vunpack.c.l.b16 %v1164
    %v1238 = vunpack.c.h.b16 %v1164
    %v1239 = vunpack.c.l.b16 %v1165
    %v1240 = vunpack.c.h.b16 %v1165
    %v1241 = vunpack.c.l.b16 %v1166
    %v1242 = vunpack.c.h.b16 %v1166
    %v1243 = vunpack.c.l.b16 %v1167
    %v1244 = vunpack.c.h.b16 %v1167
    %v1245 = vunpack.c.l.b16 %v1168
    %v1246 = vunpack.c.h.b16 %v1168
    %v1247 = vunpack.c.l.b16 %v1169
    %v1248 = vunpack.c.h.b16 %v1169
    %v1249 = vunpack.c.l.b16 %v1170
    %v1250 = vunpack.c.h.b16 %v1170
    %v1251 = vunpack.c.l.b16 %v1171
    %v1252 = vunpack.c.h.b16 %v1171
    %v1253 = vunpack.c.l.b16 %v1172
    %v1254 = vunpack.c.h.b16 %v1172
    %v1255 = vunpack.c.l.b16 %v1173
    %v1256 = vunpack.c.h.b16 %v1173
    %v1257 = vunpack.c.l.b16 %v1174
    %v1258 = vunpack.c.h.b16 %v1174
    %v1259 = vunpack.c.l.b16 %v1175
    %v1260 = vunpack.c.h.b16 %v1175
    %v1261 = vunpack.c.l.b16 %v1176
    %v1262 = vunpack.c.h.b16 %v1176
    %v1263 = vunpack.c.l.b16 %v1177
    %v1264 = vunpack.c.h.b16 %v1177
    %v1265 = vunpack.c.l.b16 %v1178
    %v1266 = vunpack.c.h.b16 %v1178
    %v1267 = vunpack.c.l.b16 %v1179
    %v1268 = vunpack.c.h.b16 %v1179
    %v1269 = vunpack.c.l.b16 %v1180
    %v1270 = vunpack.c.h.b16 %v1180
    %v1271 = vunpack.c.l.b16 %v1181
    %v1272 = vunpack.c.h.b16 %v1181
    %v1273 = vunpack.c.l.b16 %v1182
    %v1274 = vunpack.c.h.b16 %v1182
    %v1275 = vunpack.c.l.b16 %v1183
    %v1276 = vunpack.c.h.b16 %v1183
    %v1277 = vunpack.c.l.b16 %v1184
    %v1278 = vunpack.c.h.b16 %v1184
    %v1279 = vunpack.c.l.b16 %v1185
    %v1280 = vunpack.c.h.b16 %v1185
    %v1281 = vunpack.c.l.b16 %v1186
    %v1282 = vunpack.c.h.b16 %v1186
    %v1283 = vpack.c.b16 %v1219, %v1219
    %v1284 = vpack.c.b16 %v1220, %v1220
    %v1285 = vpack.c.b16 %v1221, %v1221
    %v1286 = vpack.c.b16 %v1222, %v1222
    %v1287 = vpack.c.b16 %v1223, %v1223
    %v1288 = vpack.c.b16 %v1224, %v1224
    %v1289 = vpack.c.b16 %v1225, %v1225
    %v1290 = vpack.c.b16 %v1226, %v1226
    %v1291 = vpack.c.b16 %v1227, %v1227
    %v1292 = vpack.c.b16 %v1228, %v1228
    %v1293 = vpack.c.b16 %v1229, %v1229
    %v1294 = vpack.c.b16 %v1230, %v1230
    %v1295 = vpack.c.b16 %v1231, %v1231
    %v1296 = vpack.c.b16 %v1232, %v1232
    %v1297 = vpack.c.b16 %v1233, %v1233
    %v1298 = vpack.c.b16 %v1234, %v1234
    %v1299 = vpack.c.b16 %v1235, %v1235
    %v1300 = vpack.c.b16 %v1236, %v1236
    %v1301 = vpack.c.b16 %v1237, %v1237
    %v1302 = vpack.c.b16 %v1238, %v1238
    %v1303 = vpack.c.b16 %v1239, %v1239
    %v1304 = vpack.c.b16 %v1240, %v1240
    %v1305 = vpack.c.b16 %v1241, %v1241
    %v1306 = vpack.c.b16 %v1242, %v1242
    %v1307 = vpack.c.b16 %v1243, %v1243
    %v1308 = vpack.c.b16 %v1244, %v1244
    %v1309 = vpack.c.b16 %v1245, %v1245
    %v1310 = vpack.c.b16 %v1246, %v1246
    %v1311 = vpack.c.b16 %v1247, %v1247
    %v1312 = vpack.c.b16 %v1248, %v1248
    %v1313 = vpack.c.b16 %v1249, %v1249
    %v1314 = vpack.c.b16 %v1250, %v1250
    %v1315 = vpack.c.b16 %v1251, %v1251
    %v1316 = vpack.c.b16 %v1252, %v1252
    %v1317 = vpack.c.b16 %v1253, %v1253
    %v1318 = vpack.c.b16 %v1254, %v1254
    %v1319 = vpack.c.b16 %v1255, %v1255
    %v1320 = vpack.c.b16 %v1256, %v1256
    %v1321 = vpack.c.b16 %v1257, %v1257
    %v1322 = vpack.c.b16 %v1258, %v1258
    %v1323 = vpack.c.b16 %v1259, %v1259
    %v1324 = vpack.c.b16 %v1260, %v1260
    %v1325 = vpack.c.b16 %v1261, %v1261
    %v1326 = vpack.c.b16 %v1262, %v1262
    %v1327 = vpack.c.b16 %v1263, %v1263
    %v1328 = vpack.c.b16 %v1264, %v1264
    %v1329 = vpack.c.b16 %v1265, %v1265
    %v1330 = vpack.c.b16 %v1266, %v1266
    %v1331 = vpack.c.b16 %v1267, %v1267
    %v1332 = vpack.c.b16 %v1268, %v1268
    %v1333 = vpack.c.b16 %v1269, %v1269
    %v1334 = vpack.c.b16 %v1270, %v1270
    %v1335 = vpack.c.b16 %v1271, %v1271
    %v1336 = vpack.c.b16 %v1272, %v1272
    %v1337 = vpack.c.b16 %v1273, %v1273
    %v1338 = vpack.c.b16 %v1274, %v1274
    %v1339 = vpack.c.b16 %v1275, %v1275
    %v1340 = vpack.c.b16 %v1276, %v1276
    %v1341 = vpack.c.b16 %v1277, %v1277
    %v1342 = vpack.c.b16 %v1278, %v1278
    %v1343 = vpack.c.b16 %v1279, %v1279
    %v1344 = vpack.c.b16 %v1280, %v1280
    %v1345 = vpack.c.b16 %v1281, %v1281
    %v1346 = vpack.c.b16 %v1282, %v1282
    %1411 = vst [vmem:[%s2] sm:$0xf] %v1283
    %1412 = vst [vmem:[%s2 + $0x4] sm:$0xf] %v1284
    %1413 = vst [vmem:[%s2 + $0x8] sm:$0xf] %v1285
    %1414 = vst [vmem:[%s2 + $0xc] sm:$0xf] %v1286
    %1415 = vst [vmem:[%s2 + $0x10] sm:$0xf] %v1287
    %1416 = vst [vmem:[%s2 + $0x14] sm:$0xf] %v1288
    %1417 = vst [vmem:[%s2 + $0x18] sm:$0xf] %v1289
    %1418 = vst [vmem:[%s2 + $0x1c] sm:$0xf] %v1290
    %1419 = vst [vmem:[%s2 + $0x20] sm:$0xf] %v1291
    %1420 = vst [vmem:[%s2 + $0x24] sm:$0xf] %v1292
    %1421 = vst [vmem:[%s2 + $0x28] sm:$0xf] %v1293
    %1422 = vst [vmem:[%s2 + $0x2c] sm:$0xf] %v1294
    %1423 = vst [vmem:[%s2 + $0x30] sm:$0xf] %v1295
    %1424 = vst [vmem:[%s2 + $0x34] sm:$0xf] %v1296
    %1425 = vst [vmem:[%s2 + $0x38] sm:$0xf] %v1297
    %1426 = vst [vmem:[%s2 + $0x3c] sm:$0xf] %v1298
    %1427 = vst [vmem:[%s2 + $0x40] sm:$0xf] %v1299
    %1428 = vst [vmem:[%s2 + $0x44] sm:$0xf] %v1300
    %1429 = vst [vmem:[%s2 + $0x48] sm:$0xf] %v1301
    %1430 = vst [vmem:[%s2 + $0x4c] sm:$0xf] %v1302
    %1431 = vst [vmem:[%s2 + $0x50] sm:$0xf] %v1303
    %1432 = vst [vmem:[%s2 + $0x54] sm:$0xf] %v1304
    %1433 = vst [vmem:[%s2 + $0x58] sm:$0xf] %v1305
    %1434 = vst [vmem:[%s2 + $0x5c] sm:$0xf] %v1306
    %1435 = vst [vmem:[%s2 + $0x60] sm:$0xf] %v1307
    %1436 = vst [vmem:[%s2 + $0x64] sm:$0xf] %v1308
    %1437 = vst [vmem:[%s2 + $0x68] sm:$0xf] %v1309
    %1438 = vst [vmem:[%s2 + $0x6c] sm:$0xf] %v1310
    %1439 = vst [vmem:[%s2 + $0x70] sm:$0xf] %v1311
    %1440 = vst [vmem:[%s2 + $0x74] sm:$0xf] %v1312
    %1441 = vst [vmem:[%s2 + $0x78] sm:$0xf] %v1313
    %1442 = vst [vmem:[%s2 + $0x7c] sm:$0xf] %v1314
    %1443 = vst [vmem:[%s2 + $0x80] sm:$0xf] %v1315
    %1444 = vst [vmem:[%s2 + $0x84] sm:$0xf] %v1316
    %1445 = vst [vmem:[%s2 + $0x88] sm:$0xf] %v1317
    %1446 = vst [vmem:[%s2 + $0x8c] sm:$0xf] %v1318
    %1447 = vst [vmem:[%s2 + $0x90] sm:$0xf] %v1319
    %1448 = vst [vmem:[%s2 + $0x94] sm:$0xf] %v1320
    %1449 = vst [vmem:[%s2 + $0x98] sm:$0xf] %v1321
    %1450 = vst [vmem:[%s2 + $0x9c] sm:$0xf] %v1322
    %1451 = vst [vmem:[%s2 + $0xa0] sm:$0xf] %v1323
    %1452 = vst [vmem:[%s2 + $0xa4] sm:$0xf] %v1324
    %1453 = vst [vmem:[%s2 + $0xa8] sm:$0xf] %v1325
    %1454 = vst [vmem:[%s2 + $0xac] sm:$0xf] %v1326
    %1455 = vst [vmem:[%s2 + $0xb0] sm:$0xf] %v1327
    %1456 = vst [vmem:[%s2 + $0xb4] sm:$0xf] %v1328
    %1457 = vst [vmem:[%s2 + $0xb8] sm:$0xf] %v1329
    %1458 = vst [vmem:[%s2 + $0xbc] sm:$0xf] %v1330
    %1459 = vst [vmem:[%s2 + $0xc0] sm:$0xf] %v1331
    %1460 = vst [vmem:[%s2 + $0xc4] sm:$0xf] %v1332
    %1461 = vst [vmem:[%s2 + $0xc8] sm:$0xf] %v1333
    %1462 = vst [vmem:[%s2 + $0xcc] sm:$0xf] %v1334
    %1463 = vst [vmem:[%s2 + $0xd0] sm:$0xf] %v1335
    %1464 = vst [vmem:[%s2 + $0xd4] sm:$0xf] %v1336
    %1465 = vst [vmem:[%s2 + $0xd8] sm:$0xf] %v1337
    %1466 = vst [vmem:[%s2 + $0xdc] sm:$0xf] %v1338
    %1467 = vst [vmem:[%s2 + $0xe0] sm:$0xf] %v1339
    %1468 = vst [vmem:[%s2 + $0xe4] sm:$0xf] %v1340
    %1469 = vst [vmem:[%s2 + $0xe8] sm:$0xf] %v1341
    %1470 = vst [vmem:[%s2 + $0xec] sm:$0xf] %v1342
    %1471 = vst [vmem:[%s2 + $0xf0] sm:$0xf] %v1343
    %1472 = vst [vmem:[%s2 + $0xf4] sm:$0xf] %v1344
    %1473 = vst [vmem:[%s2 + $0xf8] sm:$0xf] %v1345
    %1474 = vst [vmem:[%s2 + $0xfc] sm:$0xf] %v1346
  $region17: #{gand_forward.9} parent=0 // pred_fallthru
    _
  // Predicated region
  $region18: #{gand_forward.9} parent=0 // pred_check
    _
  $region19: #{gand_forward.9} parent=0 // pred_check_branch
    %1476 = sbr.rel (0) target = $region21
  $region20: #{gand_forward.9} parent=0 // pred_region
    _
  $region21: #{gand_forward.9} parent=0 // pred_fallthru
    _
  // Predicated region
  $region22: #{gand_forward.9} parent=0 // pred_check
    _
  $region23: #{gand_forward.9} parent=0 // pred_check_branch
    %1478 = sbr.rel (0) target = $region25
  $region24: #{gand_forward.9} parent=0 // pred_region
    _
  $region25: #{gand_forward.9} parent=0 // pred_fallthru
    _
  // Predicated region
  $region26: #{gand_forward.9} parent=0 // pred_check
    _
  $region27: #{gand_forward.9} parent=0 // pred_check_branch
    %1480 = sbr.rel (0) target = $region29
  $region28: #{gand_forward.9} parent=0 // pred_region
    _
  $region29: #{gand_forward.9} parent=0 // pred_fallthru
    _
  // Predicated region
  $region30: #{gand_forward.9} parent=0 // pred_check
    _
  $region31: #{gand_forward.9} parent=0 // pred_check_branch
    %1482 = sbr.rel (0) target = $region33
  $region32: #{gand_forward.9} parent=0 // pred_region
    _
  $region33: #{gand_forward.9} parent=0 // pred_fallthru
    _
  // Predicated region
  $region34: #{gand_forward.9} parent=0 // pred_check
    _
  $region35: #{gand_forward.9} parent=0 // pred_check_branch
    %1484 = sbr.rel (0) target = $region37
  $region36: #{gand_forward.9} parent=0 // pred_region
    _
  $region37: #{gand_forward.9} parent=0 // pred_fallthru
    _
  // Predicated region
  $region38: #{gand_forward.9} parent=0 // pred_check
    _
  $region39: #{gand_forward.9} parent=0 // pred_check_branch
    %1486 = sbr.rel (0) target = $region41
  $region40: #{gand_forward.9} parent=0 // pred_region
    _
  $region41: #{gand_forward.9} parent=0 // pred_fallthru
    _

// kernel: gand_forward.10
$region0: #{gand_forward.10}
  #allocation0 [shape = 'u32[]', space=smem, size = 0x4, offset = 0x4, fixed_abs, tag = 'smem constant byte address 0x4 - core index']
  #allocation1 [shape = 'u32[144,128]{1,0:T(1,128)}', space=vmem, size = 0x12000, scoped, tag = 'internal scratch']
  %s0 = inlined_call_operand.vmem [shape: bf16[512,128], index: 0, kind: input, shape index: {}]
  %s1 = inlined_call_operand.vmem [shape: f32[1,128], index: 1, kind: input, shape index: {}]
  %s2 = inlined_call_operand.vmem [shape: f32[1,128], index: 2, kind: input, shape index: {}]
  %s3 = inlined_call_operand.vmem [shape: bf16[512,128], index: 3, kind: output, shape index: {}]
  %s4 = sld [smem:[#allocation0]]
  $region22: #{gand_forward.10} parent=0
    _
  %s6 = ssub.s32 1, %s4
  %s7 = scalar_select 0, %s6, %s4
  // Predicated region
  $region2: #{gand_forward.10} parent=0 // pred_check
    _
  $region3: #{gand_forward.10} parent=0 // pred_check_branch
    %9 = sbr.rel (0) target = $region5
  $region4: #{gand_forward.10} parent=0 // pred_region
    _
  $region5: #{gand_forward.10} parent=0 // pred_fallthru
    _
  // Predicated region
  $region6: #{gand_forward.10} parent=0 // pred_check
    _
  $region7: #{gand_forward.10} parent=0 // pred_check_branch
    %11 = sbr.rel (0) target = $region9
  $region8: #{gand_forward.10} parent=0 // pred_region
    _
  $region9: #{gand_forward.10} parent=0 // pred_fallthru
    _
  // Predicated region
  $region10: #{gand_forward.10} parent=0 // pred_check
    _
  $region11: #{gand_forward.10} parent=0 // pred_check_branch
    %13 = sbr.rel (0) target = $region13
  $region12: #{gand_forward.10} parent=0 // pred_region
    _
  $region13: #{gand_forward.10} parent=0 // pred_fallthru
    _
  %v14 = vld [vmem:[%s0] sm:$0xf]
  %v15 = vld [vmem:[%s0 + $0x4] sm:$0xf]
  %v16 = vld [vmem:[%s0 + $0x8] sm:$0xf]
  %v17 = vld [vmem:[%s0 + $0xc] sm:$0xf]
  %v18 = vld [vmem:[%s0 + $0x10] sm:$0xf]
  %v19 = vld [vmem:[%s0 + $0x14] sm:$0xf]
  %v20 = vld [vmem:[%s0 + $0x18] sm:$0xf]
  %v21 = vld [vmem:[%s0 + $0x1c] sm:$0xf]
  %v22 = vld [vmem:[%s0 + $0x20] sm:$0xf]
  %v23 = vld [vmem:[%s0 + $0x24] sm:$0xf]
  %v24 = vld [vmem:[%s0 + $0x28] sm:$0xf]
  %v25 = vld [vmem:[%s0 + $0x2c] sm:$0xf]
  %v26 = vld [vmem:[%s0 + $0x30] sm:$0xf]
  %v27 = vld [vmem:[%s0 + $0x34] sm:$0xf]
  %v28 = vld [vmem:[%s0 + $0x38] sm:$0xf]
  %v29 = vld [vmem:[%s0 + $0x3c] sm:$0xf]
  %v30 = vld [vmem:[%s0 + $0x40] sm:$0xf]
  %v31 = vld [vmem:[%s0 + $0x44] sm:$0xf]
  %v32 = vld [vmem:[%s0 + $0x48] sm:$0xf]
  %v33 = vld [vmem:[%s0 + $0x4c] sm:$0xf]
  %v34 = vld [vmem:[%s0 + $0x50] sm:$0xf]
  %v35 = vld [vmem:[%s0 + $0x54] sm:$0xf]
  %v36 = vld [vmem:[%s0 + $0x58] sm:$0xf]
  %v37 = vld [vmem:[%s0 + $0x5c] sm:$0xf]
  %v38 = vld [vmem:[%s0 + $0x60] sm:$0xf]
  %v39 = vld [vmem:[%s0 + $0x64] sm:$0xf]
  %v40 = vld [vmem:[%s0 + $0x68] sm:$0xf]
  %v41 = vld [vmem:[%s0 + $0x6c] sm:$0xf]
  %v42 = vld [vmem:[%s0 + $0x70] sm:$0xf]
  %v43 = vld [vmem:[%s0 + $0x74] sm:$0xf]
  %v44 = vld [vmem:[%s0 + $0x78] sm:$0xf]
  %v45 = vld [vmem:[%s0 + $0x7c] sm:$0xf]
  %v46 = vld [vmem:[%s0 + $0x80] sm:$0xf]
  %v47 = vld [vmem:[%s0 + $0x84] sm:$0xf]
  %v48 = vld [vmem:[%s0 + $0x88] sm:$0xf]
  %v49 = vld [vmem:[%s0 + $0x8c] sm:$0xf]
  %v50 = vld [vmem:[%s0 + $0x90] sm:$0xf]
  %v51 = vld [vmem:[%s0 + $0x94] sm:$0xf]
  %v52 = vld [vmem:[%s0 + $0x98] sm:$0xf]
  %v53 = vld [vmem:[%s0 + $0x9c] sm:$0xf]
  %v54 = vld [vmem:[%s0 + $0xa0] sm:$0xf]
  %v55 = vld [vmem:[%s0 + $0xa4] sm:$0xf]
  %v56 = vld [vmem:[%s0 + $0xa8] sm:$0xf]
  %v57 = vld [vmem:[%s0 + $0xac] sm:$0xf]
  %v58 = vld [vmem:[%s0 + $0xb0] sm:$0xf]
  %v59 = vld [vmem:[%s0 + $0xb4] sm:$0xf]
  %v60 = vld [vmem:[%s0 + $0xb8] sm:$0xf]
  %v61 = vld [vmem:[%s0 + $0xbc] sm:$0xf]
  %v62 = vld [vmem:[%s0 + $0xc0] sm:$0xf]
  %v63 = vld [vmem:[%s0 + $0xc4] sm:$0xf]
  %v64 = vld [vmem:[%s0 + $0xc8] sm:$0xf]
  %v65 = vld [vmem:[%s0 + $0xcc] sm:$0xf]
  %v66 = vld [vmem:[%s0 + $0xd0] sm:$0xf]
  %v67 = vld [vmem:[%s0 + $0xd4] sm:$0xf]
  %v68 = vld [vmem:[%s0 + $0xd8] sm:$0xf]
  %v69 = vld [vmem:[%s0 + $0xdc] sm:$0xf]
  %v70 = vld [vmem:[%s0 + $0xe0] sm:$0xf]
  %v71 = vld [vmem:[%s0 + $0xe4] sm:$0xf]
  %v72 = vld [vmem:[%s0 + $0xe8] sm:$0xf]
  %v73 = vld [vmem:[%s0 + $0xec] sm:$0xf]
  %v74 = vld [vmem:[%s0 + $0xf0] sm:$0xf]
  %v75 = vld [vmem:[%s0 + $0xf4] sm:$0xf]
  %v76 = vld [vmem:[%s0 + $0xf8] sm:$0xf]
  %v77 = vld [vmem:[%s0 + $0xfc] sm:$0xf]
  %v78 = vunpack.c.l.bf16 %v14
  %v79 = vunpack.c.l.bf16 %v15
  %v80 = vunpack.c.l.bf16 %v16
  %v81 = vunpack.c.l.bf16 %v17
  %v82 = vunpack.c.l.bf16 %v18
  %v83 = vunpack.c.l.bf16 %v19
  %v84 = vunpack.c.l.bf16 %v20
  %v85 = vunpack.c.l.bf16 %v21
  %v86 = vunpack.c.l.bf16 %v22
  %v87 = vunpack.c.l.bf16 %v23
  %v88 = vunpack.c.l.bf16 %v24
  %v89 = vunpack.c.l.bf16 %v25
  %v90 = vunpack.c.l.bf16 %v26
  %v91 = vunpack.c.l.bf16 %v27
  %v92 = vunpack.c.l.bf16 %v28
  %v93 = vunpack.c.l.bf16 %v29
  %v94 = vunpack.c.l.bf16 %v30
  %v95 = vunpack.c.l.bf16 %v31
  %v96 = vunpack.c.l.bf16 %v32
  %v97 = vunpack.c.l.bf16 %v33
  %v98 = vunpack.c.l.bf16 %v34
  %v99 = vunpack.c.l.bf16 %v35
  %v100 = vunpack.c.l.bf16 %v36
  %v101 = vunpack.c.l.bf16 %v37
  %v102 = vunpack.c.l.bf16 %v38
  %v103 = vunpack.c.l.bf16 %v39
  %v104 = vunpack.c.l.bf16 %v40
  %v105 = vunpack.c.l.bf16 %v41
  %v106 = vunpack.c.l.bf16 %v42
  %v107 = vunpack.c.l.bf16 %v43
  %v108 = vunpack.c.l.bf16 %v44
  %v109 = vunpack.c.l.bf16 %v45
  %v110 = vunpack.c.l.bf16 %v46
  %v111 = vunpack.c.l.bf16 %v47
  %v112 = vunpack.c.l.bf16 %v48
  %v113 = vunpack.c.l.bf16 %v49
  %v114 = vunpack.c.l.bf16 %v50
  %v115 = vunpack.c.l.bf16 %v51
  %v116 = vunpack.c.l.bf16 %v52
  %v117 = vunpack.c.l.bf16 %v53
  %v118 = vunpack.c.l.bf16 %v54
  %v119 = vunpack.c.l.bf16 %v55
  %v120 = vunpack.c.l.bf16 %v56
  %v121 = vunpack.c.l.bf16 %v57
  %v122 = vunpack.c.l.bf16 %v58
  %v123 = vunpack.c.l.bf16 %v59
  %v124 = vunpack.c.l.bf16 %v60
  %v125 = vunpack.c.l.bf16 %v61
  %v126 = vunpack.c.l.bf16 %v62
  %v127 = vunpack.c.l.bf16 %v63
  %v128 = vunpack.c.l.bf16 %v64
  %v129 = vunpack.c.l.bf16 %v65
  %v130 = vunpack.c.l.bf16 %v66
  %v131 = vunpack.c.l.bf16 %v67
  %v132 = vunpack.c.l.bf16 %v68
  %v133 = vunpack.c.l.bf16 %v69
  %v134 = vunpack.c.l.bf16 %v70
  %v135 = vunpack.c.l.bf16 %v71
  %v136 = vunpack.c.l.bf16 %v72
  %v137 = vunpack.c.l.bf16 %v73
  %v138 = vunpack.c.l.bf16 %v74
  %v139 = vunpack.c.l.bf16 %v75
  %v140 = vunpack.c.l.bf16 %v76
  %v141 = vunpack.c.l.bf16 %v77
  %v142 = vld [vmem:[%s1] sm:$0x1]
  %v144 = vlaneseq
  %v145 = vshrl.u32 %v144, 7
  %v146 = vsub.s32 0, %v145
  %v147 = vrot.slane %v142, %v146
  %v149 = vmul.f32 %v78, %v147
  %v150 = vmul.f32 %v79, %v147
  %v151 = vmul.f32 %v80, %v147
  %v152 = vmul.f32 %v81, %v147
  %v153 = vmul.f32 %v82, %v147
  %v154 = vmul.f32 %v83, %v147
  %v155 = vmul.f32 %v84, %v147
  %v156 = vmul.f32 %v85, %v147
  %v157 = vmul.f32 %v86, %v147
  %v158 = vmul.f32 %v87, %v147
  %v159 = vmul.f32 %v88, %v147
  %v160 = vmul.f32 %v89, %v147
  %v161 = vmul.f32 %v90, %v147
  %v162 = vmul.f32 %v91, %v147
  %v163 = vmul.f32 %v92, %v147
  %v164 = vmul.f32 %v93, %v147
  %v165 = vmul.f32 %v94, %v147
  %v166 = vmul.f32 %v95, %v147
  %v167 = vmul.f32 %v96, %v147
  %v168 = vmul.f32 %v97, %v147
  %v169 = vmul.f32 %v98, %v147
  %v170 = vmul.f32 %v99, %v147
  %v171 = vmul.f32 %v100, %v147
  %v172 = vmul.f32 %v101, %v147
  %v173 = vmul.f32 %v102, %v147
  %v174 = vmul.f32 %v103, %v147
  %v175 = vmul.f32 %v104, %v147
  %v176 = vmul.f32 %v105, %v147
  %v177 = vmul.f32 %v106, %v147
  %v178 = vmul.f32 %v107, %v147
  %v179 = vmul.f32 %v108, %v147
  %v180 = vmul.f32 %v109, %v147
  %v181 = vmul.f32 %v110, %v147
  %v182 = vmul.f32 %v111, %v147
  %v183 = vmul.f32 %v112, %v147
  %v184 = vmul.f32 %v113, %v147
  %v185 = vmul.f32 %v114, %v147
  %v186 = vmul.f32 %v115, %v147
  %v187 = vmul.f32 %v116, %v147
  %v188 = vmul.f32 %v117, %v147
  %v189 = vmul.f32 %v118, %v147
  %v190 = vmul.f32 %v119, %v147
  %v191 = vmul.f32 %v120, %v147
  %v192 = vmul.f32 %v121, %v147
  %v193 = vmul.f32 %v122, %v147
  %v194 = vmul.f32 %v123, %v147
  %v195 = vmul.f32 %v124, %v147
  %v196 = vmul.f32 %v125, %v147
  %v197 = vmul.f32 %v126, %v147
  %v198 = vmul.f32 %v127, %v147
  %v199 = vmul.f32 %v128, %v147
  %v200 = vmul.f32 %v129, %v147
  %v201 = vmul.f32 %v130, %v147
  %v202 = vmul.f32 %v131, %v147
  %v203 = vmul.f32 %v132, %v147
  %v204 = vmul.f32 %v133, %v147
  %v205 = vmul.f32 %v134, %v147
  %v206 = vmul.f32 %v135, %v147
  %v207 = vmul.f32 %v136, %v147
  %v208 = vmul.f32 %v137, %v147
  %v209 = vmul.f32 %v138, %v147
  %v210 = vmul.f32 %v139, %v147
  %v211 = vmul.f32 %v140, %v147
  %v212 = vmul.f32 %v141, %v147
  %v213 = vld [vmem:[%s2] sm:$0x1]
  %v215 = vlaneseq
  %v216 = vshrl.u32 %v215, 7
  %v217 = vsub.s32 0, %v216
  %v218 = vrot.slane %v213, %v217
  %v220 = vadd.f32 %v149, %v218
  %v221 = vadd.f32 %v150, %v218
  %v222 = vadd.f32 %v151, %v218
  %v223 = vadd.f32 %v152, %v218
  %v224 = vadd.f32 %v153, %v218
  %v225 = vadd.f32 %v154, %v218
  %v226 = vadd.f32 %v155, %v218
  %v227 = vadd.f32 %v156, %v218
  %v228 = vadd.f32 %v157, %v218
  %v229 = vadd.f32 %v158, %v218
  %v230 = vadd.f32 %v159, %v218
  %v231 = vadd.f32 %v160, %v218
  %v232 = vadd.f32 %v161, %v218
  %v233 = vadd.f32 %v162, %v218
  %v234 = vadd.f32 %v163, %v218
  %v235 = vadd.f32 %v164, %v218
  %v236 = vadd.f32 %v165, %v218
  %v237 = vadd.f32 %v166, %v218
  %v238 = vadd.f32 %v167, %v218
  %v239 = vadd.f32 %v168, %v218
  %v240 = vadd.f32 %v169, %v218
  %v241 = vadd.f32 %v170, %v218
  %v242 = vadd.f32 %v171, %v218
  %v243 = vadd.f32 %v172, %v218
  %v244 = vadd.f32 %v173, %v218
  %v245 = vadd.f32 %v174, %v218
  %v246 = vadd.f32 %v175, %v218
  %v247 = vadd.f32 %v176, %v218
  %v248 = vadd.f32 %v177, %v218
  %v249 = vadd.f32 %v178, %v218
  %v250 = vadd.f32 %v179, %v218
  %v251 = vadd.f32 %v180, %v218
  %v252 = vadd.f32 %v181, %v218
  %v253 = vadd.f32 %v182, %v218
  %v254 = vadd.f32 %v183, %v218
  %v255 = vadd.f32 %v184, %v218
  %v256 = vadd.f32 %v185, %v218
  %v257 = vadd.f32 %v186, %v218
  %v258 = vadd.f32 %v187, %v218
  %v259 = vadd.f32 %v188, %v218
  %v260 = vadd.f32 %v189, %v218
  %v261 = vadd.f32 %v190, %v218
  %v262 = vadd.f32 %v191, %v218
  %v263 = vadd.f32 %v192, %v218
  %v264 = vadd.f32 %v193, %v218
  %v265 = vadd.f32 %v194, %v218
  %v266 = vadd.f32 %v195, %v218
  %v267 = vadd.f32 %v196, %v218
  %v268 = vadd.f32 %v197, %v218
  %v269 = vadd.f32 %v198, %v218
  %v270 = vadd.f32 %v199, %v218
  %v271 = vadd.f32 %v200, %v218
  %v272 = vadd.f32 %v201, %v218
  %v273 = vadd.f32 %v202, %v218
  %v274 = vadd.f32 %v203, %v218
  %v275 = vadd.f32 %v204, %v218
  %v276 = vadd.f32 %v205, %v218
  %v277 = vadd.f32 %v206, %v218
  %v278 = vadd.f32 %v207, %v218
  %v279 = vadd.f32 %v208, %v218
  %v280 = vadd.f32 %v209, %v218
  %v281 = vadd.f32 %v210, %v218
  %v282 = vadd.f32 %v211, %v218
  %v283 = vadd.f32 %v212, %v218
  %v284 = vmax.f32 %v220, 0.0
  %v285 = vmax.f32 %v221, 0.0
  %v286 = vmax.f32 %v222, 0.0
  %v287 = vmax.f32 %v223, 0.0
  %v288 = vmax.f32 %v224, 0.0
  %v289 = vmax.f32 %v225, 0.0
  %v290 = vmax.f32 %v226, 0.0
  %v291 = vmax.f32 %v227, 0.0
  %v292 = vmax.f32 %v228, 0.0
  %v293 = vmax.f32 %v229, 0.0
  %v294 = vmax.f32 %v230, 0.0
  %v295 = vmax.f32 %v231, 0.0
  %v296 = vmax.f32 %v232, 0.0
  %v297 = vmax.f32 %v233, 0.0
  %v298 = vmax.f32 %v234, 0.0
  %v299 = vmax.f32 %v235, 0.0
  %v300 = vmax.f32 %v236, 0.0
  %v301 = vmax.f32 %v237, 0.0
  %v302 = vmax.f32 %v238, 0.0
  %v303 = vmax.f32 %v239, 0.0
  %v304 = vmax.f32 %v240, 0.0
  %v305 = vmax.f32 %v241, 0.0
  %v306 = vmax.f32 %v242, 0.0
  %v307 = vmax.f32 %v243, 0.0
  %v308 = vmax.f32 %v244, 0.0
  %v309 = vmax.f32 %v245, 0.0
  %v310 = vmax.f32 %v246, 0.0
  %v311 = vmax.f32 %v247, 0.0
  %v312 = vmax.f32 %v248, 0.0
  %v313 = vmax.f32 %v249, 0.0
  %v314 = vmax.f32 %v250, 0.0
  %v315 = vmax.f32 %v251, 0.0
  %v316 = vmax.f32 %v252, 0.0
  %v317 = vmax.f32 %v253, 0.0
  %v318 = vmax.f32 %v254, 0.0
  %v319 = vmax.f32 %v255, 0.0
  %v320 = vmax.f32 %v256, 0.0
  %v321 = vmax.f32 %v257, 0.0
  %v322 = vmax.f32 %v258, 0.0
  %v323 = vmax.f32 %v259, 0.0
  %v324 = vmax.f32 %v260, 0.0
  %v325 = vmax.f32 %v261, 0.0
  %v326 = vmax.f32 %v262, 0.0
  %v327 = vmax.f32 %v263, 0.0
  %v328 = vmax.f32 %v264, 0.0
  %v329 = vmax.f32 %v265, 0.0
  %v330 = vmax.f32 %v266, 0.0
  %v331 = vmax.f32 %v267, 0.0
  %v332 = vmax.f32 %v268, 0.0
  %v333 = vmax.f32 %v269, 0.0
  %v334 = vmax.f32 %v270, 0.0
  %v335 = vmax.f32 %v271, 0.0
  %v336 = vmax.f32 %v272, 0.0
  %v337 = vmax.f32 %v273, 0.0
  %v338 = vmax.f32 %v274, 0.0
  %v339 = vmax.f32 %v275, 0.0
  %v340 = vmax.f32 %v276, 0.0
  %v341 = vmax.f32 %v277, 0.0
  %v342 = vmax.f32 %v278, 0.0
  %v343 = vmax.f32 %v279, 0.0
  %v344 = vmax.f32 %v280, 0.0
  %v345 = vmax.f32 %v281, 0.0
  %v346 = vmax.f32 %v282, 0.0
  %v347 = vmax.f32 %v283, 0.0
  %v348 = vpack.c.bf16 %v285, %v284
  %v349 = vpack.c.bf16 %v287, %v286
  %v350 = vpack.c.bf16 %v289, %v288
  %v351 = vpack.c.bf16 %v291, %v290
  %v352 = vpack.c.bf16 %v293, %v292
  %v353 = vpack.c.bf16 %v295, %v294
  %v354 = vpack.c.bf16 %v297, %v296
  %v355 = vpack.c.bf16 %v299, %v298
  %v356 = vpack.c.bf16 %v301, %v300
  %v357 = vpack.c.bf16 %v303, %v302
  %v358 = vpack.c.bf16 %v305, %v304
  %v359 = vpack.c.bf16 %v307, %v306
  %v360 = vpack.c.bf16 %v309, %v308
  %v361 = vpack.c.bf16 %v311, %v310
  %v362 = vpack.c.bf16 %v313, %v312
  %v363 = vpack.c.bf16 %v315, %v314
  %v364 = vpack.c.bf16 %v317, %v316
  %v365 = vpack.c.bf16 %v319, %v318
  %v366 = vpack.c.bf16 %v321, %v320
  %v367 = vpack.c.bf16 %v323, %v322
  %v368 = vpack.c.bf16 %v325, %v324
  %v369 = vpack.c.bf16 %v327, %v326
  %v370 = vpack.c.bf16 %v329, %v328
  %v371 = vpack.c.bf16 %v331, %v330
  %v372 = vpack.c.bf16 %v333, %v332
  %v373 = vpack.c.bf16 %v335, %v334
  %v374 = vpack.c.bf16 %v337, %v336
  %v375 = vpack.c.bf16 %v339, %v338
  %v376 = vpack.c.bf16 %v341, %v340
  %v377 = vpack.c.bf16 %v343, %v342
  %v378 = vpack.c.bf16 %v345, %v344
  %v379 = vpack.c.bf16 %v347, %v346
  %v412 = vunpack.c.l.b16 %v348
  %v413 = vunpack.c.h.b16 %v348
  %v414 = vunpack.c.l.b16 %v349
  %v415 = vunpack.c.h.b16 %v349
  %v416 = vunpack.c.l.b16 %v350
  %v417 = vunpack.c.h.b16 %v350
  %v418 = vunpack.c.l.b16 %v351
  %v419 = vunpack.c.h.b16 %v351
  %v420 = vunpack.c.l.b16 %v352
  %v421 = vunpack.c.h.b16 %v352
  %v422 = vunpack.c.l.b16 %v353
  %v423 = vunpack.c.h.b16 %v353
  %v424 = vunpack.c.l.b16 %v354
  %v425 = vunpack.c.h.b16 %v354
  %v426 = vunpack.c.l.b16 %v355
  %v427 = vunpack.c.h.b16 %v355
  %v428 = vunpack.c.l.b16 %v356
  %v429 = vunpack.c.h.b16 %v356
  %v430 = vunpack.c.l.b16 %v357
  %v431 = vunpack.c.h.b16 %v357
  %v432 = vunpack.c.l.b16 %v358
  %v433 = vunpack.c.h.b16 %v358
  %v434 = vunpack.c.l.b16 %v359
  %v435 = vunpack.c.h.b16 %v359
  %v436 = vunpack.c.l.b16 %v360
  %v437 = vunpack.c.h.b16 %v360
  %v438 = vunpack.c.l.b16 %v361
  %v439 = vunpack.c.h.b16 %v361
  %v440 = vunpack.c.l.b16 %v362
  %v441 = vunpack.c.h.b16 %v362
  %v442 = vunpack.c.l.b16 %v363
  %v443 = vunpack.c.h.b16 %v363
  %v444 = vunpack.c.l.b16 %v364
  %v445 = vunpack.c.h.b16 %v364
  %v446 = vunpack.c.l.b16 %v365
  %v447 = vunpack.c.h.b16 %v365
  %v448 = vunpack.c.l.b16 %v366
  %v449 = vunpack.c.h.b16 %v366
  %v450 = vunpack.c.l.b16 %v367
  %v451 = vunpack.c.h.b16 %v367
  %v452 = vunpack.c.l.b16 %v368
  %v453 = vunpack.c.h.b16 %v368
  %v454 = vunpack.c.l.b16 %v369
  %v455 = vunpack.c.h.b16 %v369
  %v456 = vunpack.c.l.b16 %v370
  %v457 = vunpack.c.h.b16 %v370
  %v458 = vunpack.c.l.b16 %v371
  %v459 = vunpack.c.h.b16 %v371
  %v460 = vunpack.c.l.b16 %v372
  %v461 = vunpack.c.h.b16 %v372
  %v462 = vunpack.c.l.b16 %v373
  %v463 = vunpack.c.h.b16 %v373
  %v464 = vunpack.c.l.b16 %v374
  %v465 = vunpack.c.h.b16 %v374
  %v466 = vunpack.c.l.b16 %v375
  %v467 = vunpack.c.h.b16 %v375
  %v468 = vunpack.c.l.b16 %v376
  %v469 = vunpack.c.h.b16 %v376
  %v470 = vunpack.c.l.b16 %v377
  %v471 = vunpack.c.h.b16 %v377
  %v472 = vunpack.c.l.b16 %v378
  %v473 = vunpack.c.h.b16 %v378
  %v474 = vunpack.c.l.b16 %v379
  %v475 = vunpack.c.h.b16 %v379
  %v476 = vpack.c.b16 %v412, %v412
  %v477 = vpack.c.b16 %v413, %v413
  %v478 = vpack.c.b16 %v414, %v414
  %v479 = vpack.c.b16 %v415, %v415
  %v480 = vpack.c.b16 %v416, %v416
  %v481 = vpack.c.b16 %v417, %v417
  %v482 = vpack.c.b16 %v418, %v418
  %v483 = vpack.c.b16 %v419, %v419
  %v484 = vpack.c.b16 %v420, %v420
  %v485 = vpack.c.b16 %v421, %v421
  %v486 = vpack.c.b16 %v422, %v422
  %v487 = vpack.c.b16 %v423, %v423
  %v488 = vpack.c.b16 %v424, %v424
  %v489 = vpack.c.b16 %v425, %v425
  %v490 = vpack.c.b16 %v426, %v426
  %v491 = vpack.c.b16 %v427, %v427
  %v492 = vpack.c.b16 %v428, %v428
  %v493 = vpack.c.b16 %v429, %v429
  %v494 = vpack.c.b16 %v430, %v430
  %v495 = vpack.c.b16 %v431, %v431
  %v496 = vpack.c.b16 %v432, %v432
  %v497 = vpack.c.b16 %v433, %v433
  %v498 = vpack.c.b16 %v434, %v434
  %v499 = vpack.c.b16 %v435, %v435
  %v500 = vpack.c.b16 %v436, %v436
  %v501 = vpack.c.b16 %v437, %v437
  %v502 = vpack.c.b16 %v438, %v438
  %v503 = vpack.c.b16 %v439, %v439
  %v504 = vpack.c.b16 %v440, %v440
  %v505 = vpack.c.b16 %v441, %v441
  %v506 = vpack.c.b16 %v442, %v442
  %v507 = vpack.c.b16 %v443, %v443
  %v508 = vpack.c.b16 %v444, %v444
  %v509 = vpack.c.b16 %v445, %v445
  %v510 = vpack.c.b16 %v446, %v446
  %v511 = vpack.c.b16 %v447, %v447
  %v512 = vpack.c.b16 %v448, %v448
  %v513 = vpack.c.b16 %v449, %v449
  %v514 = vpack.c.b16 %v450, %v450
  %v515 = vpack.c.b16 %v451, %v451
  %v516 = vpack.c.b16 %v452, %v452
  %v517 = vpack.c.b16 %v453, %v453
  %v518 = vpack.c.b16 %v454, %v454
  %v519 = vpack.c.b16 %v455, %v455
  %v520 = vpack.c.b16 %v456, %v456
  %v521 = vpack.c.b16 %v457, %v457
  %v522 = vpack.c.b16 %v458, %v458
  %v523 = vpack.c.b16 %v459, %v459
  %v524 = vpack.c.b16 %v460, %v460
  %v525 = vpack.c.b16 %v461, %v461
  %v526 = vpack.c.b16 %v462, %v462
  %v527 = vpack.c.b16 %v463, %v463
  %v528 = vpack.c.b16 %v464, %v464
  %v529 = vpack.c.b16 %v465, %v465
  %v530 = vpack.c.b16 %v466, %v466
  %v531 = vpack.c.b16 %v467, %v467
  %v532 = vpack.c.b16 %v468, %v468
  %v533 = vpack.c.b16 %v469, %v469
  %v534 = vpack.c.b16 %v470, %v470
  %v535 = vpack.c.b16 %v471, %v471
  %v536 = vpack.c.b16 %v472, %v472
  %v537 = vpack.c.b16 %v473, %v473
  %v538 = vpack.c.b16 %v474, %v474
  %v539 = vpack.c.b16 %v475, %v475
  %604 = vst [vmem:[%s3] sm:$0xf] %v476
  %605 = vst [vmem:[%s3 + $0x4] sm:$0xf] %v477
  %606 = vst [vmem:[%s3 + $0x8] sm:$0xf] %v478
  %607 = vst [vmem:[%s3 + $0xc] sm:$0xf] %v479
  %608 = vst [vmem:[%s3 + $0x10] sm:$0xf] %v480
  %609 = vst [vmem:[%s3 + $0x14] sm:$0xf] %v481
  %610 = vst [vmem:[%s3 + $0x18] sm:$0xf] %v482
  %611 = vst [vmem:[%s3 + $0x1c] sm:$0xf] %v483
  %612 = vst [vmem:[%s3 + $0x20] sm:$0xf] %v484
  %613 = vst [vmem:[%s3 + $0x24] sm:$0xf] %v485
  %614 = vst [vmem:[%s3 + $0x28] sm:$0xf] %v486
  %615 = vst [vmem:[%s3 + $0x2c] sm:$0xf] %v487
  %616 = vst [vmem:[%s3 + $0x30] sm:$0xf] %v488
  %617 = vst [vmem:[%s3 + $0x34] sm:$0xf] %v489
  %618 = vst [vmem:[%s3 + $0x38] sm:$0xf] %v490
  %619 = vst [vmem:[%s3 + $0x3c] sm:$0xf] %v491
  %620 = vst [vmem:[%s3 + $0x40] sm:$0xf] %v492
  %621 = vst [vmem:[%s3 + $0x44] sm:$0xf] %v493
  %622 = vst [vmem:[%s3 + $0x48] sm:$0xf] %v494
  %623 = vst [vmem:[%s3 + $0x4c] sm:$0xf] %v495
  %624 = vst [vmem:[%s3 + $0x50] sm:$0xf] %v496
  %625 = vst [vmem:[%s3 + $0x54] sm:$0xf] %v497
  %626 = vst [vmem:[%s3 + $0x58] sm:$0xf] %v498
  %627 = vst [vmem:[%s3 + $0x5c] sm:$0xf] %v499
  %628 = vst [vmem:[%s3 + $0x60] sm:$0xf] %v500
  %629 = vst [vmem:[%s3 + $0x64] sm:$0xf] %v501
  %630 = vst [vmem:[%s3 + $0x68] sm:$0xf] %v502
  %631 = vst [vmem:[%s3 + $0x6c] sm:$0xf] %v503
  %632 = vst [vmem:[%s3 + $0x70] sm:$0xf] %v504
  %633 = vst [vmem:[%s3 + $0x74] sm:$0xf] %v505
  %634 = vst [vmem:[%s3 + $0x78] sm:$0xf] %v506
  %635 = vst [vmem:[%s3 + $0x7c] sm:$0xf] %v507
  %636 = vst [vmem:[%s3 + $0x80] sm:$0xf] %v508
  %637 = vst [vmem:[%s3 + $0x84] sm:$0xf] %v509
  %638 = vst [vmem:[%s3 + $0x88] sm:$0xf] %v510
  %639 = vst [vmem:[%s3 + $0x8c] sm:$0xf] %v511
  %640 = vst [vmem:[%s3 + $0x90] sm:$0xf] %v512
  %641 = vst [vmem:[%s3 + $0x94] sm:$0xf] %v513
  %642 = vst [vmem:[%s3 + $0x98] sm:$0xf] %v514
  %643 = vst [vmem:[%s3 + $0x9c] sm:$0xf] %v515
  %644 = vst [vmem:[%s3 + $0xa0] sm:$0xf] %v516
  %645 = vst [vmem:[%s3 + $0xa4] sm:$0xf] %v517
  %646 = vst [vmem:[%s3 + $0xa8] sm:$0xf] %v518
  %647 = vst [vmem:[%s3 + $0xac] sm:$0xf] %v519
  %648 = vst [vmem:[%s3 + $0xb0] sm:$0xf] %v520
  %649 = vst [vmem:[%s3 + $0xb4] sm:$0xf] %v521
  %650 = vst [vmem:[%s3 + $0xb8] sm:$0xf] %v522
  %651 = vst [vmem:[%s3 + $0xbc] sm:$0xf] %v523
  %652 = vst [vmem:[%s3 + $0xc0] sm:$0xf] %v524
  %653 = vst [vmem:[%s3 + $0xc4] sm:$0xf] %v525
  %654 = vst [vmem:[%s3 + $0xc8] sm:$0xf] %v526
  %655 = vst [vmem:[%s3 + $0xcc] sm:$0xf] %v527
  %656 = vst [vmem:[%s3 + $0xd0] sm:$0xf] %v528
  %657 = vst [vmem:[%s3 + $0xd4] sm:$0xf] %v529
  %658 = vst [vmem:[%s3 + $0xd8] sm:$0xf] %v530
  %659 = vst [vmem:[%s3 + $0xdc] sm:$0xf] %v531
  %660 = vst [vmem:[%s3 + $0xe0] sm:$0xf] %v532
  %661 = vst [vmem:[%s3 + $0xe4] sm:$0xf] %v533
  %662 = vst [vmem:[%s3 + $0xe8] sm:$0xf] %v534
  %663 = vst [vmem:[%s3 + $0xec] sm:$0xf] %v535
  %664 = vst [vmem:[%s3 + $0xf0] sm:$0xf] %v536
  %665 = vst [vmem:[%s3 + $0xf4] sm:$0xf] %v537
  %666 = vst [vmem:[%s3 + $0xf8] sm:$0xf] %v538
  %667 = vst [vmem:[%s3 + $0xfc] sm:$0xf] %v539
  // Predicated region
  $region14: #{gand_forward.10} parent=0 // pred_check
    _
  $region15: #{gand_forward.10} parent=0 // pred_check_branch
    %669 = sbr.rel (0) target = $region17
  $region16: #{gand_forward.10} parent=0 // pred_region
    _
  $region17: #{gand_forward.10} parent=0 // pred_fallthru
    _
  // Predicated region
  $region18: #{gand_forward.10} parent=0 // pred_check
    _
  $region19: #{gand_forward.10} parent=0 // pred_check_branch
    %671 = sbr.rel (0) target = $region21
  $region20: #{gand_forward.10} parent=0 // pred_region
    _
  $region21: #{gand_forward.10} parent=0 // pred_fallthru
    _

// kernel: gand_forward.11
$region0: #{gand_forward.11}
  #allocation0 [shape = 'u32[]', space=smem, size = 0x4, offset = 0x4, fixed_abs, tag = 'smem constant byte address 0x4 - core index']
  #allocation1 [shape = 'u32[144,128]{1,0:T(1,128)}', space=vmem, size = 0x12000, scoped, tag = 'internal scratch']
  #allocation2 [shape = 'f32[128,128]{1,0:T(8,128)}', space=vmem, size = 0x10000, scoped, tag = 'scratch operand']
  %s0 = inlined_call_operand.vmem [shape: bf16[128,256], index: 0, kind: input, shape index: {}]
  %s1 = inlined_call_operand.vmem [shape: bf16[256,128], index: 1, kind: input, shape index: {}]
  %s2 = inlined_call_operand.vmem [shape: bf16[128,128], index: 2, kind: output, shape index: {0}]
  %s3 = inlined_call_operand.vmem [shape: f32[1,8,128], index: 3, kind: output, shape index: {1}]
  %s4 = inlined_call_operand.vmem [shape: f32[1,8,128], index: 4, kind: output, shape index: {2}]
  %5 = xla_tuple %s2, %s3, %s4
  %s6 = sld [smem:[#allocation0]]
  $region42: #{gand_forward.11} parent=0
    _
  %s8 = ssub.s32 1, %s6
  %s9 = scalar_select 0, %s8, %s6
  // Predicated region
  $region2: #{gand_forward.11} parent=0 // pred_check
    _
  $region3: #{gand_forward.11} parent=0 // pred_check_branch
    %11 = sbr.rel (0) target = $region5
  $region4: #{gand_forward.11} parent=0 // pred_region
    _
  $region5: #{gand_forward.11} parent=0 // pred_fallthru
    _
  // Predicated region
  $region6: #{gand_forward.11} parent=0 // pred_check
    _
  $region7: #{gand_forward.11} parent=0 // pred_check_branch
    %13 = sbr.rel (0) target = $region9
  $region8: #{gand_forward.11} parent=0 // pred_region
    _
  $region9: #{gand_forward.11} parent=0 // pred_fallthru
    _
  %p15 = scmp.eq.s32.totalorder 0, 0
  // Predicated region
  $region10: #{gand_forward.11} parent=0 // pred_check
    %p16 = pneg %p15
  $region11: #{gand_forward.11} parent=0 // pred_check_branch
    %18 = sbr.rel (%p16) target = $region13
  $region12: #{gand_forward.11} parent=0 // pred_region
    %19 = vst [vmem:[#allocation2] sm:$0xff] 0.0
    %20 = vst [vmem:[#allocation2 + $0x8] sm:$0xff] 0.0
    %21 = vst [vmem:[#allocation2 + $0x10] sm:$0xff] 0.0
    %22 = vst [vmem:[#allocation2 + $0x18] sm:$0xff] 0.0
    %23 = vst [vmem:[#allocation2 + $0x20] sm:$0xff] 0.0
    %24 = vst [vmem:[#allocation2 + $0x28] sm:$0xff] 0.0
    %25 = vst [vmem:[#allocation2 + $0x30] sm:$0xff] 0.0
    %26 = vst [vmem:[#allocation2 + $0x38] sm:$0xff] 0.0
    %27 = vst [vmem:[#allocation2 + $0x40] sm:$0xff] 0.0
    %28 = vst [vmem:[#allocation2 + $0x48] sm:$0xff] 0.0
    %29 = vst [vmem:[#allocation2 + $0x50] sm:$0xff] 0.0
    %30 = vst [vmem:[#allocation2 + $0x58] sm:$0xff] 0.0
    %31 = vst [vmem:[#allocation2 + $0x60] sm:$0xff] 0.0
    %32 = vst [vmem:[#allocation2 + $0x68] sm:$0xff] 0.0
    %33 = vst [vmem:[#allocation2 + $0x70] sm:$0xff] 0.0
    %34 = vst [vmem:[#allocation2 + $0x78] sm:$0xff] 0.0
  $region13: #{gand_forward.11} parent=0 // pred_fallthru
    _
  %v35 = vld [vmem:[#allocation2] sm:$0xff]
  %v36 = vld [vmem:[#allocation2 + $0x8] sm:$0xff]
  %v37 = vld [vmem:[#allocation2 + $0x10] sm:$0xff]
  %v38 = vld [vmem:[#allocation2 + $0x18] sm:$0xff]
  %v39 = vld [vmem:[#allocation2 + $0x20] sm:$0xff]
  %v40 = vld [vmem:[#allocation2 + $0x28] sm:$0xff]
  %v41 = vld [vmem:[#allocation2 + $0x30] sm:$0xff]
  %v42 = vld [vmem:[#allocation2 + $0x38] sm:$0xff]
  %v43 = vld [vmem:[#allocation2 + $0x40] sm:$0xff]
  %v44 = vld [vmem:[#allocation2 + $0x48] sm:$0xff]
  %v45 = vld [vmem:[#allocation2 + $0x50] sm:$0xff]
  %v46 = vld [vmem:[#allocation2 + $0x58] sm:$0xff]
  %v47 = vld [vmem:[#allocation2 + $0x60] sm:$0xff]
  %v48 = vld [vmem:[#allocation2 + $0x68] sm:$0xff]
  %v49 = vld [vmem:[#allocation2 + $0x70] sm:$0xff]
  %v50 = vld [vmem:[#allocation2 + $0x78] sm:$0xff]
  %v51 = vld [vmem:[%s0] sm:$0xff]
  %v52 = vld [vmem:[%s0 + $0x8] sm:$0xff]
  %v53 = vld [vmem:[%s0 + $0x10] sm:$0xff]
  %v54 = vld [vmem:[%s0 + $0x18] sm:$0xff]
  %v55 = vld [vmem:[%s0 + $0x20] sm:$0xff]
  %v56 = vld [vmem:[%s0 + $0x28] sm:$0xff]
  %v57 = vld [vmem:[%s0 + $0x30] sm:$0xff]
  %v58 = vld [vmem:[%s0 + $0x38] sm:$0xff]
  %v59 = vld [vmem:[%s0 + $0x40] sm:$0xff]
  %v60 = vld [vmem:[%s0 + $0x48] sm:$0xff]
  %v61 = vld [vmem:[%s0 + $0x50] sm:$0xff]
  %v62 = vld [vmem:[%s0 + $0x58] sm:$0xff]
  %v63 = vld [vmem:[%s0 + $0x60] sm:$0xff]
  %v64 = vld [vmem:[%s0 + $0x68] sm:$0xff]
  %v65 = vld [vmem:[%s0 + $0x70] sm:$0xff]
  %v66 = vld [vmem:[%s0 + $0x78] sm:$0xff]
  %v67 = vld [vmem:[%s1] sm:$0xf]
  %v68 = vld [vmem:[%s1 + $0x4] sm:$0xf]
  %v69 = vld [vmem:[%s1 + $0x8] sm:$0xf]
  %v70 = vld [vmem:[%s1 + $0xc] sm:$0xf]
  %v71 = vld [vmem:[%s1 + $0x10] sm:$0xf]
  %v72 = vld [vmem:[%s1 + $0x14] sm:$0xf]
  %v73 = vld [vmem:[%s1 + $0x18] sm:$0xf]
  %v74 = vld [vmem:[%s1 + $0x1c] sm:$0xf]
  %v75 = vld [vmem:[%s1 + $0x20] sm:$0xf]
  %v76 = vld [vmem:[%s1 + $0x24] sm:$0xf]
  %v77 = vld [vmem:[%s1 + $0x28] sm:$0xf]
  %v78 = vld [vmem:[%s1 + $0x2c] sm:$0xf]
  %v79 = vld [vmem:[%s1 + $0x30] sm:$0xf]
  %v80 = vld [vmem:[%s1 + $0x34] sm:$0xf]
  %v81 = vld [vmem:[%s1 + $0x38] sm:$0xf]
  %v82 = vld [vmem:[%s1 + $0x3c] sm:$0xf]
  %v83 = vld [vmem:[%s1 + $0x40] sm:$0xf]
  %v84 = vld [vmem:[%s1 + $0x44] sm:$0xf]
  %v85 = vld [vmem:[%s1 + $0x48] sm:$0xf]
  %v86 = vld [vmem:[%s1 + $0x4c] sm:$0xf]
  %v87 = vld [vmem:[%s1 + $0x50] sm:$0xf]
  %v88 = vld [vmem:[%s1 + $0x54] sm:$0xf]
  %v89 = vld [vmem:[%s1 + $0x58] sm:$0xf]
  %v90 = vld [vmem:[%s1 + $0x5c] sm:$0xf]
  %v91 = vld [vmem:[%s1 + $0x60] sm:$0xf]
  %v92 = vld [vmem:[%s1 + $0x64] sm:$0xf]
  %v93 = vld [vmem:[%s1 + $0x68] sm:$0xf]
  %v94 = vld [vmem:[%s1 + $0x6c] sm:$0xf]
  %v95 = vld [vmem:[%s1 + $0x70] sm:$0xf]
  %v96 = vld [vmem:[%s1 + $0x74] sm:$0xf]
  %v97 = vld [vmem:[%s1 + $0x78] sm:$0xf]
  %v98 = vld [vmem:[%s1 + $0x7c] sm:$0xf]
  %v115 = vunpack.c.l.b16 %v51
  %v116 = vunpack.c.h.b16 %v51
  %v117 = vunpack.c.l.b16 %v52
  %v118 = vunpack.c.h.b16 %v52
  %v119 = vunpack.c.l.b16 %v53
  %v120 = vunpack.c.h.b16 %v53
  %v121 = vunpack.c.l.b16 %v54
  %v122 = vunpack.c.h.b16 %v54
  %v123 = vunpack.c.l.b16 %v55
  %v124 = vunpack.c.h.b16 %v55
  %v125 = vunpack.c.l.b16 %v56
  %v126 = vunpack.c.h.b16 %v56
  %v127 = vunpack.c.l.b16 %v57
  %v128 = vunpack.c.h.b16 %v57
  %v129 = vunpack.c.l.b16 %v58
  %v130 = vunpack.c.h.b16 %v58
  %v131 = vunpack.c.l.b16 %v59
  %v132 = vunpack.c.h.b16 %v59
  %v133 = vunpack.c.l.b16 %v60
  %v134 = vunpack.c.h.b16 %v60
  %v135 = vunpack.c.l.b16 %v61
  %v136 = vunpack.c.h.b16 %v61
  %v137 = vunpack.c.l.b16 %v62
  %v138 = vunpack.c.h.b16 %v62
  %v139 = vunpack.c.l.b16 %v63
  %v140 = vunpack.c.h.b16 %v63
  %v141 = vunpack.c.l.b16 %v64
  %v142 = vunpack.c.h.b16 %v64
  %v143 = vunpack.c.l.b16 %v65
  %v144 = vunpack.c.h.b16 %v65
  %v145 = vunpack.c.l.b16 %v66
  %v146 = vunpack.c.h.b16 %v66
  %v147 = vpack.c.b16 %v117, %v115
  %v148 = vpack.c.b16 %v118, %v116
  %v149 = vpack.c.b16 %v121, %v119
  %v150 = vpack.c.b16 %v122, %v120
  %v151 = vpack.c.b16 %v125, %v123
  %v152 = vpack.c.b16 %v126, %v124
  %v153 = vpack.c.b16 %v129, %v127
  %v154 = vpack.c.b16 %v130, %v128
  %v155 = vpack.c.b16 %v133, %v131
  %v156 = vpack.c.b16 %v134, %v132
  %v157 = vpack.c.b16 %v137, %v135
  %v158 = vpack.c.b16 %v138, %v136
  %v159 = vpack.c.b16 %v141, %v139
  %v160 = vpack.c.b16 %v142, %v140
  %v161 = vpack.c.b16 %v145, %v143
  %v162 = vpack.c.b16 %v146, %v144
  %v211 = vunpack.c.l.b16 %v67
  %v212 = vunpack.c.l.b16 %v68
  %v213 = vunpack.c.l.b16 %v69
  %v214 = vunpack.c.l.b16 %v70
  %v215 = vunpack.c.l.b16 %v71
  %v216 = vunpack.c.l.b16 %v72
  %v217 = vunpack.c.l.b16 %v73
  %v218 = vunpack.c.l.b16 %v74
  %v219 = vunpack.c.l.b16 %v75
  %v220 = vunpack.c.l.b16 %v76
  %v221 = vunpack.c.l.b16 %v77
  %v222 = vunpack.c.l.b16 %v78
  %v223 = vunpack.c.l.b16 %v79
  %v224 = vunpack.c.l.b16 %v80
  %v225 = vunpack.c.l.b16 %v81
  %v226 = vunpack.c.l.b16 %v82
  %v227 = vunpack.c.l.b16 %v83
  %v228 = vunpack.c.l.b16 %v84
  %v229 = vunpack.c.l.b16 %v85
  %v230 = vunpack.c.l.b16 %v86
  %v231 = vunpack.c.l.b16 %v87
  %v232 = vunpack.c.l.b16 %v88
  %v233 = vunpack.c.l.b16 %v89
  %v234 = vunpack.c.l.b16 %v90
  %v235 = vunpack.c.l.b16 %v91
  %v236 = vunpack.c.l.b16 %v92
  %v237 = vunpack.c.l.b16 %v93
  %v238 = vunpack.c.l.b16 %v94
  %v239 = vunpack.c.l.b16 %v95
  %v240 = vunpack.c.l.b16 %v96
  %v241 = vunpack.c.l.b16 %v97
  %v242 = vunpack.c.l.b16 %v98
  %v243 = vpack.c.b16 %v212, %v211
  %v244 = vpack.c.b16 %v214, %v213
  %v245 = vpack.c.b16 %v216, %v215
  %v246 = vpack.c.b16 %v218, %v217
  %v247 = vpack.c.b16 %v220, %v219
  %v248 = vpack.c.b16 %v222, %v221
  %v249 = vpack.c.b16 %v224, %v223
  %v250 = vpack.c.b16 %v226, %v225
  %v251 = vpack.c.b16 %v228, %v227
  %v252 = vpack.c.b16 %v230, %v229
  %v253 = vpack.c.b16 %v232, %v231
  %v254 = vpack.c.b16 %v234, %v233
  %v255 = vpack.c.b16 %v236, %v235
  %v256 = vpack.c.b16 %v238, %v237
  %v257 = vpack.c.b16 %v240, %v239
  %v258 = vpack.c.b16 %v242, %v241
  %275 = vmatprep.subr.bf16.mxu0 0
  %276 = vmatpush1.bf16.msra.mxu0 %v250
  %277 = vmatprep.subr.bf16.mxu0 0
  %278 = vmatpush1.bf16.msra.mxu0 %v249
  %279 = vmatprep.subr.bf16.mxu0 0
  %280 = vmatpush1.bf16.msra.mxu0 %v248
  %281 = vmatprep.subr.bf16.mxu0 0
  %282 = vmatpush1.bf16.msra.mxu0 %v247
  %283 = vmatprep.subr.bf16.mxu0 0
  %284 = vmatpush1.bf16.msra.mxu0 %v246
  %285 = vmatprep.subr.bf16.mxu0 0
  %286 = vmatpush1.bf16.msra.mxu0 %v245
  %287 = vmatprep.subr.bf16.mxu0 0
  %288 = vmatpush1.bf16.msra.mxu0 %v244
  %289 = vmatprep.subr.bf16.mxu0 0
  %290 = vmatpush1.bf16.msra.mxu0 %v243
  %291 = vmatprep.subr.bf16.mxu0 0
  %292 = vmatpush2.bf16.msra.mxu0 %v258
  %293 = vmatprep.subr.bf16.mxu0 0
  %294 = vmatpush2.bf16.msra.mxu0 %v257
  %295 = vmatprep.subr.bf16.mxu0 0
  %296 = vmatpush2.bf16.msra.mxu0 %v256
  %297 = vmatprep.subr.bf16.mxu0 0
  %298 = vmatpush2.bf16.msra.mxu0 %v255
  %299 = vmatprep.subr.bf16.mxu0 0
  %300 = vmatpush2.bf16.msra.mxu0 %v254
  %301 = vmatprep.subr.bf16.mxu0 0
  %302 = vmatpush2.bf16.msra.mxu0 %v253
  %303 = vmatprep.subr.bf16.mxu0 0
  %304 = vmatpush2.bf16.msra.mxu0 %v252
  %305 = vmatprep.subr.bf16.mxu0 0
  %306 = vmatpush2.bf16.msra.mxu0 %v251
  %307 = vmatprep.mubr.bf16.mxu0 %v148
  %308 = vmatmul.mubr.bf16.gmra.mxu0 %v147
  %v309 = vpop.f32.mrf.mxu0
  %v310 = vadd.f32 0.0, %v309
  %v311 = vpop.f32.mrf.mxu0
  %v312 = vpop.f32.mrf.mxu0
  %v313 = vadd.f32 0.0, %v312
  %v314 = vpop.f32.mrf.mxu0
  %315 = vmatprep.mubr.bf16.mxu0 %v150
  %316 = vmatmul.mubr.bf16.gmra.mxu0 %v149
  %v317 = vpop.f32.mrf.mxu0
  %v318 = vadd.f32 0.0, %v317
  %v319 = vpop.f32.mrf.mxu0
  %v320 = vpop.f32.mrf.mxu0
  %v321 = vadd.f32 0.0, %v320
  %v322 = vpop.f32.mrf.mxu0
  %323 = vmatprep.mubr.bf16.mxu0 %v152
  %324 = vmatmul.mubr.bf16.gmra.mxu0 %v151
  %v325 = vpop.f32.mrf.mxu0
  %v326 = vadd.f32 0.0, %v325
  %v327 = vpop.f32.mrf.mxu0
  %v328 = vpop.f32.mrf.mxu0
  %v329 = vadd.f32 0.0, %v328
  %v330 = vpop.f32.mrf.mxu0
  %331 = vmatprep.mubr.bf16.mxu0 %v154
  %332 = vmatmul.mubr.bf16.gmra.mxu0 %v153
  %v333 = vpop.f32.mrf.mxu0
  %v334 = vadd.f32 0.0, %v333
  %v335 = vpop.f32.mrf.mxu0
  %v336 = vpop.f32.mrf.mxu0
  %v337 = vadd.f32 0.0, %v336
  %v338 = vpop.f32.mrf.mxu0
  %339 = vmatprep.mubr.bf16.mxu0 %v156
  %340 = vmatmul.mubr.bf16.gmra.mxu0 %v155
  %v341 = vpop.f32.mrf.mxu0
  %v342 = vadd.f32 0.0, %v341
  %v343 = vpop.f32.mrf.mxu0
  %v344 = vpop.f32.mrf.mxu0
  %v345 = vadd.f32 0.0, %v344
  %v346 = vpop.f32.mrf.mxu0
  %347 = vmatprep.mubr.bf16.mxu0 %v158
  %348 = vmatmul.mubr.bf16.gmra.mxu0 %v157
  %v349 = vpop.f32.mrf.mxu0
  %v350 = vadd.f32 0.0, %v349
  %v351 = vpop.f32.mrf.mxu0
  %v352 = vpop.f32.mrf.mxu0
  %v353 = vadd.f32 0.0, %v352
  %v354 = vpop.f32.mrf.mxu0
  %355 = vmatprep.mubr.bf16.mxu0 %v160
  %356 = vmatmul.mubr.bf16.gmra.mxu0 %v159
  %v357 = vpop.f32.mrf.mxu0
  %v358 = vadd.f32 0.0, %v357
  %v359 = vpop.f32.mrf.mxu0
  %v360 = vpop.f32.mrf.mxu0
  %v361 = vadd.f32 0.0, %v360
  %v362 = vpop.f32.mrf.mxu0
  %363 = vmatprep.mubr.bf16.mxu0 %v162
  %364 = vmatmul.mubr.bf16.gmra.mxu0 %v161
  %v365 = vpop.f32.mrf.mxu0
  %v366 = vadd.f32 0.0, %v365
  %v367 = vpop.f32.mrf.mxu0
  %v368 = vpop.f32.mrf.mxu0
  %v369 = vadd.f32 0.0, %v368
  %v370 = vpop.f32.mrf.mxu0
  %371 = vdwg.mxu0
  %v372 = vadd.f32 %v35, %v310
  %v373 = vadd.f32 %v36, %v313
  %v374 = vadd.f32 %v37, %v318
  %v375 = vadd.f32 %v38, %v321
  %v376 = vadd.f32 %v39, %v326
  %v377 = vadd.f32 %v40, %v329
  %v378 = vadd.f32 %v41, %v334
  %v379 = vadd.f32 %v42, %v337
  %v380 = vadd.f32 %v43, %v342
  %v381 = vadd.f32 %v44, %v345
  %v382 = vadd.f32 %v45, %v350
  %v383 = vadd.f32 %v46, %v353
  %v384 = vadd.f32 %v47, %v358
  %v385 = vadd.f32 %v48, %v361
  %v386 = vadd.f32 %v49, %v366
  %v387 = vadd.f32 %v50, %v369
  %388 = vst [vmem:[#allocation2] sm:$0xff] %v372
  %389 = vst [vmem:[#allocation2 + $0x8] sm:$0xff] %v373
  %390 = vst [vmem:[#allocation2 + $0x10] sm:$0xff] %v374
  %391 = vst [vmem:[#allocation2 + $0x18] sm:$0xff] %v375
  %392 = vst [vmem:[#allocation2 + $0x20] sm:$0xff] %v376
  %393 = vst [vmem:[#allocation2 + $0x28] sm:$0xff] %v377
  %394 = vst [vmem:[#allocation2 + $0x30] sm:$0xff] %v378
  %395 = vst [vmem:[#allocation2 + $0x38] sm:$0xff] %v379
  %396 = vst [vmem:[#allocation2 + $0x40] sm:$0xff] %v380
  %397 = vst [vmem:[#allocation2 + $0x48] sm:$0xff] %v381
  %398 = vst [vmem:[#allocation2 + $0x50] sm:$0xff] %v382
  %399 = vst [vmem:[#allocation2 + $0x58] sm:$0xff] %v383
  %400 = vst [vmem:[#allocation2 + $0x60] sm:$0xff] %v384
  %401 = vst [vmem:[#allocation2 + $0x68] sm:$0xff] %v385
  %402 = vst [vmem:[#allocation2 + $0x70] sm:$0xff] %v386
  %403 = vst [vmem:[#allocation2 + $0x78] sm:$0xff] %v387
  // Predicated region
  $region14: #{gand_forward.11} parent=0 // pred_check
    %p404 = pneg %p15
  $region15: #{gand_forward.11} parent=0 // pred_check_branch
    %406 = sbr.rel (%p404) target = $region17
  $region16: #{gand_forward.11} parent=0 // pred_region
    %v407 = vld [vmem:[#allocation2] sm:$0xff]
    %v408 = vld [vmem:[#allocation2 + $0x8] sm:$0xff]
    %v409 = vld [vmem:[#allocation2 + $0x10] sm:$0xff]
    %v410 = vld [vmem:[#allocation2 + $0x18] sm:$0xff]
    %v411 = vld [vmem:[#allocation2 + $0x20] sm:$0xff]
    %v412 = vld [vmem:[#allocation2 + $0x28] sm:$0xff]
    %v413 = vld [vmem:[#allocation2 + $0x30] sm:$0xff]
    %v414 = vld [vmem:[#allocation2 + $0x38] sm:$0xff]
    %v415 = vld [vmem:[#allocation2 + $0x40] sm:$0xff]
    %v416 = vld [vmem:[#allocation2 + $0x48] sm:$0xff]
    %v417 = vld [vmem:[#allocation2 + $0x50] sm:$0xff]
    %v418 = vld [vmem:[#allocation2 + $0x58] sm:$0xff]
    %v419 = vld [vmem:[#allocation2 + $0x60] sm:$0xff]
    %v420 = vld [vmem:[#allocation2 + $0x68] sm:$0xff]
    %v421 = vld [vmem:[#allocation2 + $0x70] sm:$0xff]
    %v422 = vld [vmem:[#allocation2 + $0x78] sm:$0xff]
    %v423 = vadd.f32 %v407, %v408
    %v424 = vadd.f32 %v423, %v409
    %v425 = vadd.f32 %v424, %v410
    %v426 = vadd.f32 %v425, %v411
    %v427 = vadd.f32 %v426, %v412
    %v428 = vadd.f32 %v427, %v413
    %v429 = vadd.f32 %v428, %v414
    %v430 = vadd.f32 %v429, %v415
    %v431 = vadd.f32 %v430, %v416
    %v432 = vadd.f32 %v431, %v417
    %v433 = vadd.f32 %v432, %v418
    %v434 = vadd.f32 %v433, %v419
    %v435 = vadd.f32 %v434, %v420
    %v436 = vadd.f32 %v435, %v421
    %v437 = vadd.f32 %v436, %v422
    %v438 = vrot.slane %v437, 4
    %v439 = vadd.f32 %v437, %v438
    %v440 = vrot.slane %v439, 2
    %v441 = vadd.f32 %v439, %v440
    %v442 = vrot.slane %v441, 1
    %v443 = vadd.f32 %v441, %v442
    %v444 = vmul.f32 %v407, %v407
    %v445 = vmul.f32 %v408, %v408
    %v446 = vmul.f32 %v409, %v409
    %v447 = vmul.f32 %v410, %v410
    %v448 = vmul.f32 %v411, %v411
    %v449 = vmul.f32 %v412, %v412
    %v450 = vmul.f32 %v413, %v413
    %v451 = vmul.f32 %v414, %v414
    %v452 = vmul.f32 %v415, %v415
    %v453 = vmul.f32 %v416, %v416
    %v454 = vmul.f32 %v417, %v417
    %v455 = vmul.f32 %v418, %v418
    %v456 = vmul.f32 %v419, %v419
    %v457 = vmul.f32 %v420, %v420
    %v458 = vmul.f32 %v421, %v421
    %v459 = vmul.f32 %v422, %v422
    %v460 = vadd.f32 %v444, %v445
    %v461 = vadd.f32 %v460, %v446
    %v462 = vadd.f32 %v461, %v447
    %v463 = vadd.f32 %v462, %v448
    %v464 = vadd.f32 %v463, %v449
    %v465 = vadd.f32 %v464, %v450
    %v466 = vadd.f32 %v465, %v451
    %v467 = vadd.f32 %v466, %v452
    %v468 = vadd.f32 %v467, %v453
    %v469 = vadd.f32 %v468, %v454
    %v470 = vadd.f32 %v469, %v455
    %v471 = vadd.f32 %v470, %v456
    %v472 = vadd.f32 %v471, %v457
    %v473 = vadd.f32 %v472, %v458
    %v474 = vadd.f32 %v473, %v459
    %v475 = vrot.slane %v474, 4
    %v476 = vadd.f32 %v474, %v475
    %v477 = vrot.slane %v476, 2
    %v478 = vadd.f32 %v476, %v477
    %v479 = vrot.slane %v478, 1
    %v480 = vadd.f32 %v478, %v479
    %481 = vst [vmem:[%s3] sm:$0xff] %v443
    %482 = vst [vmem:[%s4] sm:$0xff] %v480
    %v483 = vpack.c.bf16 %v408, %v407
    %v484 = vpack.c.bf16 %v410, %v409
    %v485 = vpack.c.bf16 %v412, %v411
    %v486 = vpack.c.bf16 %v414, %v413
    %v487 = vpack.c.bf16 %v416, %v415
    %v488 = vpack.c.bf16 %v418, %v417
    %v489 = vpack.c.bf16 %v420, %v419
    %v490 = vpack.c.bf16 %v422, %v421
    %v499 = vunpack.c.l.b16 %v483
    %v500 = vunpack.c.h.b16 %v483
    %v501 = vunpack.c.l.b16 %v484
    %v502 = vunpack.c.h.b16 %v484
    %v503 = vunpack.c.l.b16 %v485
    %v504 = vunpack.c.h.b16 %v485
    %v505 = vunpack.c.l.b16 %v486
    %v506 = vunpack.c.h.b16 %v486
    %v507 = vunpack.c.l.b16 %v487
    %v508 = vunpack.c.h.b16 %v487
    %v509 = vunpack.c.l.b16 %v488
    %v510 = vunpack.c.h.b16 %v488
    %v511 = vunpack.c.l.b16 %v489
    %v512 = vunpack.c.h.b16 %v489
    %v513 = vunpack.c.l.b16 %v490
    %v514 = vunpack.c.h.b16 %v490
    %v515 = vpack.c.b16 %v499, %v499
    %v516 = vpack.c.b16 %v500, %v500
    %v517 = vpack.c.b16 %v501, %v501
    %v518 = vpack.c.b16 %v502, %v502
    %v519 = vpack.c.b16 %v503, %v503
    %v520 = vpack.c.b16 %v504, %v504
    %v521 = vpack.c.b16 %v505, %v505
    %v522 = vpack.c.b16 %v506, %v506
    %v523 = vpack.c.b16 %v507, %v507
    %v524 = vpack.c.b16 %v508, %v508
    %v525 = vpack.c.b16 %v509, %v509
    %v526 = vpack.c.b16 %v510, %v510
    %v527 = vpack.c.b16 %v511, %v511
    %v528 = vpack.c.b16 %v512, %v512
    %v529 = vpack.c.b16 %v513, %v513
    %v530 = vpack.c.b16 %v514, %v514
    %547 = vst [vmem:[%s2] sm:$0xf] %v515
    %548 = vst [vmem:[%s2 + $0x4] sm:$0xf] %v516
    %549 = vst [vmem:[%s2 + $0x8] sm:$0xf] %v517
    %550 = vst [vmem:[%s2 + $0xc] sm:$0xf] %v518
    %551 = vst [vmem:[%s2 + $0x10] sm:$0xf] %v519
    %552 = vst [vmem:[%s2 + $0x14] sm:$0xf] %v520
    %553 = vst [vmem:[%s2 + $0x18] sm:$0xf] %v521
    %554 = vst [vmem:[%s2 + $0x1c] sm:$0xf] %v522
    %555 = vst [vmem:[%s2 + $0x20] sm:$0xf] %v523
    %556 = vst [vmem:[%s2 + $0x24] sm:$0xf] %v524
    %557 = vst [vmem:[%s2 + $0x28] sm:$0xf] %v525
    %558 = vst [vmem:[%s2 + $0x2c] sm:$0xf] %v526
    %559 = vst [vmem:[%s2 + $0x30] sm:$0xf] %v527
    %560 = vst [vmem:[%s2 + $0x34] sm:$0xf] %v528
    %561 = vst [vmem:[%s2 + $0x38] sm:$0xf] %v529
    %562 = vst [vmem:[%s2 + $0x3c] sm:$0xf] %v530
  $region17: #{gand_forward.11} parent=0 // pred_fallthru
    _
  // Predicated region
  $region18: #{gand_forward.11} parent=0 // pred_check
    _
  $region19: #{gand_forward.11} parent=0 // pred_check_branch
    %564 = sbr.rel (0) target = $region21
  $region20: #{gand_forward.11} parent=0 // pred_region
    _
  $region21: #{gand_forward.11} parent=0 // pred_fallthru
    _
  // Predicated region
  $region22: #{gand_forward.11} parent=0 // pred_check
    _
  $region23: #{gand_forward.11} parent=0 // pred_check_branch
    %566 = sbr.rel (0) target = $region25
  $region24: #{gand_forward.11} parent=0 // pred_region
    _
  $region25: #{gand_forward.11} parent=0 // pred_fallthru
    _
  // Predicated region
  $region26: #{gand_forward.11} parent=0 // pred_check
    _
  $region27: #{gand_forward.11} parent=0 // pred_check_branch
    %568 = sbr.rel (0) target = $region29
  $region28: #{gand_forward.11} parent=0 // pred_region
    _
  $region29: #{gand_forward.11} parent=0 // pred_fallthru
    _
  // Predicated region
  $region30: #{gand_forward.11} parent=0 // pred_check
    _
  $region31: #{gand_forward.11} parent=0 // pred_check_branch
    %570 = sbr.rel (0) target = $region33
  $region32: #{gand_forward.11} parent=0 // pred_region
    _
  $region33: #{gand_forward.11} parent=0 // pred_fallthru
    _
  // Predicated region
  $region34: #{gand_forward.11} parent=0 // pred_check
    _
  $region35: #{gand_forward.11} parent=0 // pred_check_branch
    %572 = sbr.rel (0) target = $region37
  $region36: #{gand_forward.11} parent=0 // pred_region
    _
  $region37: #{gand_forward.11} parent=0 // pred_fallthru
    _
  // Predicated region
  $region38: #{gand_forward.11} parent=0 // pred_check
    _
  $region39: #{gand_forward.11} parent=0 // pred_check_branch
    %574 = sbr.rel (0) target = $region41
  $region40: #{gand_forward.11} parent=0 // pred_region
    _
  $region41: #{gand_forward.11} parent=0 // pred_fallthru
    _

// kernel: gand_forward.12
$region0: #{gand_forward.12}
  #allocation0 [shape = 'u32[]', space=smem, size = 0x4, offset = 0x4, fixed_abs, tag = 'smem constant byte address 0x4 - core index']
  #allocation1 [shape = 'u32[144,128]{1,0:T(1,128)}', space=vmem, size = 0x12000, scoped, tag = 'internal scratch']
  %s0 = inlined_call_operand.vmem [shape: bf16[128,128], index: 0, kind: input, shape index: {}]
  %s1 = inlined_call_operand.vmem [shape: f32[1,128], index: 1, kind: input, shape index: {}]
  %s2 = inlined_call_operand.vmem [shape: f32[1,128], index: 2, kind: input, shape index: {}]
  %s3 = inlined_call_operand.vmem [shape: bf16[128,128], index: 3, kind: output, shape index: {}]
  %s4 = sld [smem:[#allocation0]]
  $region22: #{gand_forward.12} parent=0
    _
  %s6 = ssub.s32 1, %s4
  %s7 = scalar_select 0, %s6, %s4
  // Predicated region
  $region2: #{gand_forward.12} parent=0 // pred_check
    _
  $region3: #{gand_forward.12} parent=0 // pred_check_branch
    %9 = sbr.rel (0) target = $region5
  $region4: #{gand_forward.12} parent=0 // pred_region
    _
  $region5: #{gand_forward.12} parent=0 // pred_fallthru
    _
  // Predicated region
  $region6: #{gand_forward.12} parent=0 // pred_check
    _
  $region7: #{gand_forward.12} parent=0 // pred_check_branch
    %11 = sbr.rel (0) target = $region9
  $region8: #{gand_forward.12} parent=0 // pred_region
    _
  $region9: #{gand_forward.12} parent=0 // pred_fallthru
    _
  // Predicated region
  $region10: #{gand_forward.12} parent=0 // pred_check
    _
  $region11: #{gand_forward.12} parent=0 // pred_check_branch
    %13 = sbr.rel (0) target = $region13
  $region12: #{gand_forward.12} parent=0 // pred_region
    _
  $region13: #{gand_forward.12} parent=0 // pred_fallthru
    _
  %v14 = vld [vmem:[%s0] sm:$0xf]
  %v15 = vld [vmem:[%s0 + $0x4] sm:$0xf]
  %v16 = vld [vmem:[%s0 + $0x8] sm:$0xf]
  %v17 = vld [vmem:[%s0 + $0xc] sm:$0xf]
  %v18 = vld [vmem:[%s0 + $0x10] sm:$0xf]
  %v19 = vld [vmem:[%s0 + $0x14] sm:$0xf]
  %v20 = vld [vmem:[%s0 + $0x18] sm:$0xf]
  %v21 = vld [vmem:[%s0 + $0x1c] sm:$0xf]
  %v22 = vld [vmem:[%s0 + $0x20] sm:$0xf]
  %v23 = vld [vmem:[%s0 + $0x24] sm:$0xf]
  %v24 = vld [vmem:[%s0 + $0x28] sm:$0xf]
  %v25 = vld [vmem:[%s0 + $0x2c] sm:$0xf]
  %v26 = vld [vmem:[%s0 + $0x30] sm:$0xf]
  %v27 = vld [vmem:[%s0 + $0x34] sm:$0xf]
  %v28 = vld [vmem:[%s0 + $0x38] sm:$0xf]
  %v29 = vld [vmem:[%s0 + $0x3c] sm:$0xf]
  %v30 = vunpack.c.l.bf16 %v14
  %v31 = vunpack.c.l.bf16 %v15
  %v32 = vunpack.c.l.bf16 %v16
  %v33 = vunpack.c.l.bf16 %v17
  %v34 = vunpack.c.l.bf16 %v18
  %v35 = vunpack.c.l.bf16 %v19
  %v36 = vunpack.c.l.bf16 %v20
  %v37 = vunpack.c.l.bf16 %v21
  %v38 = vunpack.c.l.bf16 %v22
  %v39 = vunpack.c.l.bf16 %v23
  %v40 = vunpack.c.l.bf16 %v24
  %v41 = vunpack.c.l.bf16 %v25
  %v42 = vunpack.c.l.bf16 %v26
  %v43 = vunpack.c.l.bf16 %v27
  %v44 = vunpack.c.l.bf16 %v28
  %v45 = vunpack.c.l.bf16 %v29
  %v46 = vld [vmem:[%s1] sm:$0x1]
  %v48 = vlaneseq
  %v49 = vshrl.u32 %v48, 7
  %v50 = vsub.s32 0, %v49
  %v51 = vrot.slane %v46, %v50
  %v53 = vmul.f32 %v30, %v51
  %v54 = vmul.f32 %v31, %v51
  %v55 = vmul.f32 %v32, %v51
  %v56 = vmul.f32 %v33, %v51
  %v57 = vmul.f32 %v34, %v51
  %v58 = vmul.f32 %v35, %v51
  %v59 = vmul.f32 %v36, %v51
  %v60 = vmul.f32 %v37, %v51
  %v61 = vmul.f32 %v38, %v51
  %v62 = vmul.f32 %v39, %v51
  %v63 = vmul.f32 %v40, %v51
  %v64 = vmul.f32 %v41, %v51
  %v65 = vmul.f32 %v42, %v51
  %v66 = vmul.f32 %v43, %v51
  %v67 = vmul.f32 %v44, %v51
  %v68 = vmul.f32 %v45, %v51
  %v69 = vld [vmem:[%s2] sm:$0x1]
  %v71 = vlaneseq
  %v72 = vshrl.u32 %v71, 7
  %v73 = vsub.s32 0, %v72
  %v74 = vrot.slane %v69, %v73
  %v76 = vadd.f32 %v53, %v74
  %v77 = vadd.f32 %v54, %v74
  %v78 = vadd.f32 %v55, %v74
  %v79 = vadd.f32 %v56, %v74
  %v80 = vadd.f32 %v57, %v74
  %v81 = vadd.f32 %v58, %v74
  %v82 = vadd.f32 %v59, %v74
  %v83 = vadd.f32 %v60, %v74
  %v84 = vadd.f32 %v61, %v74
  %v85 = vadd.f32 %v62, %v74
  %v86 = vadd.f32 %v63, %v74
  %v87 = vadd.f32 %v64, %v74
  %v88 = vadd.f32 %v65, %v74
  %v89 = vadd.f32 %v66, %v74
  %v90 = vadd.f32 %v67, %v74
  %v91 = vadd.f32 %v68, %v74
  %v92 = vmax.f32 %v76, 0.0
  %v93 = vmax.f32 %v77, 0.0
  %v94 = vmax.f32 %v78, 0.0
  %v95 = vmax.f32 %v79, 0.0
  %v96 = vmax.f32 %v80, 0.0
  %v97 = vmax.f32 %v81, 0.0
  %v98 = vmax.f32 %v82, 0.0
  %v99 = vmax.f32 %v83, 0.0
  %v100 = vmax.f32 %v84, 0.0
  %v101 = vmax.f32 %v85, 0.0
  %v102 = vmax.f32 %v86, 0.0
  %v103 = vmax.f32 %v87, 0.0
  %v104 = vmax.f32 %v88, 0.0
  %v105 = vmax.f32 %v89, 0.0
  %v106 = vmax.f32 %v90, 0.0
  %v107 = vmax.f32 %v91, 0.0
  %v108 = vpack.c.bf16 %v93, %v92
  %v109 = vpack.c.bf16 %v95, %v94
  %v110 = vpack.c.bf16 %v97, %v96
  %v111 = vpack.c.bf16 %v99, %v98
  %v112 = vpack.c.bf16 %v101, %v100
  %v113 = vpack.c.bf16 %v103, %v102
  %v114 = vpack.c.bf16 %v105, %v104
  %v115 = vpack.c.bf16 %v107, %v106
  %v124 = vunpack.c.l.b16 %v108
  %v125 = vunpack.c.h.b16 %v108
  %v126 = vunpack.c.l.b16 %v109
  %v127 = vunpack.c.h.b16 %v109
  %v128 = vunpack.c.l.b16 %v110
  %v129 = vunpack.c.h.b16 %v110
  %v130 = vunpack.c.l.b16 %v111
  %v131 = vunpack.c.h.b16 %v111
  %v132 = vunpack.c.l.b16 %v112
  %v133 = vunpack.c.h.b16 %v112
  %v134 = vunpack.c.l.b16 %v113
  %v135 = vunpack.c.h.b16 %v113
  %v136 = vunpack.c.l.b16 %v114
  %v137 = vunpack.c.h.b16 %v114
  %v138 = vunpack.c.l.b16 %v115
  %v139 = vunpack.c.h.b16 %v115
  %v140 = vpack.c.b16 %v124, %v124
  %v141 = vpack.c.b16 %v125, %v125
  %v142 = vpack.c.b16 %v126, %v126
  %v143 = vpack.c.b16 %v127, %v127
  %v144 = vpack.c.b16 %v128, %v128
  %v145 = vpack.c.b16 %v129, %v129
  %v146 = vpack.c.b16 %v130, %v130
  %v147 = vpack.c.b16 %v131, %v131
  %v148 = vpack.c.b16 %v132, %v132
  %v149 = vpack.c.b16 %v133, %v133
  %v150 = vpack.c.b16 %v134, %v134
  %v151 = vpack.c.b16 %v135, %v135
  %v152 = vpack.c.b16 %v136, %v136
  %v153 = vpack.c.b16 %v137, %v137
  %v154 = vpack.c.b16 %v138, %v138
  %v155 = vpack.c.b16 %v139, %v139
  %172 = vst [vmem:[%s3] sm:$0xf] %v140
  %173 = vst [vmem:[%s3 + $0x4] sm:$0xf] %v141
  %174 = vst [vmem:[%s3 + $0x8] sm:$0xf] %v142
  %175 = vst [vmem:[%s3 + $0xc] sm:$0xf] %v143
  %176 = vst [vmem:[%s3 + $0x10] sm:$0xf] %v144
  %177 = vst [vmem:[%s3 + $0x14] sm:$0xf] %v145
  %178 = vst [vmem:[%s3 + $0x18] sm:$0xf] %v146
  %179 = vst [vmem:[%s3 + $0x1c] sm:$0xf] %v147
  %180 = vst [vmem:[%s3 + $0x20] sm:$0xf] %v148
  %181 = vst [vmem:[%s3 + $0x24] sm:$0xf] %v149
  %182 = vst [vmem:[%s3 + $0x28] sm:$0xf] %v150
  %183 = vst [vmem:[%s3 + $0x2c] sm:$0xf] %v151
  %184 = vst [vmem:[%s3 + $0x30] sm:$0xf] %v152
  %185 = vst [vmem:[%s3 + $0x34] sm:$0xf] %v153
  %186 = vst [vmem:[%s3 + $0x38] sm:$0xf] %v154
  %187 = vst [vmem:[%s3 + $0x3c] sm:$0xf] %v155
  // Predicated region
  $region14: #{gand_forward.12} parent=0 // pred_check
    _
  $region15: #{gand_forward.12} parent=0 // pred_check_branch
    %189 = sbr.rel (0) target = $region17
  $region16: #{gand_forward.12} parent=0 // pred_region
    _
  $region17: #{gand_forward.12} parent=0 // pred_fallthru
    _
  // Predicated region
  $region18: #{gand_forward.12} parent=0 // pred_check
    _
  $region19: #{gand_forward.12} parent=0 // pred_check_branch
    %191 = sbr.rel (0) target = $region21
  $region20: #{gand_forward.12} parent=0 // pred_region
    _
  $region21: #{gand_forward.12} parent=0 // pred_fallthru
    _

// kernel: gand_forward.13
$region0: #{gand_forward.13}
  #allocation0 [shape = 'u32[]', space=smem, size = 0x4, offset = 0x4, fixed_abs, tag = 'smem constant byte address 0x4 - core index']
  #allocation1 [shape = 'u32[144,128]{1,0:T(1,128)}', space=vmem, size = 0x12000, scoped, tag = 'internal scratch']
  #allocation2 [shape = 'f32[32,128]{1,0:T(8,128)}', space=vmem, size = 0x4000, scoped, tag = 'scratch operand']
  %s0 = inlined_call_operand.vmem [shape: bf16[32,512], index: 0, kind: input, shape index: {}]
  %s1 = inlined_call_operand.vmem [shape: bf16[512,128], index: 1, kind: input, shape index: {}]
  %s2 = inlined_call_operand.vmem [shape: f32[32,128], index: 2, kind: output, shape index: {0}]
  %s3 = inlined_call_operand.vmem [shape: f32[1,8,128], index: 3, kind: output, shape index: {1}]
  %s4 = inlined_call_operand.vmem [shape: f32[1,8,128], index: 4, kind: output, shape index: {2}]
  %5 = xla_tuple %s2, %s3, %s4
  %s6 = sld [smem:[#allocation0]]
  $region42: #{gand_forward.13} parent=0
    _
  %s8 = ssub.s32 1, %s6
  %s9 = scalar_select 0, %s8, %s6
  // Predicated region
  $region2: #{gand_forward.13} parent=0 // pred_check
    _
  $region3: #{gand_forward.13} parent=0 // pred_check_branch
    %11 = sbr.rel (0) target = $region5
  $region4: #{gand_forward.13} parent=0 // pred_region
    _
  $region5: #{gand_forward.13} parent=0 // pred_fallthru
    _
  // Predicated region
  $region6: #{gand_forward.13} parent=0 // pred_check
    _
  $region7: #{gand_forward.13} parent=0 // pred_check_branch
    %13 = sbr.rel (0) target = $region9
  $region8: #{gand_forward.13} parent=0 // pred_region
    _
  $region9: #{gand_forward.13} parent=0 // pred_fallthru
    _
  %p15 = scmp.eq.s32.totalorder 0, 0
  // Predicated region
  $region10: #{gand_forward.13} parent=0 // pred_check
    %p16 = pneg %p15
  $region11: #{gand_forward.13} parent=0 // pred_check_branch
    %18 = sbr.rel (%p16) target = $region13
  $region12: #{gand_forward.13} parent=0 // pred_region
    %19 = vst [vmem:[#allocation2] sm:$0xff] 0.0
    %20 = vst [vmem:[#allocation2 + $0x8] sm:$0xff] 0.0
    %21 = vst [vmem:[#allocation2 + $0x10] sm:$0xff] 0.0
    %22 = vst [vmem:[#allocation2 + $0x18] sm:$0xff] 0.0
  $region13: #{gand_forward.13} parent=0 // pred_fallthru
    _
  %v23 = vld [vmem:[#allocation2] sm:$0xff]
  %v24 = vld [vmem:[#allocation2 + $0x8] sm:$0xff]
  %v25 = vld [vmem:[#allocation2 + $0x10] sm:$0xff]
  %v26 = vld [vmem:[#allocation2 + $0x18] sm:$0xff]
  %v27 = vld [vmem:[%s0] sm:$0xff]
  %v28 = vld [vmem:[%s0 + $0x8] sm:$0xff]
  %v29 = vld [vmem:[%s0 + $0x10] sm:$0xff]
  %v30 = vld [vmem:[%s0 + $0x18] sm:$0xff]
  %v31 = vld [vmem:[%s0 + $0x20] sm:$0xff]
  %v32 = vld [vmem:[%s0 + $0x28] sm:$0xff]
  %v33 = vld [vmem:[%s0 + $0x30] sm:$0xff]
  %v34 = vld [vmem:[%s0 + $0x38] sm:$0xff]
  %v35 = vld [vmem:[%s1] sm:$0xf]
  %v36 = vld [vmem:[%s1 + $0x4] sm:$0xf]
  %v37 = vld [vmem:[%s1 + $0x8] sm:$0xf]
  %v38 = vld [vmem:[%s1 + $0xc] sm:$0xf]
  %v39 = vld [vmem:[%s1 + $0x10] sm:$0xf]
  %v40 = vld [vmem:[%s1 + $0x14] sm:$0xf]
  %v41 = vld [vmem:[%s1 + $0x18] sm:$0xf]
  %v42 = vld [vmem:[%s1 + $0x1c] sm:$0xf]
  %v43 = vld [vmem:[%s1 + $0x20] sm:$0xf]
  %v44 = vld [vmem:[%s1 + $0x24] sm:$0xf]
  %v45 = vld [vmem:[%s1 + $0x28] sm:$0xf]
  %v46 = vld [vmem:[%s1 + $0x2c] sm:$0xf]
  %v47 = vld [vmem:[%s1 + $0x30] sm:$0xf]
  %v48 = vld [vmem:[%s1 + $0x34] sm:$0xf]
  %v49 = vld [vmem:[%s1 + $0x38] sm:$0xf]
  %v50 = vld [vmem:[%s1 + $0x3c] sm:$0xf]
  %v51 = vld [vmem:[%s1 + $0x40] sm:$0xf]
  %v52 = vld [vmem:[%s1 + $0x44] sm:$0xf]
  %v53 = vld [vmem:[%s1 + $0x48] sm:$0xf]
  %v54 = vld [vmem:[%s1 + $0x4c] sm:$0xf]
  %v55 = vld [vmem:[%s1 + $0x50] sm:$0xf]
  %v56 = vld [vmem:[%s1 + $0x54] sm:$0xf]
  %v57 = vld [vmem:[%s1 + $0x58] sm:$0xf]
  %v58 = vld [vmem:[%s1 + $0x5c] sm:$0xf]
  %v59 = vld [vmem:[%s1 + $0x60] sm:$0xf]
  %v60 = vld [vmem:[%s1 + $0x64] sm:$0xf]
  %v61 = vld [vmem:[%s1 + $0x68] sm:$0xf]
  %v62 = vld [vmem:[%s1 + $0x6c] sm:$0xf]
  %v63 = vld [vmem:[%s1 + $0x70] sm:$0xf]
  %v64 = vld [vmem:[%s1 + $0x74] sm:$0xf]
  %v65 = vld [vmem:[%s1 + $0x78] sm:$0xf]
  %v66 = vld [vmem:[%s1 + $0x7c] sm:$0xf]
  %v67 = vld [vmem:[%s1 + $0x80] sm:$0xf]
  %v68 = vld [vmem:[%s1 + $0x84] sm:$0xf]
  %v69 = vld [vmem:[%s1 + $0x88] sm:$0xf]
  %v70 = vld [vmem:[%s1 + $0x8c] sm:$0xf]
  %v71 = vld [vmem:[%s1 + $0x90] sm:$0xf]
  %v72 = vld [vmem:[%s1 + $0x94] sm:$0xf]
  %v73 = vld [vmem:[%s1 + $0x98] sm:$0xf]
  %v74 = vld [vmem:[%s1 + $0x9c] sm:$0xf]
  %v75 = vld [vmem:[%s1 + $0xa0] sm:$0xf]
  %v76 = vld [vmem:[%s1 + $0xa4] sm:$0xf]
  %v77 = vld [vmem:[%s1 + $0xa8] sm:$0xf]
  %v78 = vld [vmem:[%s1 + $0xac] sm:$0xf]
  %v79 = vld [vmem:[%s1 + $0xb0] sm:$0xf]
  %v80 = vld [vmem:[%s1 + $0xb4] sm:$0xf]
  %v81 = vld [vmem:[%s1 + $0xb8] sm:$0xf]
  %v82 = vld [vmem:[%s1 + $0xbc] sm:$0xf]
  %v83 = vld [vmem:[%s1 + $0xc0] sm:$0xf]
  %v84 = vld [vmem:[%s1 + $0xc4] sm:$0xf]
  %v85 = vld [vmem:[%s1 + $0xc8] sm:$0xf]
  %v86 = vld [vmem:[%s1 + $0xcc] sm:$0xf]
  %v87 = vld [vmem:[%s1 + $0xd0] sm:$0xf]
  %v88 = vld [vmem:[%s1 + $0xd4] sm:$0xf]
  %v89 = vld [vmem:[%s1 + $0xd8] sm:$0xf]
  %v90 = vld [vmem:[%s1 + $0xdc] sm:$0xf]
  %v91 = vld [vmem:[%s1 + $0xe0] sm:$0xf]
  %v92 = vld [vmem:[%s1 + $0xe4] sm:$0xf]
  %v93 = vld [vmem:[%s1 + $0xe8] sm:$0xf]
  %v94 = vld [vmem:[%s1 + $0xec] sm:$0xf]
  %v95 = vld [vmem:[%s1 + $0xf0] sm:$0xf]
  %v96 = vld [vmem:[%s1 + $0xf4] sm:$0xf]
  %v97 = vld [vmem:[%s1 + $0xf8] sm:$0xf]
  %v98 = vld [vmem:[%s1 + $0xfc] sm:$0xf]
  %v107 = vunpack.c.l.b16 %v27
  %v108 = vunpack.c.h.b16 %v27
  %v109 = vunpack.c.l.b16 %v28
  %v110 = vunpack.c.h.b16 %v28
  %v111 = vunpack.c.l.b16 %v29
  %v112 = vunpack.c.h.b16 %v29
  %v113 = vunpack.c.l.b16 %v30
  %v114 = vunpack.c.h.b16 %v30
  %v115 = vunpack.c.l.b16 %v31
  %v116 = vunpack.c.h.b16 %v31
  %v117 = vunpack.c.l.b16 %v32
  %v118 = vunpack.c.h.b16 %v32
  %v119 = vunpack.c.l.b16 %v33
  %v120 = vunpack.c.h.b16 %v33
  %v121 = vunpack.c.l.b16 %v34
  %v122 = vunpack.c.h.b16 %v34
  %v123 = vpack.c.b16 %v111, %v107
  %v124 = vpack.c.b16 %v112, %v108
  %v125 = vpack.c.b16 %v113, %v109
  %v126 = vpack.c.b16 %v114, %v110
  %v127 = vpack.c.b16 %v119, %v115
  %v128 = vpack.c.b16 %v120, %v116
  %v129 = vpack.c.b16 %v121, %v117
  %v130 = vpack.c.b16 %v122, %v118
  %v203 = vunpack.c.l.b16 %v35
  %v204 = vunpack.c.l.b16 %v36
  %v205 = vunpack.c.l.b16 %v37
  %v206 = vunpack.c.l.b16 %v38
  %v207 = vunpack.c.l.b16 %v39
  %v208 = vunpack.c.l.b16 %v40
  %v209 = vunpack.c.l.b16 %v41
  %v210 = vunpack.c.l.b16 %v42
  %v211 = vunpack.c.l.b16 %v43
  %v212 = vunpack.c.l.b16 %v44
  %v213 = vunpack.c.l.b16 %v45
  %v214 = vunpack.c.l.b16 %v46
  %v215 = vunpack.c.l.b16 %v47
  %v216 = vunpack.c.l.b16 %v48
  %v217 = vunpack.c.l.b16 %v49
  %v218 = vunpack.c.l.b16 %v50
  %v219 = vunpack.c.l.b16 %v51
  %v220 = vunpack.c.l.b16 %v52
  %v221 = vunpack.c.l.b16 %v53
  %v222 = vunpack.c.l.b16 %v54
  %v223 = vunpack.c.l.b16 %v55
  %v224 = vunpack.c.l.b16 %v56
  %v225 = vunpack.c.l.b16 %v57
  %v226 = vunpack.c.l.b16 %v58
  %v227 = vunpack.c.l.b16 %v59
  %v228 = vunpack.c.l.b16 %v60
  %v229 = vunpack.c.l.b16 %v61
  %v230 = vunpack.c.l.b16 %v62
  %v231 = vunpack.c.l.b16 %v63
  %v232 = vunpack.c.l.b16 %v64
  %v233 = vunpack.c.l.b16 %v65
  %v234 = vunpack.c.l.b16 %v66
  %v235 = vunpack.c.l.b16 %v67
  %v236 = vunpack.c.l.b16 %v68
  %v237 = vunpack.c.l.b16 %v69
  %v238 = vunpack.c.l.b16 %v70
  %v239 = vunpack.c.l.b16 %v71
  %v240 = vunpack.c.l.b16 %v72
  %v241 = vunpack.c.l.b16 %v73
  %v242 = vunpack.c.l.b16 %v74
  %v243 = vunpack.c.l.b16 %v75
  %v244 = vunpack.c.l.b16 %v76
  %v245 = vunpack.c.l.b16 %v77
  %v246 = vunpack.c.l.b16 %v78
  %v247 = vunpack.c.l.b16 %v79
  %v248 = vunpack.c.l.b16 %v80
  %v249 = vunpack.c.l.b16 %v81
  %v250 = vunpack.c.l.b16 %v82
  %v251 = vunpack.c.l.b16 %v83
  %v252 = vunpack.c.l.b16 %v84
  %v253 = vunpack.c.l.b16 %v85
  %v254 = vunpack.c.l.b16 %v86
  %v255 = vunpack.c.l.b16 %v87
  %v256 = vunpack.c.l.b16 %v88
  %v257 = vunpack.c.l.b16 %v89
  %v258 = vunpack.c.l.b16 %v90
  %v259 = vunpack.c.l.b16 %v91
  %v260 = vunpack.c.l.b16 %v92
  %v261 = vunpack.c.l.b16 %v93
  %v262 = vunpack.c.l.b16 %v94
  %v263 = vunpack.c.l.b16 %v95
  %v264 = vunpack.c.l.b16 %v96
  %v265 = vunpack.c.l.b16 %v97
  %v266 = vunpack.c.l.b16 %v98
  %v267 = vpack.c.b16 %v204, %v203
  %v268 = vpack.c.b16 %v206, %v205
  %v269 = vpack.c.b16 %v208, %v207
  %v270 = vpack.c.b16 %v210, %v209
  %v271 = vpack.c.b16 %v212, %v211
  %v272 = vpack.c.b16 %v214, %v213
  %v273 = vpack.c.b16 %v216, %v215
  %v274 = vpack.c.b16 %v218, %v217
  %v275 = vpack.c.b16 %v220, %v219
  %v276 = vpack.c.b16 %v222, %v221
  %v277 = vpack.c.b16 %v224, %v223
  %v278 = vpack.c.b16 %v226, %v225
  %v279 = vpack.c.b16 %v228, %v227
  %v280 = vpack.c.b16 %v230, %v229
  %v281 = vpack.c.b16 %v232, %v231
  %v282 = vpack.c.b16 %v234, %v233
  %v283 = vpack.c.b16 %v236, %v235
  %v284 = vpack.c.b16 %v238, %v237
  %v285 = vpack.c.b16 %v240, %v239
  %v286 = vpack.c.b16 %v242, %v241
  %v287 = vpack.c.b16 %v244, %v243
  %v288 = vpack.c.b16 %v246, %v245
  %v289 = vpack.c.b16 %v248, %v247
  %v290 = vpack.c.b16 %v250, %v249
  %v291 = vpack.c.b16 %v252, %v251
  %v292 = vpack.c.b16 %v254, %v253
  %v293 = vpack.c.b16 %v256, %v255
  %v294 = vpack.c.b16 %v258, %v257
  %v295 = vpack.c.b16 %v260, %v259
  %v296 = vpack.c.b16 %v262, %v261
  %v297 = vpack.c.b16 %v264, %v263
  %v298 = vpack.c.b16 %v266, %v265
  %331 = vmatprep.subr.bf16.mxu0 0
  %332 = vmatpush1.bf16.msra.mxu0 %v274
  %333 = vmatprep.subr.bf16.mxu0 0
  %334 = vmatpush1.bf16.msra.mxu0 %v273
  %335 = vmatprep.subr.bf16.mxu0 0
  %336 = vmatpush1.bf16.msra.mxu0 %v272
  %337 = vmatprep.subr.bf16.mxu0 0
  %338 = vmatpush1.bf16.msra.mxu0 %v271
  %339 = vmatprep.subr.bf16.mxu0 0
  %340 = vmatpush1.bf16.msra.mxu0 %v270
  %341 = vmatprep.subr.bf16.mxu0 0
  %342 = vmatpush1.bf16.msra.mxu0 %v269
  %343 = vmatprep.subr.bf16.mxu0 0
  %344 = vmatpush1.bf16.msra.mxu0 %v268
  %345 = vmatprep.subr.bf16.mxu0 0
  %346 = vmatpush1.bf16.msra.mxu0 %v267
  %347 = vmatprep.subr.bf16.mxu0 0
  %348 = vmatpush2.bf16.msra.mxu0 %v282
  %349 = vmatprep.subr.bf16.mxu0 0
  %350 = vmatpush2.bf16.msra.mxu0 %v281
  %351 = vmatprep.subr.bf16.mxu0 0
  %352 = vmatpush2.bf16.msra.mxu0 %v280
  %353 = vmatprep.subr.bf16.mxu0 0
  %354 = vmatpush2.bf16.msra.mxu0 %v279
  %355 = vmatprep.subr.bf16.mxu0 0
  %356 = vmatpush2.bf16.msra.mxu0 %v278
  %357 = vmatprep.subr.bf16.mxu0 0
  %358 = vmatpush2.bf16.msra.mxu0 %v277
  %359 = vmatprep.subr.bf16.mxu0 0
  %360 = vmatpush2.bf16.msra.mxu0 %v276
  %361 = vmatprep.subr.bf16.mxu0 0
  %362 = vmatpush2.bf16.msra.mxu0 %v275
  %363 = vmatprep.mubr.bf16.mxu0 %v124
  %364 = vmatmul.mubr.bf16.gmra.mxu0 %v123
  %v365 = vpop.f32.mrf.mxu0
  %v366 = vadd.f32 0.0, %v365
  %v367 = vpop.f32.mrf.mxu0
  %v368 = vpop.f32.mrf.mxu0
  %v369 = vadd.f32 0.0, %v368
  %v370 = vpop.f32.mrf.mxu0
  %371 = vmatprep.mubr.bf16.mxu0 %v128
  %372 = vmatmul.mubr.bf16.gmra.mxu0 %v127
  %v373 = vpop.f32.mrf.mxu0
  %v374 = vadd.f32 0.0, %v373
  %v375 = vpop.f32.mrf.mxu0
  %v376 = vpop.f32.mrf.mxu0
  %v377 = vadd.f32 0.0, %v376
  %v378 = vpop.f32.mrf.mxu0
  %379 = vdwg.mxu0
  %380 = vmatprep.subr.bf16.mxu0 0
  %381 = vmatpush1.bf16.msra.mxu0 %v290
  %382 = vmatprep.subr.bf16.mxu0 0
  %383 = vmatpush1.bf16.msra.mxu0 %v289
  %384 = vmatprep.subr.bf16.mxu0 0
  %385 = vmatpush1.bf16.msra.mxu0 %v288
  %386 = vmatprep.subr.bf16.mxu0 0
  %387 = vmatpush1.bf16.msra.mxu0 %v287
  %388 = vmatprep.subr.bf16.mxu0 0
  %389 = vmatpush1.bf16.msra.mxu0 %v286
  %390 = vmatprep.subr.bf16.mxu0 0
  %391 = vmatpush1.bf16.msra.mxu0 %v285
  %392 = vmatprep.subr.bf16.mxu0 0
  %393 = vmatpush1.bf16.msra.mxu0 %v284
  %394 = vmatprep.subr.bf16.mxu0 0
  %395 = vmatpush1.bf16.msra.mxu0 %v283
  %396 = vmatprep.subr.bf16.mxu0 0
  %397 = vmatpush2.bf16.msra.mxu0 %v298
  %398 = vmatprep.subr.bf16.mxu0 0
  %399 = vmatpush2.bf16.msra.mxu0 %v297
  %400 = vmatprep.subr.bf16.mxu0 0
  %401 = vmatpush2.bf16.msra.mxu0 %v296
  %402 = vmatprep.subr.bf16.mxu0 0
  %403 = vmatpush2.bf16.msra.mxu0 %v295
  %404 = vmatprep.subr.bf16.mxu0 0
  %405 = vmatpush2.bf16.msra.mxu0 %v294
  %406 = vmatprep.subr.bf16.mxu0 0
  %407 = vmatpush2.bf16.msra.mxu0 %v293
  %408 = vmatprep.subr.bf16.mxu0 0
  %409 = vmatpush2.bf16.msra.mxu0 %v292
  %410 = vmatprep.subr.bf16.mxu0 0
  %411 = vmatpush2.bf16.msra.mxu0 %v291
  %412 = vmatprep.mubr.bf16.mxu0 %v126
  %413 = vmatmul.mubr.bf16.gmra.mxu0 %v125
  %v414 = vpop.f32.mrf.mxu0
  %v415 = vadd.f32 %v366, %v414
  %v416 = vpop.f32.mrf.mxu0
  %v417 = vpop.f32.mrf.mxu0
  %v418 = vadd.f32 %v369, %v417
  %v419 = vpop.f32.mrf.mxu0
  %420 = vmatprep.mubr.bf16.mxu0 %v130
  %421 = vmatmul.mubr.bf16.gmra.mxu0 %v129
  %v422 = vpop.f32.mrf.mxu0
  %v423 = vadd.f32 %v374, %v422
  %v424 = vpop.f32.mrf.mxu0
  %v425 = vpop.f32.mrf.mxu0
  %v426 = vadd.f32 %v377, %v425
  %v427 = vpop.f32.mrf.mxu0
  %428 = vdwg.mxu0
  %v429 = vadd.f32 %v23, %v415
  %v430 = vadd.f32 %v24, %v418
  %v431 = vadd.f32 %v25, %v423
  %v432 = vadd.f32 %v26, %v426
  %433 = vst [vmem:[#allocation2] sm:$0xff] %v429
  %434 = vst [vmem:[#allocation2 + $0x8] sm:$0xff] %v430
  %435 = vst [vmem:[#allocation2 + $0x10] sm:$0xff] %v431
  %436 = vst [vmem:[#allocation2 + $0x18] sm:$0xff] %v432
  // Predicated region
  $region14: #{gand_forward.13} parent=0 // pred_check
    %p437 = pneg %p15
  $region15: #{gand_forward.13} parent=0 // pred_check_branch
    %439 = sbr.rel (%p437) target = $region17
  $region16: #{gand_forward.13} parent=0 // pred_region
    %v440 = vld [vmem:[#allocation2] sm:$0xff]
    %v441 = vld [vmem:[#allocation2 + $0x8] sm:$0xff]
    %v442 = vld [vmem:[#allocation2 + $0x10] sm:$0xff]
    %v443 = vld [vmem:[#allocation2 + $0x18] sm:$0xff]
    %v444 = vadd.f32 %v440, %v441
    %v445 = vadd.f32 %v444, %v442
    %v446 = vadd.f32 %v445, %v443
    %v447 = vrot.slane %v446, 4
    %v448 = vadd.f32 %v446, %v447
    %v449 = vrot.slane %v448, 2
    %v450 = vadd.f32 %v448, %v449
    %v451 = vrot.slane %v450, 1
    %v452 = vadd.f32 %v450, %v451
    %v453 = vmul.f32 %v440, %v440
    %v454 = vmul.f32 %v441, %v441
    %v455 = vmul.f32 %v442, %v442
    %v456 = vmul.f32 %v443, %v443
    %v457 = vadd.f32 %v453, %v454
    %v458 = vadd.f32 %v457, %v455
    %v459 = vadd.f32 %v458, %v456
    %v460 = vrot.slane %v459, 4
    %v461 = vadd.f32 %v459, %v460
    %v462 = vrot.slane %v461, 2
    %v463 = vadd.f32 %v461, %v462
    %v464 = vrot.slane %v463, 1
    %v465 = vadd.f32 %v463, %v464
    %466 = vst [vmem:[%s3] sm:$0xff] %v452
    %467 = vst [vmem:[%s4] sm:$0xff] %v465
    %468 = vst [vmem:[%s2] sm:$0xff] %v440
    %469 = vst [vmem:[%s2 + $0x8] sm:$0xff] %v441
    %470 = vst [vmem:[%s2 + $0x10] sm:$0xff] %v442
    %471 = vst [vmem:[%s2 + $0x18] sm:$0xff] %v443
  $region17: #{gand_forward.13} parent=0 // pred_fallthru
    _
  // Predicated region
  $region18: #{gand_forward.13} parent=0 // pred_check
    _
  $region19: #{gand_forward.13} parent=0 // pred_check_branch
    %473 = sbr.rel (0) target = $region21
  $region20: #{gand_forward.13} parent=0 // pred_region
    _
  $region21: #{gand_forward.13} parent=0 // pred_fallthru
    _
  // Predicated region
  $region22: #{gand_forward.13} parent=0 // pred_check
    _
  $region23: #{gand_forward.13} parent=0 // pred_check_branch
    %475 = sbr.rel (0) target = $region25
  $region24: #{gand_forward.13} parent=0 // pred_region
    _
  $region25: #{gand_forward.13} parent=0 // pred_fallthru
    _
  // Predicated region
  $region26: #{gand_forward.13} parent=0 // pred_check
    _
  $region27: #{gand_forward.13} parent=0 // pred_check_branch
    %477 = sbr.rel (0) target = $region29
  $region28: #{gand_forward.13} parent=0 // pred_region
    _
  $region29: #{gand_forward.13} parent=0 // pred_fallthru
    _
  // Predicated region
  $region30: #{gand_forward.13} parent=0 // pred_check
    _
  $region31: #{gand_forward.13} parent=0 // pred_check_branch
    %479 = sbr.rel (0) target = $region33
  $region32: #{gand_forward.13} parent=0 // pred_region
    _
  $region33: #{gand_forward.13} parent=0 // pred_fallthru
    _
  // Predicated region
  $region34: #{gand_forward.13} parent=0 // pred_check
    _
  $region35: #{gand_forward.13} parent=0 // pred_check_branch
    %481 = sbr.rel (0) target = $region37
  $region36: #{gand_forward.13} parent=0 // pred_region
    _
  $region37: #{gand_forward.13} parent=0 // pred_fallthru
    _
  // Predicated region
  $region38: #{gand_forward.13} parent=0 // pred_check
    _
  $region39: #{gand_forward.13} parent=0 // pred_check_branch
    %483 = sbr.rel (0) target = $region41
  $region40: #{gand_forward.13} parent=0 // pred_region
    _
  $region41: #{gand_forward.13} parent=0 // pred_fallthru
    _

// kernel: gand_forward.14
$region0: #{gand_forward.14}
  #allocation0 [shape = 'u32[]', space=smem, size = 0x4, offset = 0x4, fixed_abs, tag = 'smem constant byte address 0x4 - core index']
  #allocation1 [shape = 'u32[144,128]{1,0:T(1,128)}', space=vmem, size = 0x12000, scoped, tag = 'internal scratch']
  %s0 = inlined_call_operand.vmem [shape: f32[32,128], index: 0, kind: input, shape index: {}]
  %s1 = inlined_call_operand.vmem [shape: f32[1,128], index: 1, kind: input, shape index: {}]
  %s2 = inlined_call_operand.vmem [shape: f32[1,128], index: 2, kind: input, shape index: {}]
  %s3 = inlined_call_operand.vmem [shape: bf16[32,128], index: 3, kind: output, shape index: {}]
  %s4 = sld [smem:[#allocation0]]
  $region22: #{gand_forward.14} parent=0
    _
  %s6 = ssub.s32 1, %s4
  %s7 = scalar_select 0, %s6, %s4
  // Predicated region
  $region2: #{gand_forward.14} parent=0 // pred_check
    _
  $region3: #{gand_forward.14} parent=0 // pred_check_branch
    %9 = sbr.rel (0) target = $region5
  $region4: #{gand_forward.14} parent=0 // pred_region
    _
  $region5: #{gand_forward.14} parent=0 // pred_fallthru
    _
  // Predicated region
  $region6: #{gand_forward.14} parent=0 // pred_check
    _
  $region7: #{gand_forward.14} parent=0 // pred_check_branch
    %11 = sbr.rel (0) target = $region9
  $region8: #{gand_forward.14} parent=0 // pred_region
    _
  $region9: #{gand_forward.14} parent=0 // pred_fallthru
    _
  // Predicated region
  $region10: #{gand_forward.14} parent=0 // pred_check
    _
  $region11: #{gand_forward.14} parent=0 // pred_check_branch
    %13 = sbr.rel (0) target = $region13
  $region12: #{gand_forward.14} parent=0 // pred_region
    _
  $region13: #{gand_forward.14} parent=0 // pred_fallthru
    _
  %v14 = vld [vmem:[%s0] sm:$0xff]
  %v15 = vld [vmem:[%s0 + $0x8] sm:$0xff]
  %v16 = vld [vmem:[%s0 + $0x10] sm:$0xff]
  %v17 = vld [vmem:[%s0 + $0x18] sm:$0xff]
  %v18 = vld [vmem:[%s1] sm:$0x1]
  %v20 = vlaneseq
  %v21 = vshrl.u32 %v20, 7
  %v22 = vsub.s32 0, %v21
  %v23 = vrot.slane %v18, %v22
  %v25 = vmul.f32 %v14, %v23
  %v26 = vmul.f32 %v15, %v23
  %v27 = vmul.f32 %v16, %v23
  %v28 = vmul.f32 %v17, %v23
  %v29 = vld [vmem:[%s2] sm:$0x1]
  %v31 = vlaneseq
  %v32 = vshrl.u32 %v31, 7
  %v33 = vsub.s32 0, %v32
  %v34 = vrot.slane %v29, %v33
  %v36 = vadd.f32 %v25, %v34
  %v37 = vadd.f32 %v26, %v34
  %v38 = vadd.f32 %v27, %v34
  %v39 = vadd.f32 %v28, %v34
  %v40 = vmax.f32 %v36, 0.0
  %v41 = vmax.f32 %v37, 0.0
  %v42 = vmax.f32 %v38, 0.0
  %v43 = vmax.f32 %v39, 0.0
  %v44 = vpack.c.bf16 %v41, %v40
  %v45 = vpack.c.bf16 %v43, %v42
  %v48 = vunpack.c.l.b16 %v44
  %v49 = vunpack.c.h.b16 %v44
  %v50 = vunpack.c.l.b16 %v45
  %v51 = vunpack.c.h.b16 %v45
  %v52 = vpack.c.b16 %v48, %v48
  %v53 = vpack.c.b16 %v49, %v49
  %v54 = vpack.c.b16 %v50, %v50
  %v55 = vpack.c.b16 %v51, %v51
  %60 = vst [vmem:[%s3] sm:$0xf] %v52
  %61 = vst [vmem:[%s3 + $0x4] sm:$0xf] %v53
  %62 = vst [vmem:[%s3 + $0x8] sm:$0xf] %v54
  %63 = vst [vmem:[%s3 + $0xc] sm:$0xf] %v55
  // Predicated region
  $region14: #{gand_forward.14} parent=0 // pred_check
    _
  $region15: #{gand_forward.14} parent=0 // pred_check_branch
    %65 = sbr.rel (0) target = $region17
  $region16: #{gand_forward.14} parent=0 // pred_region
    _
  $region17: #{gand_forward.14} parent=0 // pred_fallthru
    _
  // Predicated region
  $region18: #{gand_forward.14} parent=0 // pred_check
    _
  $region19: #{gand_forward.14} parent=0 // pred_check_branch
    %67 = sbr.rel (0) target = $region21
  $region20: #{gand_forward.14} parent=0 // pred_region
    _
  $region21: #{gand_forward.14} parent=0 // pred_fallthru
    _

// kernel: gand_forward.15
$region0: #{gand_forward.15}
  #allocation0 [shape = 'u32[]', space=smem, size = 0x4, offset = 0x4, fixed_abs, tag = 'smem constant byte address 0x4 - core index']
  #allocation1 [shape = 'u32[144,128]{1,0:T(1,128)}', space=vmem, size = 0x12000, scoped, tag = 'internal scratch']
  #allocation2 [shape = 'f32[8,128]{1,0:T(8,128)}', space=vmem, size = 0x1000, scoped, tag = 'scratch operand']
  %s0 = inlined_call_operand.vmem [shape: bf16[8,1024], index: 0, kind: input, shape index: {}]
  %s1 = inlined_call_operand.vmem [shape: bf16[1024,128], index: 1, kind: input, shape index: {}]
  %s2 = inlined_call_operand.vmem [shape: f32[8,128], index: 2, kind: output, shape index: {}]
  %s3 = sld [smem:[#allocation0]]
  $region49: #{gand_forward.15} parent=0
    _
  %s5 = ssub.s32 1, %s3
  %s6 = scalar_select 0, %s5, %s3
  loop: start=0, step=1, limit=4
  $region2: #{gand_forward.15} parent=0 // loop_pre_header
    _
  $region3: #{gand_forward.15} parent=0 // loop_header
    %s8 = sphi 0, %s12
    %p9 = scmp.ge.s32.totalorder %s8, 4
    %s15 = sphi 0, %s34
    %s16 = sphi 0, %s30
    %s17 = sphi 0, %s26
    %s18 = sphi 0, %s15
    %s19 = sphi 0, %s16
    %s20 = sphi 0, %s17
    %s21 = sphi 0, %s18
    %s22 = sphi 0, %s19
    %s23 = sphi 0, %s20
    %s39 = sphi 0, %s41
    %s42 = sphi 0, %s39
    %s43 = sphi 0, %s42
    %s59 = sphi 0, %s43
    %s67 = sphi 0, %s69
    %s70 = sphi 0, %s67
    %s71 = sphi 0, %s70
    %s87 = sphi 0, %s71
    %s95 = sphi 0, %s97
    %s98 = sphi 0, %s95
    %s99 = sphi 0, %s98
    %s115 = sphi 0, %s99
  $region4: #{gand_forward.15} parent=0 // loop_header_branch
    %11 = sbr.rel (%p9) target = $region8
  $region5: #{gand_forward.15} parent=0 // loop_body
    %s13 = ssub.s32 %s8, 1
    %s14 = ssub.s32 %s8, 2
    %s24 = sadd.s32 1, %s17
    %p25 = scmp.ge.s32.totalorder %s24, 2
    %s26 = scalar_select %p25, 0, %s24
    %s27 = sadd.s32 1, %s16
    %s28 = scalar_select %p25, %s27, %s16
    %p29 = scmp.ge.s32.totalorder %s28, 1
    %s30 = scalar_select %p29, 0, %s28
    %s31 = sadd.s32 1, %s15
    %s32 = scalar_select %p29, %s31, %s15
    %p33 = scmp.ge.s32.totalorder %s32, 1
    %s34 = scalar_select %p33, 0, %s32
    %s35 = ssub.s32 %s15, %s34
    %s36 = ssub.s32 %s17, %s26
    %s37 = sor.u32 %s35, %s36
    %p38 = scmp.eq.s32.totalorder %s37, 0
    %s40 = sadd.s32 %s39, 1
    %s41 = scalar_select %p38, %s39, %s40
    %p44 = pneg %p38
    %p45 = scmp.eq.s32.totalorder %s8, 1
    %p46 = por %p44, %p45
    %p47 = scmp.ne.s32.totalorder %s39, %s42
    %p48 = scmp.eq.s32.totalorder %s8, 0
    %p49 = por %p47, %p48
    %p50 = scmp.ne.s32.totalorder %s39, %s42
    %p51 = scmp.eq.s32.totalorder %s13, 1
    %p52 = por %p50, %p51
    %p53 = scmp.ne.s32.totalorder %s42, %s43
    %p54 = scmp.eq.s32.totalorder %s13, 0
    %p55 = por %p53, %p54
    %p56 = scmp.ne.s32.totalorder %s42, %s43
    %p57 = scmp.eq.s32.totalorder %s14, 1
    %p58 = por %p56, %p57
    %p60 = scmp.ne.s32.totalorder %s43, %s59
    %p61 = scmp.eq.s32.totalorder %s14, 0
    %p62 = por %p60, %p61
    %s63 = ssub.s32 %s17, %s26
    %s64 = ssub.s32 %s16, %s30
    %s65 = sor.u32 %s63, %s64
    %p66 = scmp.eq.s32.totalorder %s65, 0
    %s68 = sadd.s32 %s67, 1
    %s69 = scalar_select %p66, %s67, %s68
    %p72 = pneg %p66
    %p73 = scmp.eq.s32.totalorder %s8, 1
    %p74 = por %p72, %p73
    %p75 = scmp.ne.s32.totalorder %s67, %s70
    %p76 = scmp.eq.s32.totalorder %s8, 0
    %p77 = por %p75, %p76
    %p78 = scmp.ne.s32.totalorder %s67, %s70
    %p79 = scmp.eq.s32.totalorder %s13, 1
    %p80 = por %p78, %p79
    %p81 = scmp.ne.s32.totalorder %s70, %s71
    %p82 = scmp.eq.s32.totalorder %s13, 0
    %p83 = por %p81, %p82
    %p84 = scmp.ne.s32.totalorder %s70, %s71
    %p85 = scmp.eq.s32.totalorder %s14, 1
    %p86 = por %p84, %p85
    %p88 = scmp.ne.s32.totalorder %s71, %s87
    %p89 = scmp.eq.s32.totalorder %s14, 0
    %p90 = por %p88, %p89
    %s91 = ssub.s32 %s15, %s34
    %s92 = ssub.s32 %s16, %s30
    %s93 = sor.u32 %s91, %s92
    %p94 = scmp.eq.s32.totalorder %s93, 0
    %s96 = sadd.s32 %s95, 1
    %s97 = scalar_select %p94, %s95, %s96
    %p100 = pneg %p94
    %p101 = scmp.eq.s32.totalorder %s8, 1
    %p102 = por %p100, %p101
    %p103 = scmp.ne.s32.totalorder %s95, %s98
    %p104 = scmp.eq.s32.totalorder %s8, 0
    %p105 = por %p103, %p104
    %p106 = scmp.ne.s32.totalorder %s95, %s98
    %p107 = scmp.eq.s32.totalorder %s13, 1
    %p108 = por %p106, %p107
    %p109 = scmp.ne.s32.totalorder %s98, %s99
    %p110 = scmp.eq.s32.totalorder %s13, 0
    %p111 = por %p109, %p110
    %p112 = scmp.ne.s32.totalorder %s98, %s99
    %p113 = scmp.eq.s32.totalorder %s14, 1
    %p114 = por %p112, %p113
    %p116 = scmp.ne.s32.totalorder %s99, %s115
    %p117 = scmp.eq.s32.totalorder %s14, 0
    %p118 = por %p116, %p117
    %p119 = scmp.le.s32.totalorder 1, %s8
    %p120 = scmp.lt.s32.totalorder %s8, 3
    %p121 = pnand %p119, %p120
    %p122 = pneg %p121
    // Predicated region
    $region9: #{gand_forward.15} parent=5 // pred_check
      _
    $region10: #{gand_forward.15} parent=5 // pred_check_branch
      %124 = sbr.rel (%p121) target = $region12
    $region11: #{gand_forward.15} parent=5 // pred_region
      %s125 = ssub.s32 %s8, 1
    $region12: #{gand_forward.15} parent=5 // pred_fallthru
      _
    %p126 = scmp.lt.s32.totalorder %s8, 2
    // Predicated region
    $region13: #{gand_forward.15} parent=5 // pred_check
      %p127 = pneg %p126
    $region14: #{gand_forward.15} parent=5 // pred_check_branch
      %129 = sbr.rel (%p127) target = $region16
    $region15: #{gand_forward.15} parent=5 // pred_region
      // Predicated region
      $region17: #{gand_forward.15} parent=15 // pred_check
        %p130 = pneg %p49
      $region18: #{gand_forward.15} parent=15 // pred_check_branch
        %132 = sbr.rel (%p130) target = $region20
      $region19: #{gand_forward.15} parent=15 // pred_region
        %s133 = smul.u32 4, %s17
        %p134 = scmp.lt.s32.totalorder %s15, 0
        %s135 = scalar_select %p134, %s15, 0
        %p136 = scmp.lt.s32.totalorder %s133, 7
        %s137 = scalar_select %p136, %s133, 7
        %s138 = smul.addr %s135, 8
        %s139 = sadd.s32 %s137, %s138
        %s140 = smul.addr %s139, 4
        %s141 = scalar_lea.vmem %s0, %s140
        %s142 = smul.u32 4, %s17
      $region20: #{gand_forward.15} parent=15 // pred_fallthru
        _
      // Predicated region
      $region21: #{gand_forward.15} parent=15 // pred_check
        %p143 = pneg %p77
      $region22: #{gand_forward.15} parent=15 // pred_check_branch
        %145 = sbr.rel (%p143) target = $region24
      $region23: #{gand_forward.15} parent=15 // pred_region
        %s146 = smul.u32 64, %s17
        %p147 = scmp.lt.s32.totalorder %s146, 127
        %s148 = scalar_select %p147, %s146, 127
        %p149 = scmp.lt.s32.totalorder %s16, 0
        %s150 = scalar_select %p149, %s16, 0
        %s151 = sadd.s32 %s150, %s148
        %s152 = smul.addr %s151, 4
        %s153 = scalar_lea.vmem %s1, %s152
        %s154 = smul.u32 64, %s17
      $region24: #{gand_forward.15} parent=15 // pred_fallthru
        _
    $region16: #{gand_forward.15} parent=5 // pred_fallthru
      _
    %p155 = scmp.le.s32.totalorder 1, %s8
    %p156 = scmp.lt.s32.totalorder %s8, 3
    %p157 = pnand %p155, %p156
    %p158 = pneg %p157
    // Predicated region
    $region25: #{gand_forward.15} parent=5 // pred_check
      _
    $region26: #{gand_forward.15} parent=5 // pred_check_branch
      %160 = sbr.rel (%p157) target = $region28
    $region27: #{gand_forward.15} parent=5 // pred_region
      %s161 = ssub.s32 %s8, 1
      %s162 = smul.u32 4, %s20
      %p163 = scmp.lt.s32.totalorder %s18, 0
      %s164 = scalar_select %p163, %s18, 0
      %p165 = scmp.lt.s32.totalorder %s162, 7
      %s166 = scalar_select %p165, %s162, 7
      %s167 = smul.addr %s164, 8
      %s168 = sadd.s32 %s166, %s167
      %s169 = smul.addr %s168, 4
      %s170 = scalar_lea.vmem %s0, %s169
      %p171 = pneg %p55
      %p172 = pneg %p52
      %s173 = smul.u32 64, %s20
      %p174 = scmp.lt.s32.totalorder %s173, 127
      %s175 = scalar_select %p174, %s173, 127
      %p176 = scmp.lt.s32.totalorder %s19, 0
      %s177 = scalar_select %p176, %s19, 0
      %s178 = sadd.s32 %s177, %s175
      %s179 = smul.addr %s178, 4
      %s180 = scalar_lea.vmem %s1, %s179
      %p181 = pneg %p83
      %p182 = pneg %p80
      %p183 = pneg %p111
      %p184 = pneg %p108
      %p185 = scmp.lt.s32.totalorder %s18, 0
      %s186 = scalar_select %p185, %s18, 0
      %p187 = scmp.lt.s32.totalorder %s19, 0
      %s188 = scalar_select %p187, %s19, 0
      %s189 = sadd.s32 %s188, %s186
      %s190 = smul.addr %s189, 8
      %s191 = scalar_lea.vmem %s2, %s190
      %s192 = smul.u32 4, %s20
      %p193 = scmp.lt.s32.totalorder %s18, 0
      %s194 = scalar_select %p193, %s18, 0
      %p195 = scmp.lt.s32.totalorder %s192, 7
      %s196 = scalar_select %p195, %s192, 7
      %s197 = smul.addr %s194, 8
      %s198 = sadd.s32 %s196, %s197
      %s199 = smul.addr %s198, 4
      %s200 = scalar_lea.vmem %s0, %s199
      %s201 = smul.u32 4, %s20
      %s202 = smul.u32 64, %s20
      %p203 = scmp.lt.s32.totalorder %s202, 127
      %s204 = scalar_select %p203, %s202, 127
      %p205 = scmp.lt.s32.totalorder %s19, 0
      %s206 = scalar_select %p205, %s19, 0
      %s207 = sadd.s32 %s206, %s204
      %s208 = smul.addr %s207, 4
      %s209 = scalar_lea.vmem %s1, %s208
      %s210 = smul.u32 64, %s20
      %p211 = scmp.lt.s32.totalorder %s18, 0
      %s212 = scalar_select %p211, %s18, 0
      %p213 = scmp.lt.s32.totalorder %s19, 0
      %s214 = scalar_select %p213, %s19, 0
      %s215 = sadd.s32 %s214, %s212
      %s216 = smul.addr %s215, 8
      %s217 = scalar_lea.vmem %s2, %s216
      %p219 = scmp.eq.s32.totalorder %s20, 0
      // Predicated region
      $region29: #{gand_forward.15} parent=27 // pred_check
        %p220 = pneg %p219
      $region30: #{gand_forward.15} parent=27 // pred_check_branch
        %222 = sbr.rel (%p220) target = $region32
      $region31: #{gand_forward.15} parent=27 // pred_region
        %223 = vst [vmem:[#allocation2] sm:$0xff] 0.0
      $region32: #{gand_forward.15} parent=27 // pred_fallthru
        _
      %v224 = vld [vmem:[#allocation2] sm:$0xff]
      %v225 = vld [vmem:[%s200] sm:$0xff]
      %v226 = vld [vmem:[%s200 + $0x8] sm:$0xff]
      %v227 = vld [vmem:[%s209] sm:$0xf]
      %v228 = vld [vmem:[%s209 + $0x4] sm:$0xf]
      %v229 = vld [vmem:[%s209 + $0x8] sm:$0xf]
      %v230 = vld [vmem:[%s209 + $0xc] sm:$0xf]
      %v231 = vld [vmem:[%s209 + $0x10] sm:$0xf]
      %v232 = vld [vmem:[%s209 + $0x14] sm:$0xf]
      %v233 = vld [vmem:[%s209 + $0x18] sm:$0xf]
      %v234 = vld [vmem:[%s209 + $0x1c] sm:$0xf]
      %v235 = vld [vmem:[%s209 + $0x20] sm:$0xf]
      %v236 = vld [vmem:[%s209 + $0x24] sm:$0xf]
      %v237 = vld [vmem:[%s209 + $0x28] sm:$0xf]
      %v238 = vld [vmem:[%s209 + $0x2c] sm:$0xf]
      %v239 = vld [vmem:[%s209 + $0x30] sm:$0xf]
      %v240 = vld [vmem:[%s209 + $0x34] sm:$0xf]
      %v241 = vld [vmem:[%s209 + $0x38] sm:$0xf]
      %v242 = vld [vmem:[%s209 + $0x3c] sm:$0xf]
      %v243 = vld [vmem:[%s209 + $0x40] sm:$0xf]
      %v244 = vld [vmem:[%s209 + $0x44] sm:$0xf]
      %v245 = vld [vmem:[%s209 + $0x48] sm:$0xf]
      %v246 = vld [vmem:[%s209 + $0x4c] sm:$0xf]
      %v247 = vld [vmem:[%s209 + $0x50] sm:$0xf]
      %v248 = vld [vmem:[%s209 + $0x54] sm:$0xf]
      %v249 = vld [vmem:[%s209 + $0x58] sm:$0xf]
      %v250 = vld [vmem:[%s209 + $0x5c] sm:$0xf]
      %v251 = vld [vmem:[%s209 + $0x60] sm:$0xf]
      %v252 = vld [vmem:[%s209 + $0x64] sm:$0xf]
      %v253 = vld [vmem:[%s209 + $0x68] sm:$0xf]
      %v254 = vld [vmem:[%s209 + $0x6c] sm:$0xf]
      %v255 = vld [vmem:[%s209 + $0x70] sm:$0xf]
      %v256 = vld [vmem:[%s209 + $0x74] sm:$0xf]
      %v257 = vld [vmem:[%s209 + $0x78] sm:$0xf]
      %v258 = vld [vmem:[%s209 + $0x7c] sm:$0xf]
      %v259 = vld [vmem:[%s209 + $0x80] sm:$0xf]
      %v260 = vld [vmem:[%s209 + $0x84] sm:$0xf]
      %v261 = vld [vmem:[%s209 + $0x88] sm:$0xf]
      %v262 = vld [vmem:[%s209 + $0x8c] sm:$0xf]
      %v263 = vld [vmem:[%s209 + $0x90] sm:$0xf]
      %v264 = vld [vmem:[%s209 + $0x94] sm:$0xf]
      %v265 = vld [vmem:[%s209 + $0x98] sm:$0xf]
      %v266 = vld [vmem:[%s209 + $0x9c] sm:$0xf]
      %v267 = vld [vmem:[%s209 + $0xa0] sm:$0xf]
      %v268 = vld [vmem:[%s209 + $0xa4] sm:$0xf]
      %v269 = vld [vmem:[%s209 + $0xa8] sm:$0xf]
      %v270 = vld [vmem:[%s209 + $0xac] sm:$0xf]
      %v271 = vld [vmem:[%s209 + $0xb0] sm:$0xf]
      %v272 = vld [vmem:[%s209 + $0xb4] sm:$0xf]
      %v273 = vld [vmem:[%s209 + $0xb8] sm:$0xf]
      %v274 = vld [vmem:[%s209 + $0xbc] sm:$0xf]
      %v275 = vld [vmem:[%s209 + $0xc0] sm:$0xf]
      %v276 = vld [vmem:[%s209 + $0xc4] sm:$0xf]
      %v277 = vld [vmem:[%s209 + $0xc8] sm:$0xf]
      %v278 = vld [vmem:[%s209 + $0xcc] sm:$0xf]
      %v279 = vld [vmem:[%s209 + $0xd0] sm:$0xf]
      %v280 = vld [vmem:[%s209 + $0xd4] sm:$0xf]
      %v281 = vld [vmem:[%s209 + $0xd8] sm:$0xf]
      %v282 = vld [vmem:[%s209 + $0xdc] sm:$0xf]
      %v283 = vld [vmem:[%s209 + $0xe0] sm:$0xf]
      %v284 = vld [vmem:[%s209 + $0xe4] sm:$0xf]
      %v285 = vld [vmem:[%s209 + $0xe8] sm:$0xf]
      %v286 = vld [vmem:[%s209 + $0xec] sm:$0xf]
      %v287 = vld [vmem:[%s209 + $0xf0] sm:$0xf]
      %v288 = vld [vmem:[%s209 + $0xf4] sm:$0xf]
      %v289 = vld [vmem:[%s209 + $0xf8] sm:$0xf]
      %v290 = vld [vmem:[%s209 + $0xfc] sm:$0xf]
      %v293 = vunpack.c.l.b16 %v225
      %v294 = vunpack.c.h.b16 %v225
      %v295 = vunpack.c.l.b16 %v226
      %v296 = vunpack.c.h.b16 %v226
      %v297 = vpack.c.b16 %v293, %v293
      %v298 = vpack.c.b16 %v294, %v294
      %v299 = vpack.c.b16 %v295, %v295
      %v300 = vpack.c.b16 %v296, %v296
      %v369 = vunpack.c.l.b16 %v227
      %v370 = vunpack.c.l.b16 %v228
      %v371 = vunpack.c.l.b16 %v229
      %v372 = vunpack.c.l.b16 %v230
      %v373 = vunpack.c.l.b16 %v231
      %v374 = vunpack.c.l.b16 %v232
      %v375 = vunpack.c.l.b16 %v233
      %v376 = vunpack.c.l.b16 %v234
      %v377 = vunpack.c.l.b16 %v235
      %v378 = vunpack.c.l.b16 %v236
      %v379 = vunpack.c.l.b16 %v237
      %v380 = vunpack.c.l.b16 %v238
      %v381 = vunpack.c.l.b16 %v239
      %v382 = vunpack.c.l.b16 %v240
      %v383 = vunpack.c.l.b16 %v241
      %v384 = vunpack.c.l.b16 %v242
      %v385 = vunpack.c.l.b16 %v243
      %v386 = vunpack.c.l.b16 %v244
      %v387 = vunpack.c.l.b16 %v245
      %v388 = vunpack.c.l.b16 %v246
      %v389 = vunpack.c.l.b16 %v247
      %v390 = vunpack.c.l.b16 %v248
      %v391 = vunpack.c.l.b16 %v249
      %v392 = vunpack.c.l.b16 %v250
      %v393 = vunpack.c.l.b16 %v251
      %v394 = vunpack.c.l.b16 %v252
      %v395 = vunpack.c.l.b16 %v253
      %v396 = vunpack.c.l.b16 %v254
      %v397 = vunpack.c.l.b16 %v255
      %v398 = vunpack.c.l.b16 %v256
      %v399 = vunpack.c.l.b16 %v257
      %v400 = vunpack.c.l.b16 %v258
      %v401 = vunpack.c.l.b16 %v259
      %v402 = vunpack.c.l.b16 %v260
      %v403 = vunpack.c.l.b16 %v261
      %v404 = vunpack.c.l.b16 %v262
      %v405 = vunpack.c.l.b16 %v263
      %v406 = vunpack.c.l.b16 %v264
      %v407 = vunpack.c.l.b16 %v265
      %v408 = vunpack.c.l.b16 %v266
      %v409 = vunpack.c.l.b16 %v267
      %v410 = vunpack.c.l.b16 %v268
      %v411 = vunpack.c.l.b16 %v269
      %v412 = vunpack.c.l.b16 %v270
      %v413 = vunpack.c.l.b16 %v271
      %v414 = vunpack.c.l.b16 %v272
      %v415 = vunpack.c.l.b16 %v273
      %v416 = vunpack.c.l.b16 %v274
      %v417 = vunpack.c.l.b16 %v275
      %v418 = vunpack.c.l.b16 %v276
      %v419 = vunpack.c.l.b16 %v277
      %v420 = vunpack.c.l.b16 %v278
      %v421 = vunpack.c.l.b16 %v279
      %v422 = vunpack.c.l.b16 %v280
      %v423 = vunpack.c.l.b16 %v281
      %v424 = vunpack.c.l.b16 %v282
      %v425 = vunpack.c.l.b16 %v283
      %v426 = vunpack.c.l.b16 %v284
      %v427 = vunpack.c.l.b16 %v285
      %v428 = vunpack.c.l.b16 %v286
      %v429 = vunpack.c.l.b16 %v287
      %v430 = vunpack.c.l.b16 %v288
      %v431 = vunpack.c.l.b16 %v289
      %v432 = vunpack.c.l.b16 %v290
      %v433 = vpack.c.b16 %v370, %v369
      %v434 = vpack.c.b16 %v372, %v371
      %v435 = vpack.c.b16 %v374, %v373
      %v436 = vpack.c.b16 %v376, %v375
      %v437 = vpack.c.b16 %v378, %v377
      %v438 = vpack.c.b16 %v380, %v379
      %v439 = vpack.c.b16 %v382, %v381
      %v440 = vpack.c.b16 %v384, %v383
      %v441 = vpack.c.b16 %v386, %v385
      %v442 = vpack.c.b16 %v388, %v387
      %v443 = vpack.c.b16 %v390, %v389
      %v444 = vpack.c.b16 %v392, %v391
      %v445 = vpack.c.b16 %v394, %v393
      %v446 = vpack.c.b16 %v396, %v395
      %v447 = vpack.c.b16 %v398, %v397
      %v448 = vpack.c.b16 %v400, %v399
      %v449 = vpack.c.b16 %v402, %v401
      %v450 = vpack.c.b16 %v404, %v403
      %v451 = vpack.c.b16 %v406, %v405
      %v452 = vpack.c.b16 %v408, %v407
      %v453 = vpack.c.b16 %v410, %v409
      %v454 = vpack.c.b16 %v412, %v411
      %v455 = vpack.c.b16 %v414, %v413
      %v456 = vpack.c.b16 %v416, %v415
      %v457 = vpack.c.b16 %v418, %v417
      %v458 = vpack.c.b16 %v420, %v419
      %v459 = vpack.c.b16 %v422, %v421
      %v460 = vpack.c.b16 %v424, %v423
      %v461 = vpack.c.b16 %v426, %v425
      %v462 = vpack.c.b16 %v428, %v427
      %v463 = vpack.c.b16 %v430, %v429
      %v464 = vpack.c.b16 %v432, %v431
      %497 = vmatprep.subr.bf16.mxu0 0
      %498 = vmatpush1.bf16.msra.mxu0 %v440
      %499 = vmatprep.subr.bf16.mxu0 0
      %500 = vmatpush1.bf16.msra.mxu0 %v439
      %501 = vmatprep.subr.bf16.mxu0 0
      %502 = vmatpush1.bf16.msra.mxu0 %v438
      %503 = vmatprep.subr.bf16.mxu0 0
      %504 = vmatpush1.bf16.msra.mxu0 %v437
      %505 = vmatprep.subr.bf16.mxu0 0
      %506 = vmatpush1.bf16.msra.mxu0 %v436
      %507 = vmatprep.subr.bf16.mxu0 0
      %508 = vmatpush1.bf16.msra.mxu0 %v435
      %509 = vmatprep.subr.bf16.mxu0 0
      %510 = vmatpush1.bf16.msra.mxu0 %v434
      %511 = vmatprep.subr.bf16.mxu0 0
      %512 = vmatpush1.bf16.msra.mxu0 %v433
      %513 = vmatprep.subr.bf16.mxu0 0
      %514 = vmatpush2.bf16.msra.mxu0 %v448
      %515 = vmatprep.subr.bf16.mxu0 0
      %516 = vmatpush2.bf16.msra.mxu0 %v447
      %517 = vmatprep.subr.bf16.mxu0 0
      %518 = vmatpush2.bf16.msra.mxu0 %v446
      %519 = vmatprep.subr.bf16.mxu0 0
      %520 = vmatpush2.bf16.msra.mxu0 %v445
      %521 = vmatprep.subr.bf16.mxu0 0
      %522 = vmatpush2.bf16.msra.mxu0 %v444
      %523 = vmatprep.subr.bf16.mxu0 0
      %524 = vmatpush2.bf16.msra.mxu0 %v443
      %525 = vmatprep.subr.bf16.mxu0 0
      %526 = vmatpush2.bf16.msra.mxu0 %v442
      %527 = vmatprep.subr.bf16.mxu0 0
      %528 = vmatpush2.bf16.msra.mxu0 %v441
      %529 = vmatprep.mubr.bf16.mxu0 %v298
      %530 = vmatmul.mubr.bf16.gmra.mxu0 %v297
      %v531 = vpop.f32.mrf.mxu0
      %v532 = vadd.f32 0.0, %v531
      %v533 = vpop.f32.mrf.mxu0
      %v534 = vpop.f32.mrf.mxu0
      %v535 = vpop.f32.mrf.mxu0
      %536 = vdwg.mxu0
      %537 = vmatprep.subr.bf16.mxu0 0
      %538 = vmatpush1.bf16.msra.mxu0 %v456
      %539 = vmatprep.subr.bf16.mxu0 0
      %540 = vmatpush1.bf16.msra.mxu0 %v455
      %541 = vmatprep.subr.bf16.mxu0 0
      %542 = vmatpush1.bf16.msra.mxu0 %v454
      %543 = vmatprep.subr.bf16.mxu0 0
      %544 = vmatpush1.bf16.msra.mxu0 %v453
      %545 = vmatprep.subr.bf16.mxu0 0
      %546 = vmatpush1.bf16.msra.mxu0 %v452
      %547 = vmatprep.subr.bf16.mxu0 0
      %548 = vmatpush1.bf16.msra.mxu0 %v451
      %549 = vmatprep.subr.bf16.mxu0 0
      %550 = vmatpush1.bf16.msra.mxu0 %v450
      %551 = vmatprep.subr.bf16.mxu0 0
      %552 = vmatpush1.bf16.msra.mxu0 %v449
      %553 = vmatprep.subr.bf16.mxu0 0
      %554 = vmatpush2.bf16.msra.mxu0 %v464
      %555 = vmatprep.subr.bf16.mxu0 0
      %556 = vmatpush2.bf16.msra.mxu0 %v463
      %557 = vmatprep.subr.bf16.mxu0 0
      %558 = vmatpush2.bf16.msra.mxu0 %v462
      %559 = vmatprep.subr.bf16.mxu0 0
      %560 = vmatpush2.bf16.msra.mxu0 %v461
      %561 = vmatprep.subr.bf16.mxu0 0
      %562 = vmatpush2.bf16.msra.mxu0 %v460
      %563 = vmatprep.subr.bf16.mxu0 0
      %564 = vmatpush2.bf16.msra.mxu0 %v459
      %565 = vmatprep.subr.bf16.mxu0 0
      %566 = vmatpush2.bf16.msra.mxu0 %v458
      %567 = vmatprep.subr.bf16.mxu0 0
      %568 = vmatpush2.bf16.msra.mxu0 %v457
      %569 = vmatprep.mubr.bf16.mxu0 %v300
      %570 = vmatmul.mubr.bf16.gmra.mxu0 %v299
      %v571 = vpop.f32.mrf.mxu0
      %v572 = vadd.f32 %v532, %v571
      %v573 = vpop.f32.mrf.mxu0
      %v574 = vpop.f32.mrf.mxu0
      %v575 = vpop.f32.mrf.mxu0
      %576 = vdwg.mxu0
      %v577 = vadd.f32 %v224, %v572
      %578 = vst [vmem:[#allocation2] sm:$0xff] %v577
      %p579 = scmp.eq.s32.totalorder %s20, 1
      // Predicated region
      $region33: #{gand_forward.15} parent=27 // pred_check
        %p580 = pneg %p579
      $region34: #{gand_forward.15} parent=27 // pred_check_branch
        %582 = sbr.rel (%p580) target = $region36
      $region35: #{gand_forward.15} parent=27 // pred_region
        %v583 = vld [vmem:[#allocation2] sm:$0xff]
        %584 = vst [vmem:[%s217] sm:$0xff] %v583
      $region36: #{gand_forward.15} parent=27 // pred_fallthru
        _
      %p585 = scmp.lt.s32.totalorder %s18, 0
      %s586 = scalar_select %p585, %s18, 0
      %p587 = scmp.lt.s32.totalorder %s19, 0
      %s588 = scalar_select %p587, %s19, 0
      %s589 = sadd.s32 %s588, %s586
      %s590 = smul.addr %s589, 8
      %s591 = scalar_lea.vmem %s2, %s590
      // Predicated region
      $region37: #{gand_forward.15} parent=27 // pred_check
        %p592 = pneg %p108
      $region38: #{gand_forward.15} parent=27 // pred_check_branch
        %594 = sbr.rel (%p592) target = $region40
      $region39: #{gand_forward.15} parent=27 // pred_region
        _
      $region40: #{gand_forward.15} parent=27 // pred_fallthru
        _
      // Predicated region
      $region41: #{gand_forward.15} parent=27 // pred_check
        %p595 = pneg %p108
      $region42: #{gand_forward.15} parent=27 // pred_check_branch
        %597 = sbr.rel (%p595) target = $region44
      $region43: #{gand_forward.15} parent=27 // pred_region
        %p598 = scmp.lt.s32.totalorder %s18, 0
        %s599 = scalar_select %p598, %s18, 0
        %p600 = scmp.lt.s32.totalorder %s19, 0
        %s601 = scalar_select %p600, %s19, 0
        %s602 = sadd.s32 %s601, %s599
        %s603 = smul.addr %s602, 8
        %s604 = scalar_lea.vmem %s2, %s603
      $region44: #{gand_forward.15} parent=27 // pred_fallthru
        _
    $region28: #{gand_forward.15} parent=5 // pred_fallthru
      _
    %p605 = scmp.le.s32.totalorder 2, %s8
    // Predicated region
    $region45: #{gand_forward.15} parent=5 // pred_check
      %p606 = pneg %p605
    $region46: #{gand_forward.15} parent=5 // pred_check_branch
      %608 = sbr.rel (%p606) target = $region48
    $region47: #{gand_forward.15} parent=5 // pred_region
      %s609 = ssub.s32 %s8, 2
    $region48: #{gand_forward.15} parent=5 // pred_fallthru
      _
  $region6: #{gand_forward.15} parent=0 // loop_footer
    %s12 = sadd.s32 1, %s8
  $region7: #{gand_forward.15} parent=0 // loop_footer_branch
    %7 = sbr.rel target = $region3
  $region8: #{gand_forward.15} parent=0 // loop_exit
    _

</llo_original>
